<compile_context>
chip_gen: v5e
topology: v5e:2x2
jax: 0.10.0
libtpu: 0.0.40
codegen_flags: <defaults>
</compile_context>

<pallas_src>
import functools
import math

import jax
import jax.numpy as jnp
from jax import lax
from jax.experimental import pallas as pl
from jax.experimental.pallas import tpu as pltpu


_VMEM_LIMIT = 32 * 1024 * 1024          # safe on v5e/v6e/v7x
_NEG_INF = -1e30
_GELU_C = math.sqrt(2.0 / math.pi)


# -----------------------------------------------------------------------------
# tiling helpers
# -----------------------------------------------------------------------------

def _row_tile(m, max_tile=256):
    """Token-axis tile: full array if small, else a multiple-of-8 tile."""
    if m <= max_tile:
        return m
    for t in range(max_tile, 7, -8):
        if m % t == 0:
            return t
    return max_tile          # non-dividing: rely on Pallas boundary padding (row-wise ops)


def _ff_tile(ff, max_tile=512):
    """Tile of the 4H MLP intermediate; must divide ff (accumulator correctness)."""
    if ff <= max_tile:
        return ff
    for t in range(max_tile, 127, -128):
        if ff % t == 0:
            return t
    return ff                # fall back to a single FF block


def _cparams(semantics):
    return pltpu.CompilerParams(dimension_semantics=semantics,
                                vmem_limit_bytes=_VMEM_LIMIT)


# -----------------------------------------------------------------------------
# Pallas kernels
# -----------------------------------------------------------------------------

def _ln(x, g, b, eps):
    mu = jnp.mean(x, axis=-1, keepdims=True)
    var = jnp.mean((x - mu) ** 2, axis=-1, keepdims=True)
    return (x - mu) * lax.rsqrt(var + eps) * g + b


def _linear_kernel(x_ref, w_ref, b_ref, o_ref):
    # o = x @ W + b   (bf16 MXU, f32 accumulate)
    x = x_ref[...].astype(jnp.bfloat16)
    o_ref[...] = jnp.dot(x, w_ref[...], preferred_element_type=jnp.float32) + b_ref[...]


def _linear_res_kernel(x_ref, w_ref, b_ref, r_ref, o_ref):
    # o = x @ W + b + residual   (fused residual add)
    x = x_ref[...].astype(jnp.bfloat16)
    o_ref[...] = (jnp.dot(x, w_ref[...], preferred_element_type=jnp.float32)
                  + b_ref[...] + r_ref[...])


def _ln_posadd_kernel(x_ref, g_ref, b_ref, pos_ref, o_ref, *, eps):
    # o = LN(x) + positional_embedding   (embed_ln fused with wpe add)
    o_ref[...] = _ln(x_ref[...], g_ref[...], b_ref[...], eps) + pos_ref[...]


def _ln_linear_kernel(x_ref, g_ref, bln_ref, w_ref, b_ref, o_ref, *, eps):
    # o = LN(x) @ W + b   (LN fused into the consumer matmul)
    xn = _ln(x_ref[...], g_ref[...], bln_ref[...], eps).astype(jnp.bfloat16)
    o_ref[...] = jnp.dot(xn, w_ref[...], preferred_element_type=jnp.float32) + b_ref[...]


def _ln_mlp_kernel(x_ref, g_ref, bln_ref, w1_ref, b1_ref, w2_ref, b2_ref, r_ref,
                   o_ref, xn_ref, acc_ref, *, eps):
    # Fused LN -> c_fc -> gelu_new -> c_proj -> + residual, tiled over the 4H
    # (ff) axis with an f32 accumulator so the intermediate is never whole in VMEM.
    ff = pl.program_id(1)

    @pl.when(ff == 0)
    def _():
        xn_ref[...] = _ln(x_ref[...], g_ref[...], bln_ref[...], eps)
        acc_ref[...] = jnp.zeros_like(acc_ref)

    h = (jnp.dot(xn_ref[...].astype(jnp.bfloat16), w1_ref[...],
                 preferred_element_type=jnp.float32) + b1_ref[...])
    h = 0.5 * h * (1.0 + jnp.tanh(_GELU_C * (h + 0.044715 * h * h * h)))   # gelu_new
    acc_ref[...] += jnp.dot(h.astype(jnp.bfloat16), w2_ref[...],
                            preferred_element_type=jnp.float32)

    @pl.when(ff == pl.num_programs(1) - 1)
    def _():
        o_ref[...] = acc_ref[...] + b2_ref[...] + r_ref[...]


def _attn_kernel(qkv_ref, mask_ref, o_ref, *, n_head, head_dim, scale):
    # Per-batch attention on the lane-dense (TT, 3H) qkv slab. Causal + padding
    # mask built in-kernel (no HBM bias tensor). Per-head contractions via
    # dot_general over the last dims (no explicit transposes).
    # TODO(synk): for long sequences switch to a flash-style KV-tiled variant.
    tt = qkv_ref.shape[1]
    hidden = n_head * head_dim
    qkv = qkv_ref[0]                                   # (TT, 3H) f32

    pad_ok = mask_ref[0] > 0.0                         # (1, TT)
    q_idx = lax.broadcasted_iota(jnp.int32, (tt, tt), 0)
    k_idx = lax.broadcasted_iota(jnp.int32, (tt, tt), 1)
    allowed = (k_idx <= q_idx) & pad_ok                # (TT, TT)
    bias = jnp.where(allowed, 0.0, _NEG_INF)

    outs = []
    for h in range(n_head):                            # unrolled static loop
        lo = h * head_dim
        hi = lo + head_dim
        qh = qkv[:, lo:hi].astype(jnp.bfloat16)
        kh = qkv[:, hidden + lo:hidden + hi].astype(jnp.bfloat16)
        vh = qkv[:, 2 * hidden + lo:2 * hidden + hi].astype(jnp.bfloat16)
        s = lax.dot_general(qh, kh, (((1,), (1,)), ((), ())),
                            preferred_element_type=jnp.float32)
        s = s * scale + bias
        m = jnp.max(s, axis=-1, keepdims=True)
        p = jnp.exp(s - m)
        p = p / jnp.sum(p, axis=-1, keepdims=True)
        outs.append(jnp.dot(p.astype(jnp.bfloat16), vh,
                            preferred_element_type=jnp.float32))
    o_ref[0] = jnp.concatenate(outs, axis=-1)          # lane-dense (TT, H) store


# -----------------------------------------------------------------------------
# pallas_call wrappers (token-tiled grids)
# -----------------------------------------------------------------------------

def pallas_linear(x, w, b, residual=None, *, max_rows=256):
    m, k = x.shape
    n = w.shape[1]
    tm = _row_tile(m, max_rows)
    grid = (pl.cdiv(m, tm),)
    x_spec = pl.BlockSpec((tm, k), lambda i: (i, 0))
    w_spec = pl.BlockSpec((k, n), lambda i: (0, 0))
    b_spec = pl.BlockSpec((1, n), lambda i: (0, 0))
    o_spec = pl.BlockSpec((tm, n), lambda i: (i, 0))
    if residual is None:
        return pl.pallas_call(
            _linear_kernel,
            out_shape=jax.ShapeDtypeStruct((m, n), jnp.float32),
            grid=grid, in_specs=[x_spec, w_spec, b_spec], out_specs=o_spec,
            compiler_params=_cparams(("parallel",)),
        )(x, w, b.reshape(1, n))
    return pl.pallas_call(
        _linear_res_kernel,
        out_shape=jax.ShapeDtypeStruct((m, n), jnp.float32),
        grid=grid, in_specs=[x_spec, w_spec, b_spec, o_spec], out_specs=o_spec,
        compiler_params=_cparams(("parallel",)),
    )(x, w, b.reshape(1, n), residual)


def pallas_ln_posadd(x, g, b, pos, *, eps=1e-5, max_rows=256):
    # x: (B, TT, H) ; pos: (TT, H) ; returns LN(x) + pos
    bsz, tt, h = x.shape
    tr = _row_tile(tt, max_rows)
    return pl.pallas_call(
        functools.partial(_ln_posadd_kernel, eps=eps),
        out_shape=jax.ShapeDtypeStruct((bsz, tt, h), jnp.float32),
        grid=(bsz, pl.cdiv(tt, tr)),
        in_specs=[pl.BlockSpec((1, tr, h), lambda i, j: (i, j, 0)),
                  pl.BlockSpec((1, h), lambda i, j: (0, 0)),
                  pl.BlockSpec((1, h), lambda i, j: (0, 0)),
                  pl.BlockSpec((tr, h), lambda i, j: (j, 0))],
        out_specs=pl.BlockSpec((1, tr, h), lambda i, j: (i, j, 0)),
        compiler_params=_cparams(("parallel", "parallel")),
    )(x, g.reshape(1, h), b.reshape(1, h), pos)


def pallas_ln_linear(x, g, bln, w, b, *, eps=1e-5, max_rows=256):
    m, h = x.shape
    n = w.shape[1]
    tm = _row_tile(m, max_rows)
    # TODO(synk): for very large H, add a K-reduction grid axis with an accumulator.
    return pl.pallas_call(
        functools.partial(_ln_linear_kernel, eps=eps),
        out_shape=jax.ShapeDtypeStruct((m, n), jnp.float32),
        grid=(pl.cdiv(m, tm),),
        in_specs=[pl.BlockSpec((tm, h), lambda i: (i, 0)),
                  pl.BlockSpec((1, h), lambda i: (0, 0)),
                  pl.BlockSpec((1, h), lambda i: (0, 0)),
                  pl.BlockSpec((h, n), lambda i: (0, 0)),
                  pl.BlockSpec((1, n), lambda i: (0, 0))],
        out_specs=pl.BlockSpec((tm, n), lambda i: (i, 0)),
        compiler_params=_cparams(("parallel",)),
    )(x, g.reshape(1, h), bln.reshape(1, h), w, b.reshape(1, n))


def pallas_ln_mlp(x, g, bln, w1, b1, w2, b2, residual, *, eps=1e-5,
                  max_rows=256, max_ff=512):
    m, h = x.shape
    ff = w1.shape[1]
    tm = _row_tile(m, max_rows)
    tff = _ff_tile(ff, max_ff)
    grid = (pl.cdiv(m, tm), ff // tff)
    return pl.pallas_call(
        functools.partial(_ln_mlp_kernel, eps=eps),
        out_shape=jax.ShapeDtypeStruct((m, h), jnp.float32),
        grid=grid,
        in_specs=[pl.BlockSpec((tm, h), lambda i, j: (i, 0)),
                  pl.BlockSpec((1, h), lambda i, j: (0, 0)),
                  pl.BlockSpec((1, h), lambda i, j: (0, 0)),
                  pl.BlockSpec((h, tff), lambda i, j: (0, j)),
                  pl.BlockSpec((1, tff), lambda i, j: (0, j)),
                  pl.BlockSpec((tff, h), lambda i, j: (j, 0)),
                  pl.BlockSpec((1, h), lambda i, j: (0, 0)),
                  pl.BlockSpec((tm, h), lambda i, j: (i, 0))],
        out_specs=pl.BlockSpec((tm, h), lambda i, j: (i, 0)),
        scratch_shapes=[pltpu.VMEM((tm, h), jnp.float32),    # cached LN(x)
                        pltpu.VMEM((tm, h), jnp.float32)],   # f32 accumulator
        compiler_params=_cparams(("parallel", "arbitrary")),
    )(x, g.reshape(1, h), bln.reshape(1, h), w1, b1.reshape(1, ff),
      w2, b2.reshape(1, h), residual)


def pallas_attention(qkv, mask, *, n_head):
    # qkv: (B, TT, 3H) f32; mask: (B, 1, TT) f32 (1 = attend, 0 = padding)
    b, tt, three_h = qkv.shape
    hidden = three_h // 3
    head_dim = hidden // n_head
    scale = 1.0 / math.sqrt(head_dim)
    return pl.pallas_call(
        functools.partial(_attn_kernel, n_head=n_head, head_dim=head_dim,
                          scale=scale),
        out_shape=jax.ShapeDtypeStruct((b, tt, hidden), jnp.float32),
        grid=(b,),
        in_specs=[pl.BlockSpec((1, tt, three_h), lambda i: (i, 0, 0)),
                  pl.BlockSpec((1, 1, tt), lambda i: (i, 0, 0))],
        out_specs=pl.BlockSpec((1, tt, hidden), lambda i: (i, 0, 0)),
        compiler_params=_cparams(("parallel",)),
    )(qkv, mask)


# -----------------------------------------------------------------------------
# Parameter construction (deterministic, synthetic — no checkpoint loading)
# -----------------------------------------------------------------------------

def _linear_params(key, d_in, d_out):
    # matmul weights stored in bf16 (MXU-native); biases / LN params in f32
    return {"w": (jax.random.normal(key, (d_in, d_out), jnp.float32) * 0.02
                  ).astype(jnp.bfloat16),
            "b": jnp.zeros((d_out,), jnp.float32)}


def _ln_params(h):
    return {"g": jnp.ones((h,), jnp.float32), "b": jnp.zeros((h,), jnp.float32)}


def _build_embed_weight(p_return, p_state, p_action, hidden):
    # Block-diagonal weight so one matmul of [rtg | obs | act] produces the
    # interleaved [return_emb | state_emb | action_emb] 3H-wide token slab.
    k_s = p_state["w"].shape[0]
    k_a = p_action["w"].shape[0]
    w = jnp.zeros((1 + k_s + k_a, 3 * hidden), jnp.bfloat16)
    w = w.at[0:1, 0:hidden].set(p_return["w"])
    w = w.at[1:1 + k_s, hidden:2 * hidden].set(p_state["w"])
    w = w.at[1 + k_s:, 2 * hidden:].set(p_action["w"])
    b = jnp.concatenate([p_return["b"], p_state["b"], p_action["b"]])
    return w, b


def init_params(key, obs_dim, act_dim, hidden, n_layer, n_head, max_ep_len, n_positions):
    keys = iter(jax.random.split(key, 8 + 4 * n_layer))
    params = {
        "embed_timestep": jax.random.normal(next(keys), (max_ep_len, hidden), jnp.float32) * 0.02,
        "embed_return": _linear_params(next(keys), 1, hidden),
        "embed_state": _linear_params(next(keys), obs_dim, hidden),
        "embed_action": _linear_params(next(keys), act_dim, hidden),
        "embed_ln": _ln_params(hidden),
        "wpe": jax.random.normal(next(keys), (n_positions, hidden), jnp.float32) * 0.02,
        "blocks": [],
        "ln_f": _ln_params(hidden),
        "predict_state": _linear_params(next(keys), hidden, obs_dim),
        "predict_action": _linear_params(next(keys), hidden, act_dim),
        "predict_return": _linear_params(next(keys), hidden, 1),
    }
    # precomputed fused embedding (one matmul for return|state|action tokens)
    w_emb, b_emb = _build_embed_weight(params["embed_return"],
                                       params["embed_state"],
                                       params["embed_action"], hidden)
    params["embed_fused"] = {"w": w_emb, "b": b_emb}
    # precomputed fused prediction head (state + return from action tokens)
    params["predict_sr"] = {
        "w": jnp.concatenate([params["predict_state"]["w"],
                              params["predict_return"]["w"]], axis=1),
        "b": jnp.concatenate([params["predict_state"]["b"],
                              params["predict_return"]["b"]]),
    }
    for _ in range(n_layer):
        params["blocks"].append({
            "ln_1": _ln_params(hidden),
            "c_attn": _linear_params(next(keys), hidden, 3 * hidden),
            "c_proj": _linear_params(next(keys), hidden, hidden),
            "ln_2": _ln_params(hidden),
            "c_fc": _linear_params(next(keys), hidden, 4 * hidden),
            "mlp_proj": _linear_params(next(keys), 4 * hidden, hidden),
        })
    return params


# -----------------------------------------------------------------------------
# Forward pass (matches GPTDecoder.forward; action_tanh=False)
# -----------------------------------------------------------------------------

def gpt_decoder_forward(params, obs, actions, rewards, returns_to_go, timesteps,
                        attention_mask=None, *, n_head):
    del rewards  # unused by the PyTorch forward as well
    B, T, obs_dim = obs.shape
    act_dim = actions.shape[-1]
    H = params["embed_state"]["w"].shape[1]
    TT = 3 * T

    if attention_mask is None:
        attention_mask = jnp.ones((B, T), dtype=jnp.float32)
    attention_mask = attention_mask.astype(jnp.float32)

    # --- fused (return | state | action) embedding projection (one matmul) ---
    x_in = jnp.concatenate([returns_to_go, obs, actions], axis=-1)        # (B,T,1+obs+act)
    emb = pallas_linear(x_in.reshape(B * T, 1 + obs_dim + act_dim),
                        params["embed_fused"]["w"], params["embed_fused"]["b"])

    time_emb = jnp.take(params["embed_timestep"], timesteps, axis=0)      # glue: gather
    emb = emb.reshape(B, T, 3, H) + time_emb[:, :, None, :]
    stacked = emb.reshape(B, TT, H)                                       # token order (r,s,a)

    # embed_ln fused with the GPT2 positional-embedding add (one kernel)
    h = pallas_ln_posadd(stacked, params["embed_ln"]["g"], params["embed_ln"]["b"],
                         params["wpe"][:TT])

    # padding mask interleaved to 3 tokens per timestep (built in-kernel into the bias)
    pad_mask = jnp.repeat(attention_mask, 3, axis=-1).reshape(B, 1, TT)

    # --- GPT2 transformer stack ---
    for blk in params["blocks"]:
        # attention sub-block: fused ln_1 + QKV projection -> attention -> c_proj(+residual)
        qkv = pallas_ln_linear(h.reshape(B * TT, H),
                               blk["ln_1"]["g"], blk["ln_1"]["b"],
                               blk["c_attn"]["w"], blk["c_attn"]["b"])    # (B*TT, 3H)
        attn = pallas_attention(qkv.reshape(B, TT, 3 * H), pad_mask, n_head=n_head)
        h = pallas_linear(attn.reshape(B * TT, H),
                          blk["c_proj"]["w"], blk["c_proj"]["b"],
                          residual=h.reshape(B * TT, H)).reshape(B, TT, H)

        # MLP sub-block: fused ln_2 + c_fc + gelu_new + c_proj + residual
        h = pallas_ln_mlp(h.reshape(B * TT, H),
                          blk["ln_2"]["g"], blk["ln_2"]["b"],
                          blk["c_fc"]["w"], blk["c_fc"]["b"],
                          blk["mlp_proj"]["w"], blk["mlp_proj"]["b"],
                          h.reshape(B * TT, H)).reshape(B, TT, H)

    # --- un-interleave and prediction heads (ln_f fused into the heads) ---
    x = h.reshape(B, T, 3, H)
    action_tok = x[:, :, 2].reshape(B * T, H)   # action tokens -> return/state preds
    state_tok = x[:, :, 1].reshape(B * T, H)    # state tokens  -> action preds

    sr = pallas_ln_linear(action_tok, params["ln_f"]["g"], params["ln_f"]["b"],
                          params["predict_sr"]["w"], params["predict_sr"]["b"])
    state_preds = sr[:, :obs_dim].reshape(B, T, obs_dim)
    return_preds = sr[:, obs_dim:].reshape(B, T, 1)

    action_preds = pallas_ln_linear(state_tok, params["ln_f"]["g"],
                                    params["ln_f"]["b"],
                                    params["predict_action"]["w"],
                                    params["predict_action"]["b"]).reshape(B, T, act_dim)
    # action_tanh=False -> no tanh on action head
    return state_preds, action_preds, return_preds


# -----------------------------------------------------------------------------
# Demo
# -----------------------------------------------------------------------------

if __name__ == "__main__":
    B, T = 2, 8
    OBS_DIM, ACT_DIM, HIDDEN = 6, 3, 32
    N_LAYER, N_HEAD = 2, 4
    MAX_EP_LEN = 128      # embedding-table size (module default 4096; kept small)
    N_POSITIONS = 64      # GPT2 wpe table size (>= 3*T)

    key = jax.random.PRNGKey(0)
    kp, ko, ka, kr, kt = jax.random.split(key, 5)

    params = init_params(kp, OBS_DIM, ACT_DIM, HIDDEN, N_LAYER, N_HEAD,
                         MAX_EP_LEN, N_POSITIONS)

    obs = jax.random.normal(ko, (B, T, OBS_DIM), jnp.float32)
    actions = jax.random.normal(ka, (B, T, ACT_DIM), jnp.float32)
    rewards = jnp.zeros((B, T, 1), jnp.float32)          # unused by forward
    returns_to_go = jax.random.normal(kr, (B, T, 1), jnp.float32)
    timesteps = jax.random.randint(kt, (B, T), 0, MAX_EP_LEN).astype(jnp.int32)

    fwd = jax.jit(functools.partial(gpt_decoder_forward, n_head=N_HEAD))

    state_preds, action_preds, return_preds = fwd(
        params, obs, actions, rewards, returns_to_go, timesteps)
    jax.block_until_ready((state_preds, action_preds, return_preds))

    assert state_preds.shape == (B, T, OBS_DIM)
    assert action_preds.shape == (B, T, ACT_DIM)
    assert return_preds.shape == (B, T, 1)
    assert bool(jnp.all(jnp.isfinite(state_preds)))
    assert bool(jnp.all(jnp.isfinite(action_preds)))
    assert bool(jnp.all(jnp.isfinite(return_preds)))
    print("KERNEL_OK")
</pallas_src>

<mosaic_0001>
module attributes {stable_mosaic.version = 11 : i64} {
  func.func @_linear_kernel(%arg0: i32, %arg1: memref<16x10xf32, #tpu.memory_space<vmem>>, %arg2: memref<10x96xbf16, #tpu.memory_space<vmem>>, %arg3: memref<1x96xf32, #tpu.memory_space<vmem>>, %arg4: memref<16x96xf32, #tpu.memory_space<vmem>>) attributes {dimension_semantics = [#tpu.dimension_semantics<parallel>], iteration_bounds = array<i64: 1>, scalar_prefetch = 0 : i64, scratch_operands = 0 : i64, tpu.core_type = #tpu.core_type<tc>, window_params = [{transform_indices = @transform_0, window_bounds = array<i64: 16, 10>}, {pipeline_mode = #tpu.pipeline_mode<synchronous>, transform_indices = @transform_1, window_bounds = array<i64: 10, 96>}, {pipeline_mode = #tpu.pipeline_mode<synchronous>, transform_indices = @transform_2, window_bounds = array<i64: 1, 96>}, {transform_indices = @transform_3, window_bounds = array<i64: 16, 96>}]} {
    %c0 = arith.constant 0 : index
    %c0_0 = arith.constant 0 : index
    %0 = vector.load %arg1[%c0, %c0_0] : memref<16x10xf32, #tpu.memory_space<vmem>>, vector<16x10xf32>
    %1 = arith.truncf %0 : vector<16x10xf32> to vector<16x10xbf16>
    %c0_1 = arith.constant 0 : index
    %c0_2 = arith.constant 0 : index
    %2 = vector.load %arg2[%c0_1, %c0_2] : memref<10x96xbf16, #tpu.memory_space<vmem>>, vector<10x96xbf16>
    %cst = arith.constant dense<0.000000e+00> : vector<16x96xf32>
    %3 = tpu.matmul %1, %2, %cst {dimension_numbers = #tpu.dot_dimension_numbers<[1], [0], [0], [1], [0, 0, 1, 1], [], []>} : vector<16x10xbf16>, vector<10x96xbf16>, vector<16x96xf32> -> vector<16x96xf32>
    %c0_3 = arith.constant 0 : index
    %c0_4 = arith.constant 0 : index
    %4 = vector.load %arg3[%c0_3, %c0_4] : memref<1x96xf32, #tpu.memory_space<vmem>>, vector<1x96xf32>
    %5 = vector.broadcast %4 : vector<1x96xf32> to vector<16x96xf32>
    %6 = arith.addf %3, %5 : vector<16x96xf32>
    %c0_5 = arith.constant 0 : index
    %c0_6 = arith.constant 0 : index
    %7 = vector.load %arg4[%c0_5, %c0_6] : memref<16x96xf32, #tpu.memory_space<vmem>>, vector<16x96xf32>
    tpu.vector_store %arg4[%c0_5, %c0_6], %6 {strides = array<i32>} : memref<16x96xf32, #tpu.memory_space<vmem>>, vector<16x96xf32>,
    return
  }
  func.func @transform_0(%arg0: i32) -> (i32, i32) {
    %c0_i32 = arith.constant 0 : i32
    %c0_i32_0 = arith.constant 0 : i32
    return %arg0, %c0_i32 : i32, i32
  }
  func.func @transform_1(%arg0: i32) -> (i32, i32) {
    %c0_i32 = arith.constant 0 : i32
    %c0_i32_0 = arith.constant 0 : i32
    %c0_i32_1 = arith.constant 0 : i32
    return %c0_i32, %c0_i32_0 : i32, i32
  }
  func.func @transform_2(%arg0: i32) -> (i32, i32) {
    %c0_i32 = arith.constant 0 : i32
    %c0_i32_0 = arith.constant 0 : i32
    %c0_i32_1 = arith.constant 0 : i32
    return %c0_i32, %c0_i32_0 : i32, i32
  }
  func.func @transform_3(%arg0: i32) -> (i32, i32) {
    %c0_i32 = arith.constant 0 : i32
    %c0_i32_0 = arith.constant 0 : i32
    return %arg0, %c0_i32 : i32, i32
  }
}

module attributes {stable_mosaic.version = 11 : i64} {
  func.func @_ln_linear_kernel(%arg0: i32, %arg1: memref<48x32xf32, #tpu.memory_space<vmem>>, %arg2: memref<1x32xf32, #tpu.memory_space<vmem>>, %arg3: memref<1x32xf32, #tpu.memory_space<vmem>>, %arg4: memref<32x96xbf16, #tpu.memory_space<vmem>>, %arg5: memref<1x96xf32, #tpu.memory_space<vmem>>, %arg6: memref<48x96xf32, #tpu.memory_space<vmem>>) attributes {dimension_semantics = [#tpu.dimension_semantics<parallel>], iteration_bounds = array<i64: 1>, scalar_prefetch = 0 : i64, scratch_operands = 0 : i64, tpu.core_type = #tpu.core_type<tc>, window_params = [{transform_indices = @transform_0, window_bounds = array<i64: 48, 32>}, {pipeline_mode = #tpu.pipeline_mode<synchronous>, transform_indices = @transform_1, window_bounds = array<i64: 1, 32>}, {pipeline_mode = #tpu.pipeline_mode<synchronous>, transform_indices = @transform_2, window_bounds = array<i64: 1, 32>}, {pipeline_mode = #tpu.pipeline_mode<synchronous>, transform_indices = @transform_3, window_bounds = array<i64: 32, 96>}, {pipeline_mode = #tpu.pipeline_mode<synchronous>, transform_indices = @transform_4, window_bounds = array<i64: 1, 96>}, {transform_indices = @transform_5, window_bounds = array<i64: 48, 96>}]} {
    %c0 = arith.constant 0 : index
    %c0_0 = arith.constant 0 : index
    %0 = vector.load %arg1[%c0, %c0_0] : memref<48x32xf32, #tpu.memory_space<vmem>>, vector<48x32xf32>
    %c0_1 = arith.constant 0 : index
    %c0_2 = arith.constant 0 : index
    %1 = vector.load %arg2[%c0_1, %c0_2] : memref<1x32xf32, #tpu.memory_space<vmem>>, vector<1x32xf32>
    %c0_3 = arith.constant 0 : index
    %c0_4 = arith.constant 0 : index
    %2 = vector.load %arg3[%c0_3, %c0_4] : memref<1x32xf32, #tpu.memory_space<vmem>>, vector<1x32xf32>
    %cst = arith.constant dense<0.000000e+00> : vector<48xf32>
    %3 = vector.multi_reduction <add>, %0, %cst [1] : vector<48x32xf32> to vector<48xf32>
    %4 = vector.shape_cast %3 : vector<48xf32> to vector<48x1xf32>
    %cst_5 = arith.constant 3.200000e+01 : f32
    %5 = vector.broadcast %cst_5 : f32 to vector<48x1xf32>
    %6 = arith.divf %4, %5 : vector<48x1xf32>
    %7 = vector.broadcast %6 : vector<48x1xf32> to vector<48x32xf32>
    %8 = arith.subf %0, %7 : vector<48x32xf32>
    %9 = arith.mulf %8, %8 : vector<48x32xf32>
    %cst_6 = arith.constant dense<0.000000e+00> : vector<48xf32>
    %10 = vector.multi_reduction <add>, %9, %cst_6 [1] : vector<48x32xf32> to vector<48xf32>
    %11 = vector.shape_cast %10 : vector<48xf32> to vector<48x1xf32>
    %cst_7 = arith.constant 3.200000e+01 : f32
    %12 = vector.broadcast %cst_7 : f32 to vector<48x1xf32>
    %13 = arith.divf %11, %12 : vector<48x1xf32>
    %14 = vector.broadcast %6 : vector<48x1xf32> to vector<48x32xf32>
    %15 = arith.subf %0, %14 : vector<48x32xf32>
    %cst_8 = arith.constant 9.99999974E-6 : f32
    %16 = vector.broadcast %cst_8 : f32 to vector<48x1xf32>
    %17 = arith.addf %13, %16 : vector<48x1xf32>
    %18 = math.rsqrt %17 : vector<48x1xf32>
    %19 = vector.broadcast %18 : vector<48x1xf32> to vector<48x32xf32>
    %20 = arith.mulf %15, %19 : vector<48x32xf32>
    %21 = vector.broadcast %1 : vector<1x32xf32> to vector<48x32xf32>
    %22 = arith.mulf %20, %21 : vector<48x32xf32>
    %23 = vector.broadcast %2 : vector<1x32xf32> to vector<48x32xf32>
    %24 = arith.addf %22, %23 : vector<48x32xf32>
    %25 = arith.truncf %24 : vector<48x32xf32> to vector<48x32xbf16>
    %c0_9 = arith.constant 0 : index
    %c0_10 = arith.constant 0 : index
    %26 = vector.load %arg4[%c0_9, %c0_10] : memref<32x96xbf16, #tpu.memory_space<vmem>>, vector<32x96xbf16>
    %cst_11 = arith.constant dense<0.000000e+00> : vector<48x96xf32>
    %27 = tpu.matmul %25, %26, %cst_11 {dimension_numbers = #tpu.dot_dimension_numbers<[1], [0], [0], [1], [0, 0, 1, 1], [], []>} : vector<48x32xbf16>, vector<32x96xbf16>, vector<48x96xf32> -> vector<48x96xf32>
    %c0_12 = arith.constant 0 : index
    %c0_13 = arith.constant 0 : index
    %28 = vector.load %arg5[%c0_12, %c0_13] : memref<1x96xf32, #tpu.memory_space<vmem>>, vector<1x96xf32>
    %29 = vector.broadcast %28 : vector<1x96xf32> to vector<48x96xf32>
    %30 = arith.addf %27, %29 : vector<48x96xf32>
    %c0_14 = arith.constant 0 : index
    %c0_15 = arith.constant 0 : index
    %31 = vector.load %arg6[%c0_14, %c0_15] : memref<48x96xf32, #tpu.memory_space<vmem>>, vector<48x96xf32>
    tpu.vector_store %arg6[%c0_14, %c0_15], %30 {strides = array<i32>} : memref<48x96xf32, #tpu.memory_space<vmem>>, vector<48x96xf32>,
    return
  }
  func.func @transform_0(%arg0: i32) -> (i32, i32) {
    %c0_i32 = arith.constant 0 : i32
    %c0_i32_0 = arith.constant 0 : i32
    return %arg0, %c0_i32 : i32, i32
  }
  func.func @transform_1(%arg0: i32) -> (i32, i32) {
    %c0_i32 = arith.constant 0 : i32
    %c0_i32_0 = arith.constant 0 : i32
    %c0_i32_1 = arith.constant 0 : i32
    return %c0_i32, %c0_i32_0 : i32, i32
  }
  func.func @transform_2(%arg0: i32) -> (i32, i32) {
    %c0_i32 = arith.constant 0 : i32
    %c0_i32_0 = arith.constant 0 : i32
    %c0_i32_1 = arith.constant 0 : i32
    return %c0_i32, %c0_i32_0 : i32, i32
  }
  func.func @transform_3(%arg0: i32) -> (i32, i32) {
    %c0_i32 = arith.constant 0 : i32
    %c0_i32_0 = arith.constant 0 : i32
    %c0_i32_1 = arith.constant 0 : i32
    return %c0_i32, %c0_i32_0 : i32, i32
  }
  func.func @transform_4(%arg0: i32) -> (i32, i32) {
    %c0_i32 = arith.constant 0 : i32
    %c0_i32_0 = arith.constant 0 : i32
    %c0_i32_1 = arith.constant 0 : i32
    return %c0_i32, %c0_i32_0 : i32, i32
  }
  func.func @transform_5(%arg0: i32) -> (i32, i32) {
    %c0_i32 = arith.constant 0 : i32
    %c0_i32_0 = arith.constant 0 : i32
    return %arg0, %c0_i32 : i32, i32
  }
}

module attributes {stable_mosaic.version = 11 : i64} {
  func.func @_ln_posadd_kernel(%arg0: i32, %arg1: i32, %arg2: memref<1x24x32xf32, #tpu.memory_space<vmem>>, %arg3: memref<1x32xf32, #tpu.memory_space<vmem>>, %arg4: memref<1x32xf32, #tpu.memory_space<vmem>>, %arg5: memref<24x32xf32, #tpu.memory_space<vmem>>, %arg6: memref<1x24x32xf32, #tpu.memory_space<vmem>>) attributes {dimension_semantics = [#tpu.dimension_semantics<parallel>, #tpu.dimension_semantics<parallel>], iteration_bounds = array<i64: 2, 1>, scalar_prefetch = 0 : i64, scratch_operands = 0 : i64, tpu.core_type = #tpu.core_type<tc>, window_params = [{transform_indices = @transform_0, window_bounds = array<i64: 1, 24, 32>}, {pipeline_mode = #tpu.pipeline_mode<synchronous>, transform_indices = @transform_1, window_bounds = array<i64: 1, 32>}, {pipeline_mode = #tpu.pipeline_mode<synchronous>, transform_indices = @transform_2, window_bounds = array<i64: 1, 32>}, {transform_indices = @transform_3, window_bounds = array<i64: 24, 32>}, {transform_indices = @transform_4, window_bounds = array<i64: 1, 24, 32>}]} {
    %c0 = arith.constant 0 : index
    %c0_0 = arith.constant 0 : index
    %c0_1 = arith.constant 0 : index
    %0 = vector.load %arg2[%c0, %c0_0, %c0_1] : memref<1x24x32xf32, #tpu.memory_space<vmem>>, vector<1x24x32xf32>
    %c0_2 = arith.constant 0 : index
    %c0_3 = arith.constant 0 : index
    %1 = vector.load %arg3[%c0_2, %c0_3] : memref<1x32xf32, #tpu.memory_space<vmem>>, vector<1x32xf32>
    %c0_4 = arith.constant 0 : index
    %c0_5 = arith.constant 0 : index
    %2 = vector.load %arg4[%c0_4, %c0_5] : memref<1x32xf32, #tpu.memory_space<vmem>>, vector<1x32xf32>
    %cst = arith.constant dense<0.000000e+00> : vector<1x24xf32>
    %3 = vector.multi_reduction <add>, %0, %cst [2] : vector<1x24x32xf32> to vector<1x24xf32>
    %4 = vector.shape_cast %3 : vector<1x24xf32> to vector<1x24x1xf32>
    %cst_6 = arith.constant 3.200000e+01 : f32
    %5 = vector.broadcast %cst_6 : f32 to vector<1x24x1xf32>
    %6 = arith.divf %4, %5 : vector<1x24x1xf32>
    %7 = vector.broadcast %6 : vector<1x24x1xf32> to vector<1x24x32xf32>
    %8 = arith.subf %0, %7 : vector<1x24x32xf32>
    %9 = arith.mulf %8, %8 : vector<1x24x32xf32>
    %cst_7 = arith.constant dense<0.000000e+00> : vector<1x24xf32>
    %10 = vector.multi_reduction <add>, %9, %cst_7 [2] : vector<1x24x32xf32> to vector<1x24xf32>
    %11 = vector.shape_cast %10 : vector<1x24xf32> to vector<1x24x1xf32>
    %cst_8 = arith.constant 3.200000e+01 : f32
    %12 = vector.broadcast %cst_8 : f32 to vector<1x24x1xf32>
    %13 = arith.divf %11, %12 : vector<1x24x1xf32>
    %14 = vector.broadcast %6 : vector<1x24x1xf32> to vector<1x24x32xf32>
    %15 = arith.subf %0, %14 : vector<1x24x32xf32>
    %cst_9 = arith.constant 9.99999974E-6 : f32
    %16 = vector.broadcast %cst_9 : f32 to vector<1x24x1xf32>
    %17 = arith.addf %13, %16 : vector<1x24x1xf32>
    %18 = math.rsqrt %17 : vector<1x24x1xf32>
    %19 = vector.broadcast %18 : vector<1x24x1xf32> to vector<1x24x32xf32>
    %20 = arith.mulf %15, %19 : vector<1x24x32xf32>
    %21 = vector.shape_cast %1 : vector<1x32xf32> to vector<1x1x32xf32>
    %22 = vector.broadcast %21 : vector<1x1x32xf32> to vector<1x24x32xf32>
    %23 = arith.mulf %20, %22 : vector<1x24x32xf32>
    %24 = vector.shape_cast %2 : vector<1x32xf32> to vector<1x1x32xf32>
    %25 = vector.broadcast %24 : vector<1x1x32xf32> to vector<1x24x32xf32>
    %26 = arith.addf %23, %25 : vector<1x24x32xf32>
    %c0_10 = arith.constant 0 : index
    %c0_11 = arith.constant 0 : index
    %27 = vector.load %arg5[%c0_10, %c0_11] : memref<24x32xf32, #tpu.memory_space<vmem>>, vector<24x32xf32>
    %28 = vector.shape_cast %27 : vector<24x32xf32> to vector<1x24x32xf32>
    %29 = arith.addf %26, %28 : vector<1x24x32xf32>
    %c0_12 = arith.constant 0 : index
    %c0_13 = arith.constant 0 : index
    %c0_14 = arith.constant 0 : index
    %30 = vector.load %arg6[%c0_12, %c0_13, %c0_14] : memref<1x24x32xf32, #tpu.memory_space<vmem>>, vector<1x24x32xf32>
    tpu.vector_store %arg6[%c0_12, %c0_13, %c0_14], %29 {strides = array<i32>} : memref<1x24x32xf32, #tpu.memory_space<vmem>>, vector<1x24x32xf32>,
    return
  }
  func.func @transform_0(%arg0: i32, %arg1: i32) -> (i32, i32, i32) {
    %c0_i32 = arith.constant 0 : i32
    %c0_i32_0 = arith.constant 0 : i32
    return %arg0, %arg1, %c0_i32 : i32, i32, i32
  }
  func.func @transform_1(%arg0: i32, %arg1: i32) -> (i32, i32) {
    %c0_i32 = arith.constant 0 : i32
    %c0_i32_0 = arith.constant 0 : i32
    %c0_i32_1 = arith.constant 0 : i32
    return %c0_i32, %c0_i32_0 : i32, i32
  }
  func.func @transform_2(%arg0: i32, %arg1: i32) -> (i32, i32) {
    %c0_i32 = arith.constant 0 : i32
    %c0_i32_0 = arith.constant 0 : i32
    %c0_i32_1 = arith.constant 0 : i32
    return %c0_i32, %c0_i32_0 : i32, i32
  }
  func.func @transform_3(%arg0: i32, %arg1: i32) -> (i32, i32) {
    %c0_i32 = arith.constant 0 : i32
    %c0_i32_0 = arith.constant 0 : i32
    return %arg1, %c0_i32 : i32, i32
  }
  func.func @transform_4(%arg0: i32, %arg1: i32) -> (i32, i32, i32) {
    %c0_i32 = arith.constant 0 : i32
    %c0_i32_0 = arith.constant 0 : i32
    return %arg0, %arg1, %c0_i32 : i32, i32, i32
  }
}

module attributes {stable_mosaic.version = 11 : i64} {
  func.func @_attn_kernel(%arg0: i32, %arg1: memref<1x24x96xf32, #tpu.memory_space<vmem>>, %arg2: memref<1x1x24xf32, #tpu.memory_space<vmem>>, %arg3: memref<1x24x32xf32, #tpu.memory_space<vmem>>) attributes {dimension_semantics = [#tpu.dimension_semantics<parallel>], iteration_bounds = array<i64: 2>, scalar_prefetch = 0 : i64, scratch_operands = 0 : i64, tpu.core_type = #tpu.core_type<tc>, window_params = [{transform_indices = @transform_0, window_bounds = array<i64: 1, 24, 96>}, {transform_indices = @transform_1, window_bounds = array<i64: 1, 1, 24>}, {transform_indices = @transform_2, window_bounds = array<i64: 1, 24, 32>}]} {
    %c0 = arith.constant 0 : index
    %c0_0 = arith.constant 0 : index
    %c0_1 = arith.constant 0 : index
    %0 = vector.load %arg1[%c0, %c0_0, %c0_1] : memref<1x24x96xf32, #tpu.memory_space<vmem>>, vector<1x24x96xf32>
    %1 = vector.shape_cast %0 : vector<1x24x96xf32> to vector<24x96xf32>
    %c0_2 = arith.constant 0 : index
    %c0_3 = arith.constant 0 : index
    %c0_4 = arith.constant 0 : index
    %2 = vector.load %arg2[%c0_2, %c0_3, %c0_4] : memref<1x1x24xf32, #tpu.memory_space<vmem>>, vector<1x1x24xf32>
    %3 = vector.shape_cast %2 : vector<1x1x24xf32> to vector<1x24xf32>
    %cst = arith.constant 0.000000e+00 : f32
    %4 = vector.broadcast %cst : f32 to vector<1x24xf32>
    %5 = arith.cmpf ogt, %3, %4 : vector<1x24xf32>
    %6 = tpu.iota {dimensions = array<i32: 0>} : vector<24x24xi32>
    %7 = tpu.iota {dimensions = array<i32: 1>} : vector<24x24xi32>
    %8 = arith.cmpi sle, %7, %6 : vector<24x24xi32>
    %9 = vector.broadcast %5 : vector<1x24xi1> to vector<24x24xi1>
    %10 = arith.andi %8, %9 : vector<24x24xi1>
    %cst_5 = arith.constant 0.000000e+00 : f32
    %cst_6 = arith.constant -1.000000e+30 : f32
    %11 = vector.broadcast %cst_5 : f32 to vector<24x24xf32>
    %12 = vector.broadcast %cst_6 : f32 to vector<24x24xf32>
    %13 = arith.select %10, %11, %12 : vector<24x24xi1>, vector<24x24xf32>
    %14 = vector.extract_strided_slice %1 {offsets = [0, 0], sizes = [24, 8], strides = [1, 1]} : vector<24x96xf32> to vector<24x8xf32>
    %15 = arith.truncf %14 : vector<24x8xf32> to vector<24x8xbf16>
    %16 = vector.extract_strided_slice %1 {offsets = [0, 32], sizes = [24, 8], strides = [1, 1]} : vector<24x96xf32> to vector<24x8xf32>
    %17 = arith.truncf %16 : vector<24x8xf32> to vector<24x8xbf16>
    %18 = vector.extract_strided_slice %1 {offsets = [0, 64], sizes = [24, 8], strides = [1, 1]} : vector<24x96xf32> to vector<24x8xf32>
    %19 = arith.truncf %18 : vector<24x8xf32> to vector<24x8xbf16>
    %cst_7 = arith.constant dense<0.000000e+00> : vector<24x24xf32>
    %20 = tpu.matmul %15, %17, %cst_7 {dimension_numbers = #tpu.dot_dimension_numbers<[1], [1], [0], [0], [0, 0, 1, 0], [], []>} : vector<24x8xbf16>, vector<24x8xbf16>, vector<24x24xf32> -> vector<24x24xf32>
    %cst_8 = arith.constant 0.353553385 : f32
    %21 = vector.broadcast %cst_8 : f32 to vector<24x24xf32>
    %22 = arith.mulf %20, %21 : vector<24x24xf32>
    %23 = arith.addf %22, %13 : vector<24x24xf32>
    %cst_9 = arith.constant dense<0xFF800000> : vector<24xf32>
    %24 = vector.multi_reduction <maximumf>, %23, %cst_9 [1] : vector<24x24xf32> to vector<24xf32>
    %25 = vector.shape_cast %24 : vector<24xf32> to vector<24x1xf32>
    %26 = vector.broadcast %25 : vector<24x1xf32> to vector<24x24xf32>
    %27 = arith.subf %23, %26 : vector<24x24xf32>
    %28 = math.exp %27 : vector<24x24xf32>
    %cst_10 = arith.constant dense<0.000000e+00> : vector<24xf32>
    %29 = vector.multi_reduction <add>, %28, %cst_10 [1] : vector<24x24xf32> to vector<24xf32>
    %30 = vector.shape_cast %29 : vector<24xf32> to vector<24x1xf32>
    %31 = vector.broadcast %30 : vector<24x1xf32> to vector<24x24xf32>
    %32 = arith.divf %28, %31 : vector<24x24xf32>
    %33 = arith.truncf %32 : vector<24x24xf32> to vector<24x24xbf16>
    %cst_11 = arith.constant dense<0.000000e+00> : vector<24x8xf32>
    %34 = tpu.matmul %33, %19, %cst_11 {dimension_numbers = #tpu.dot_dimension_numbers<[1], [0], [0], [1], [0, 0, 1, 1], [], []>} : vector<24x24xbf16>, vector<24x8xbf16>, vector<24x8xf32> -> vector<24x8xf32>
    %35 = vector.extract_strided_slice %1 {offsets = [0, 8], sizes = [24, 8], strides = [1, 1]} : vector<24x96xf32> to vector<24x8xf32>
    %36 = arith.truncf %35 : vector<24x8xf32> to vector<24x8xbf16>
    %37 = vector.extract_strided_slice %1 {offsets = [0, 40], sizes = [24, 8], strides = [1, 1]} : vector<24x96xf32> to vector<24x8xf32>
    %38 = arith.truncf %37 : vector<24x8xf32> to vector<24x8xbf16>
    %39 = vector.extract_strided_slice %1 {offsets = [0, 72], sizes = [24, 8], strides = [1, 1]} : vector<24x96xf32> to vector<24x8xf32>
    %40 = arith.truncf %39 : vector<24x8xf32> to vector<24x8xbf16>
    %cst_12 = arith.constant dense<0.000000e+00> : vector<24x24xf32>
    %41 = tpu.matmul %36, %38, %cst_12 {dimension_numbers = #tpu.dot_dimension_numbers<[1], [1], [0], [0], [0, 0, 1, 0], [], []>} : vector<24x8xbf16>, vector<24x8xbf16>, vector<24x24xf32> -> vector<24x24xf32>
    %cst_13 = arith.constant 0.353553385 : f32
    %42 = vector.broadcast %cst_13 : f32 to vector<24x24xf32>
    %43 = arith.mulf %41, %42 : vector<24x24xf32>
    %44 = arith.addf %43, %13 : vector<24x24xf32>
    %cst_14 = arith.constant dense<0xFF800000> : vector<24xf32>
    %45 = vector.multi_reduction <maximumf>, %44, %cst_14 [1] : vector<24x24xf32> to vector<24xf32>
    %46 = vector.shape_cast %45 : vector<24xf32> to vector<24x1xf32>
    %47 = vector.broadcast %46 : vector<24x1xf32> to vector<24x24xf32>
    %48 = arith.subf %44, %47 : vector<24x24xf32>
    %49 = math.exp %48 : vector<24x24xf32>
    %cst_15 = arith.constant dense<0.000000e+00> : vector<24xf32>
    %50 = vector.multi_reduction <add>, %49, %cst_15 [1] : vector<24x24xf32> to vector<24xf32>
    %51 = vector.shape_cast %50 : vector<24xf32> to vector<24x1xf32>
    %52 = vector.broadcast %51 : vector<24x1xf32> to vector<24x24xf32>
    %53 = arith.divf %49, %52 : vector<24x24xf32>
    %54 = arith.truncf %53 : vector<24x24xf32> to vector<24x24xbf16>
    %cst_16 = arith.constant dense<0.000000e+00> : vector<24x8xf32>
    %55 = tpu.matmul %54, %40, %cst_16 {dimension_numbers = #tpu.dot_dimension_numbers<[1], [0], [0], [1], [0, 0, 1, 1], [], []>} : vector<24x24xbf16>, vector<24x8xbf16>, vector<24x8xf32> -> vector<24x8xf32>
    %56 = vector.extract_strided_slice %1 {offsets = [0, 16], sizes = [24, 8], strides = [1, 1]} : vector<24x96xf32> to vector<24x8xf32>
    %57 = arith.truncf %56 : vector<24x8xf32> to vector<24x8xbf16>
    %58 = vector.extract_strided_slice %1 {offsets = [0, 48], sizes = [24, 8], strides = [1, 1]} : vector<24x96xf32> to vector<24x8xf32>
    %59 = arith.truncf %58 : vector<24x8xf32> to vector<24x8xbf16>
    %60 = vector.extract_strided_slice %1 {offsets = [0, 80], sizes = [24, 8], strides = [1, 1]} : vector<24x96xf32> to vector<24x8xf32>
    %61 = arith.truncf %60 : vector<24x8xf32> to vector<24x8xbf16>
    %cst_17 = arith.constant dense<0.000000e+00> : vector<24x24xf32>
    %62 = tpu.matmul %57, %59, %cst_17 {dimension_numbers = #tpu.dot_dimension_numbers<[1], [1], [0], [0], [0, 0, 1, 0], [], []>} : vector<24x8xbf16>, vector<24x8xbf16>, vector<24x24xf32> -> vector<24x24xf32>
    %cst_18 = arith.constant 0.353553385 : f32
    %63 = vector.broadcast %cst_18 : f32 to vector<24x24xf32>
    %64 = arith.mulf %62, %63 : vector<24x24xf32>
    %65 = arith.addf %64, %13 : vector<24x24xf32>
    %cst_19 = arith.constant dense<0xFF800000> : vector<24xf32>
    %66 = vector.multi_reduction <maximumf>, %65, %cst_19 [1] : vector<24x24xf32> to vector<24xf32>
    %67 = vector.shape_cast %66 : vector<24xf32> to vector<24x1xf32>
    %68 = vector.broadcast %67 : vector<24x1xf32> to vector<24x24xf32>
    %69 = arith.subf %65, %68 : vector<24x24xf32>
    %70 = math.exp %69 : vector<24x24xf32>
    %cst_20 = arith.constant dense<0.000000e+00> : vector<24xf32>
    %71 = vector.multi_reduction <add>, %70, %cst_20 [1] : vector<24x24xf32> to vector<24xf32>
    %72 = vector.shape_cast %71 : vector<24xf32> to vector<24x1xf32>
    %73 = vector.broadcast %72 : vector<24x1xf32> to vector<24x24xf32>
    %74 = arith.divf %70, %73 : vector<24x24xf32>
    %75 = arith.truncf %74 : vector<24x24xf32> to vector<24x24xbf16>
    %cst_21 = arith.constant dense<0.000000e+00> : vector<24x8xf32>
    %76 = tpu.matmul %75, %61, %cst_21 {dimension_numbers = #tpu.dot_dimension_numbers<[1], [0], [0], [1], [0, 0, 1, 1], [], []>} : vector<24x24xbf16>, vector<24x8xbf16>, vector<24x8xf32> -> vector<24x8xf32>
    %77 = vector.extract_strided_slice %1 {offsets = [0, 24], sizes = [24, 8], strides = [1, 1]} : vector<24x96xf32> to vector<24x8xf32>
    %78 = arith.truncf %77 : vector<24x8xf32> to vector<24x8xbf16>
    %79 = vector.extract_strided_slice %1 {offsets = [0, 56], sizes = [24, 8], strides = [1, 1]} : vector<24x96xf32> to vector<24x8xf32>
    %80 = arith.truncf %79 : vector<24x8xf32> to vector<24x8xbf16>
    %81 = vector.extract_strided_slice %1 {offsets = [0, 88], sizes = [24, 8], strides = [1, 1]} : vector<24x96xf32> to vector<24x8xf32>
    %82 = arith.truncf %81 : vector<24x8xf32> to vector<24x8xbf16>
    %cst_22 = arith.constant dense<0.000000e+00> : vector<24x24xf32>
    %83 = tpu.matmul %78, %80, %cst_22 {dimension_numbers = #tpu.dot_dimension_numbers<[1], [1], [0], [0], [0, 0, 1, 0], [], []>} : vector<24x8xbf16>, vector<24x8xbf16>, vector<24x24xf32> -> vector<24x24xf32>
    %cst_23 = arith.constant 0.353553385 : f32
    %84 = vector.broadcast %cst_23 : f32 to vector<24x24xf32>
    %85 = arith.mulf %83, %84 : vector<24x24xf32>
    %86 = arith.addf %85, %13 : vector<24x24xf32>
    %cst_24 = arith.constant dense<0xFF800000> : vector<24xf32>
    %87 = vector.multi_reduction <maximumf>, %86, %cst_24 [1] : vector<24x24xf32> to vector<24xf32>
    %88 = vector.shape_cast %87 : vector<24xf32> to vector<24x1xf32>
    %89 = vector.broadcast %88 : vector<24x1xf32> to vector<24x24xf32>
    %90 = arith.subf %86, %89 : vector<24x24xf32>
    %91 = math.exp %90 : vector<24x24xf32>
    %cst_25 = arith.constant dense<0.000000e+00> : vector<24xf32>
    %92 = vector.multi_reduction <add>, %91, %cst_25 [1] : vector<24x24xf32> to vector<24xf32>
    %93 = vector.shape_cast %92 : vector<24xf32> to vector<24x1xf32>
    %94 = vector.broadcast %93 : vector<24x1xf32> to vector<24x24xf32>
    %95 = arith.divf %91, %94 : vector<24x24xf32>
    %96 = arith.truncf %95 : vector<24x24xf32> to vector<24x24xbf16>
    %cst_26 = arith.constant dense<0.000000e+00> : vector<24x8xf32>
    %97 = tpu.matmul %96, %82, %cst_26 {dimension_numbers = #tpu.dot_dimension_numbers<[1], [0], [0], [1], [0, 0, 1, 1], [], []>} : vector<24x24xbf16>, vector<24x8xbf16>, vector<24x8xf32> -> vector<24x8xf32>
    %98 = tpu.concatenate %34, %55, %76, %97 in 1 : vector<24x8xf32>, vector<24x8xf32>, vector<24x8xf32>, vector<24x8xf32> -> vector<24x32xf32>
    %c0_27 = arith.constant 0 : index
    %c0_28 = arith.constant 0 : index
    %c0_29 = arith.constant 0 : index
    %99 = vector.load %arg3[%c0_27, %c0_28, %c0_29] : memref<1x24x32xf32, #tpu.memory_space<vmem>>, vector<1x24x32xf32>
    %100 = vector.shape_cast %99 : vector<1x24x32xf32> to vector<24x32xf32>
    %101 = vector.shape_cast %98 : vector<24x32xf32> to vector<1x24x32xf32>
    tpu.vector_store %arg3[%c0_27, %c0_28, %c0_29], %101 {strides = array<i32>} : memref<1x24x32xf32, #tpu.memory_space<vmem>>, vector<1x24x32xf32>,
    return
  }
  func.func @transform_0(%arg0: i32) -> (i32, i32, i32) {
    %c0_i32 = arith.constant 0 : i32
    %c0_i32_0 = arith.constant 0 : i32
    %c0_i32_1 = arith.constant 0 : i32
    return %arg0, %c0_i32, %c0_i32_0 : i32, i32, i32
  }
  func.func @transform_1(%arg0: i32) -> (i32, i32, i32) {
    %c0_i32 = arith.constant 0 : i32
    %c0_i32_0 = arith.constant 0 : i32
    %c0_i32_1 = arith.constant 0 : i32
    return %arg0, %c0_i32, %c0_i32_0 : i32, i32, i32
  }
  func.func @transform_2(%arg0: i32) -> (i32, i32, i32) {
    %c0_i32 = arith.constant 0 : i32
    %c0_i32_0 = arith.constant 0 : i32
    %c0_i32_1 = arith.constant 0 : i32
    return %arg0, %c0_i32, %c0_i32_0 : i32, i32, i32
  }
}

module attributes {stable_mosaic.version = 11 : i64} {
  func.func @_linear_res_kernel(%arg0: i32, %arg1: memref<48x32xf32, #tpu.memory_space<vmem>>, %arg2: memref<32x32xbf16, #tpu.memory_space<vmem>>, %arg3: memref<1x32xf32, #tpu.memory_space<vmem>>, %arg4: memref<48x32xf32, #tpu.memory_space<vmem>>, %arg5: memref<48x32xf32, #tpu.memory_space<vmem>>) attributes {dimension_semantics = [#tpu.dimension_semantics<parallel>], iteration_bounds = array<i64: 1>, scalar_prefetch = 0 : i64, scratch_operands = 0 : i64, tpu.core_type = #tpu.core_type<tc>, window_params = [{transform_indices = @transform_0, window_bounds = array<i64: 48, 32>}, {pipeline_mode = #tpu.pipeline_mode<synchronous>, transform_indices = @transform_1, window_bounds = array<i64: 32, 32>}, {pipeline_mode = #tpu.pipeline_mode<synchronous>, transform_indices = @transform_2, window_bounds = array<i64: 1, 32>}, {transform_indices = @transform_3, window_bounds = array<i64: 48, 32>}, {transform_indices = @transform_4, window_bounds = array<i64: 48, 32>}]} {
    %c0 = arith.constant 0 : index
    %c0_0 = arith.constant 0 : index
    %0 = vector.load %arg1[%c0, %c0_0] : memref<48x32xf32, #tpu.memory_space<vmem>>, vector<48x32xf32>
    %1 = arith.truncf %0 : vector<48x32xf32> to vector<48x32xbf16>
    %c0_1 = arith.constant 0 : index
    %c0_2 = arith.constant 0 : index
    %2 = vector.load %arg2[%c0_1, %c0_2] : memref<32x32xbf16, #tpu.memory_space<vmem>>, vector<32x32xbf16>
    %cst = arith.constant dense<0.000000e+00> : vector<48x32xf32>
    %3 = tpu.matmul %1, %2, %cst {dimension_numbers = #tpu.dot_dimension_numbers<[1], [0], [0], [1], [0, 0, 1, 1], [], []>} : vector<48x32xbf16>, vector<32x32xbf16>, vector<48x32xf32> -> vector<48x32xf32>
    %c0_3 = arith.constant 0 : index
    %c0_4 = arith.constant 0 : index
    %4 = vector.load %arg3[%c0_3, %c0_4] : memref<1x32xf32, #tpu.memory_space<vmem>>, vector<1x32xf32>
    %5 = vector.broadcast %4 : vector<1x32xf32> to vector<48x32xf32>
    %6 = arith.addf %3, %5 : vector<48x32xf32>
    %c0_5 = arith.constant 0 : index
    %c0_6 = arith.constant 0 : index
    %7 = vector.load %arg4[%c0_5, %c0_6] : memref<48x32xf32, #tpu.memory_space<vmem>>, vector<48x32xf32>
    %8 = arith.addf %6, %7 : vector<48x32xf32>
    %c0_7 = arith.constant 0 : index
    %c0_8 = arith.constant 0 : index
    %9 = vector.load %arg5[%c0_7, %c0_8] : memref<48x32xf32, #tpu.memory_space<vmem>>, vector<48x32xf32>
    tpu.vector_store %arg5[%c0_7, %c0_8], %8 {strides = array<i32>} : memref<48x32xf32, #tpu.memory_space<vmem>>, vector<48x32xf32>,
    return
  }
  func.func @transform_0(%arg0: i32) -> (i32, i32) {
    %c0_i32 = arith.constant 0 : i32
    %c0_i32_0 = arith.constant 0 : i32
    return %arg0, %c0_i32 : i32, i32
  }
  func.func @transform_1(%arg0: i32) -> (i32, i32) {
    %c0_i32 = arith.constant 0 : i32
    %c0_i32_0 = arith.constant 0 : i32
    %c0_i32_1 = arith.constant 0 : i32
    return %c0_i32, %c0_i32_0 : i32, i32
  }
  func.func @transform_2(%arg0: i32) -> (i32, i32) {
    %c0_i32 = arith.constant 0 : i32
    %c0_i32_0 = arith.constant 0 : i32
    %c0_i32_1 = arith.constant 0 : i32
    return %c0_i32, %c0_i32_0 : i32, i32
  }
  func.func @transform_3(%arg0: i32) -> (i32, i32) {
    %c0_i32 = arith.constant 0 : i32
    %c0_i32_0 = arith.constant 0 : i32
    return %arg0, %c0_i32 : i32, i32
  }
  func.func @transform_4(%arg0: i32) -> (i32, i32) {
    %c0_i32 = arith.constant 0 : i32
    %c0_i32_0 = arith.constant 0 : i32
    return %arg0, %c0_i32 : i32, i32
  }
}

module attributes {stable_mosaic.version = 11 : i64} {
  func.func @_ln_mlp_kernel(%arg0: i32, %arg1: i32, %arg2: memref<48x32xf32, #tpu.memory_space<vmem>>, %arg3: memref<1x32xf32, #tpu.memory_space<vmem>>, %arg4: memref<1x32xf32, #tpu.memory_space<vmem>>, %arg5: memref<32x128xbf16, #tpu.memory_space<vmem>>, %arg6: memref<1x128xf32, #tpu.memory_space<vmem>>, %arg7: memref<128x32xbf16, #tpu.memory_space<vmem>>, %arg8: memref<1x32xf32, #tpu.memory_space<vmem>>, %arg9: memref<48x32xf32, #tpu.memory_space<vmem>>, %arg10: memref<48x32xf32, #tpu.memory_space<vmem>>, %arg11: memref<48x32xf32, #tpu.memory_space<vmem>>, %arg12: memref<48x32xf32, #tpu.memory_space<vmem>>) attributes {dimension_semantics = [#tpu.dimension_semantics<parallel>, #tpu.dimension_semantics<arbitrary>], iteration_bounds = array<i64: 1, 1>, scalar_prefetch = 0 : i64, scratch_operands = 2 : i64, tpu.core_type = #tpu.core_type<tc>, window_params = [{transform_indices = @transform_0, window_bounds = array<i64: 48, 32>}, {pipeline_mode = #tpu.pipeline_mode<synchronous>, transform_indices = @transform_1, window_bounds = array<i64: 1, 32>}, {pipeline_mode = #tpu.pipeline_mode<synchronous>, transform_indices = @transform_2, window_bounds = array<i64: 1, 32>}, {transform_indices = @transform_3, window_bounds = array<i64: 32, 128>}, {transform_indices = @transform_4, window_bounds = array<i64: 1, 128>}, {transform_indices = @transform_5, window_bounds = array<i64: 128, 32>}, {pipeline_mode = #tpu.pipeline_mode<synchronous>, transform_indices = @transform_6, window_bounds = array<i64: 1, 32>}, {transform_indices = @transform_7, window_bounds = array<i64: 48, 32>}, {transform_indices = @transform_8, window_bounds = array<i64: 48, 32>}]} {
    %c0_i32 = arith.constant 0 : i32
    %0 = arith.cmpi eq, %arg1, %c0_i32 : i32
    %1 = arith.extui %0 : i1 to i32
    %c0_i32_0 = arith.constant 0 : i32
    %2 = arith.cmpi ne, %1, %c0_i32_0 : i32
    scf.if %2 {
      %c0_19 = arith.constant 0 : index
      %c0_20 = arith.constant 0 : index
      %32 = vector.load %arg2[%c0_19, %c0_20] : memref<48x32xf32, #tpu.memory_space<vmem>>, vector<48x32xf32>
      %c0_21 = arith.constant 0 : index
      %c0_22 = arith.constant 0 : index
      %33 = vector.load %arg3[%c0_21, %c0_22] : memref<1x32xf32, #tpu.memory_space<vmem>>, vector<1x32xf32>
      %c0_23 = arith.constant 0 : index
      %c0_24 = arith.constant 0 : index
      %34 = vector.load %arg4[%c0_23, %c0_24] : memref<1x32xf32, #tpu.memory_space<vmem>>, vector<1x32xf32>
      %cst_25 = arith.constant dense<0.000000e+00> : vector<48xf32>
      %35 = vector.multi_reduction <add>, %32, %cst_25 [1] : vector<48x32xf32> to vector<48xf32>
      %36 = vector.shape_cast %35 : vector<48xf32> to vector<48x1xf32>
      %cst_26 = arith.constant 3.200000e+01 : f32
      %37 = vector.broadcast %cst_26 : f32 to vector<48x1xf32>
      %38 = arith.divf %36, %37 : vector<48x1xf32>
      %39 = vector.broadcast %38 : vector<48x1xf32> to vector<48x32xf32>
      %40 = arith.subf %32, %39 : vector<48x32xf32>
      %41 = arith.mulf %40, %40 : vector<48x32xf32>
      %cst_27 = arith.constant dense<0.000000e+00> : vector<48xf32>
      %42 = vector.multi_reduction <add>, %41, %cst_27 [1] : vector<48x32xf32> to vector<48xf32>
      %43 = vector.shape_cast %42 : vector<48xf32> to vector<48x1xf32>
      %cst_28 = arith.constant 3.200000e+01 : f32
      %44 = vector.broadcast %cst_28 : f32 to vector<48x1xf32>
      %45 = arith.divf %43, %44 : vector<48x1xf32>
      %46 = vector.broadcast %38 : vector<48x1xf32> to vector<48x32xf32>
      %47 = arith.subf %32, %46 : vector<48x32xf32>
      %cst_29 = arith.constant 9.99999974E-6 : f32
      %48 = vector.broadcast %cst_29 : f32 to vector<48x1xf32>
      %49 = arith.addf %45, %48 : vector<48x1xf32>
      %50 = math.rsqrt %49 : vector<48x1xf32>
      %51 = vector.broadcast %50 : vector<48x1xf32> to vector<48x32xf32>
      %52 = arith.mulf %47, %51 : vector<48x32xf32>
      %53 = vector.broadcast %33 : vector<1x32xf32> to vector<48x32xf32>
      %54 = arith.mulf %52, %53 : vector<48x32xf32>
      %55 = vector.broadcast %34 : vector<1x32xf32> to vector<48x32xf32>
      %56 = arith.addf %54, %55 : vector<48x32xf32>
      %c0_30 = arith.constant 0 : index
      %c0_31 = arith.constant 0 : index
      %57 = vector.load %arg11[%c0_30, %c0_31] : memref<48x32xf32, #tpu.memory_space<vmem>>, vector<48x32xf32>
      tpu.vector_store %arg11[%c0_30, %c0_31], %56 {strides = array<i32>} : memref<48x32xf32, #tpu.memory_space<vmem>>, vector<48x32xf32>,
      %cst_32 = arith.constant 0.000000e+00 : f32
      %58 = vector.broadcast %cst_32 : f32 to vector<48x32xf32>
      %c0_33 = arith.constant 0 : index
      %c0_34 = arith.constant 0 : index
      %59 = vector.load %arg12[%c0_33, %c0_34] : memref<48x32xf32, #tpu.memory_space<vmem>>, vector<48x32xf32>
      tpu.vector_store %arg12[%c0_33, %c0_34], %58 {strides = array<i32>} : memref<48x32xf32, #tpu.memory_space<vmem>>, vector<48x32xf32>,
    } else {
    }
    %c0 = arith.constant 0 : index
    %c0_1 = arith.constant 0 : index
    %3 = vector.load %arg11[%c0, %c0_1] : memref<48x32xf32, #tpu.memory_space<vmem>>, vector<48x32xf32>
    %4 = arith.truncf %3 : vector<48x32xf32> to vector<48x32xbf16>
    %c0_2 = arith.constant 0 : index
    %c0_3 = arith.constant 0 : index
    %5 = vector.load %arg5[%c0_2, %c0_3] : memref<32x128xbf16, #tpu.memory_space<vmem>>, vector<32x128xbf16>
    %cst = arith.constant dense<0.000000e+00> : vector<48x128xf32>
    %6 = tpu.matmul %4, %5, %cst {dimension_numbers = #tpu.dot_dimension_numbers<[1], [0], [0], [1], [0, 0, 1, 1], [], []>} : vector<48x32xbf16>, vector<32x128xbf16>, vector<48x128xf32> -> vector<48x128xf32>
    %c0_4 = arith.constant 0 : index
    %c0_5 = arith.constant 0 : index
    %7 = vector.load %arg6[%c0_4, %c0_5] : memref<1x128xf32, #tpu.memory_space<vmem>>, vector<1x128xf32>
    %8 = vector.broadcast %7 : vector<1x128xf32> to vector<48x128xf32>
    %9 = arith.addf %6, %8 : vector<48x128xf32>
    %cst_6 = arith.constant 5.000000e-01 : f32
    %10 = vector.broadcast %cst_6 : f32 to vector<48x128xf32>
    %11 = arith.mulf %10, %9 : vector<48x128xf32>
    %cst_7 = arith.constant 4.471500e-02 : f32
    %12 = vector.broadcast %cst_7 : f32 to vector<48x128xf32>
    %13 = arith.mulf %12, %9 : vector<48x128xf32>
    %14 = arith.mulf %13, %9 : vector<48x128xf32>
    %15 = arith.mulf %14, %9 : vector<48x128xf32>
    %16 = arith.addf %9, %15 : vector<48x128xf32>
    %cst_8 = arith.constant 0.797884583 : f32
    %17 = vector.broadcast %cst_8 : f32 to vector<48x128xf32>
    %18 = arith.mulf %17, %16 : vector<48x128xf32>
    %19 = math.tanh %18 : vector<48x128xf32>
    %cst_9 = arith.constant 1.000000e+00 : f32
    %20 = vector.broadcast %cst_9 : f32 to vector<48x128xf32>
    %21 = arith.addf %20, %19 : vector<48x128xf32>
    %22 = arith.mulf %11, %21 : vector<48x128xf32>
    %c0_10 = arith.constant 0 : index
    %c0_11 = arith.constant 0 : index
    %23 = vector.load %arg12[%c0_10, %c0_11] : memref<48x32xf32, #tpu.memory_space<vmem>>, vector<48x32xf32>
    %24 = arith.truncf %22 : vector<48x128xf32> to vector<48x128xbf16>
    %c0_12 = arith.constant 0 : index
    %c0_13 = arith.constant 0 : index
    %25 = vector.load %arg7[%c0_12, %c0_13] : memref<128x32xbf16, #tpu.memory_space<vmem>>, vector<128x32xbf16>
    %cst_14 = arith.constant dense<0.000000e+00> : vector<48x32xf32>
    %26 = tpu.matmul %24, %25, %cst_14 {dimension_numbers = #tpu.dot_dimension_numbers<[1], [0], [0], [1], [0, 0, 1, 1], [], []>} : vector<48x128xbf16>, vector<128x32xbf16>, vector<48x32xf32> -> vector<48x32xf32>
    %27 = arith.addf %23, %26 : vector<48x32xf32>
    %c0_15 = arith.constant 0 : index
    %c0_16 = arith.constant 0 : index
    %28 = vector.load %arg12[%c0_15, %c0_16] : memref<48x32xf32, #tpu.memory_space<vmem>>, vector<48x32xf32>
    tpu.vector_store %arg12[%c0_15, %c0_16], %27 {strides = array<i32>} : memref<48x32xf32, #tpu.memory_space<vmem>>, vector<48x32xf32>,
    %c0_i32_17 = arith.constant 0 : i32
    %29 = arith.cmpi eq, %arg1, %c0_i32_17 : i32
    %30 = arith.extui %29 : i1 to i32
    %c0_i32_18 = arith.constant 0 : i32
    %31 = arith.cmpi ne, %30, %c0_i32_18 : i32
    scf.if %31 {
      %c0_19 = arith.constant 0 : index
      %c0_20 = arith.constant 0 : index
      %32 = vector.load %arg12[%c0_19, %c0_20] : memref<48x32xf32, #tpu.memory_space<vmem>>, vector<48x32xf32>
      %c0_21 = arith.constant 0 : index
      %c0_22 = arith.constant 0 : index
      %33 = vector.load %arg8[%c0_21, %c0_22] : memref<1x32xf32, #tpu.memory_space<vmem>>, vector<1x32xf32>
      %34 = vector.broadcast %33 : vector<1x32xf32> to vector<48x32xf32>
      %35 = arith.addf %32, %34 : vector<48x32xf32>
      %c0_23 = arith.constant 0 : index
      %c0_24 = arith.constant 0 : index
      %36 = vector.load %arg9[%c0_23, %c0_24] : memref<48x32xf32, #tpu.memory_space<vmem>>, vector<48x32xf32>
      %37 = arith.addf %35, %36 : vector<48x32xf32>
      %c0_25 = arith.constant 0 : index
      %c0_26 = arith.constant 0 : index
      %38 = vector.load %arg10[%c0_25, %c0_26] : memref<48x32xf32, #tpu.memory_space<vmem>>, vector<48x32xf32>
      tpu.vector_store %arg10[%c0_25, %c0_26], %37 {strides = array<i32>} : memref<48x32xf32, #tpu.memory_space<vmem>>, vector<48x32xf32>,
    } else {
    }
    return
  }
  func.func @transform_0(%arg0: i32, %arg1: i32) -> (i32, i32) {
    %c0_i32 = arith.constant 0 : i32
    %c0_i32_0 = arith.constant 0 : i32
    return %arg0, %c0_i32 : i32, i32
  }
  func.func @transform_1(%arg0: i32, %arg1: i32) -> (i32, i32) {
    %c0_i32 = arith.constant 0 : i32
    %c0_i32_0 = arith.constant 0 : i32
    %c0_i32_1 = arith.constant 0 : i32
    return %c0_i32, %c0_i32_0 : i32, i32
  }
  func.func @transform_2(%arg0: i32, %arg1: i32) -> (i32, i32) {
    %c0_i32 = arith.constant 0 : i32
    %c0_i32_0 = arith.constant 0 : i32
    %c0_i32_1 = arith.constant 0 : i32
    return %c0_i32, %c0_i32_0 : i32, i32
  }
  func.func @transform_3(%arg0: i32, %arg1: i32) -> (i32, i32) {
    %c0_i32 = arith.constant 0 : i32
    %c0_i32_0 = arith.constant 0 : i32
    return %c0_i32, %arg1 : i32, i32
  }
  func.func @transform_4(%arg0: i32, %arg1: i32) -> (i32, i32) {
    %c0_i32 = arith.constant 0 : i32
    %c0_i32_0 = arith.constant 0 : i32
    return %c0_i32, %arg1 : i32, i32
  }
  func.func @transform_5(%arg0: i32, %arg1: i32) -> (i32, i32) {
    %c0_i32 = arith.constant 0 : i32
    %c0_i32_0 = arith.constant 0 : i32
    return %arg1, %c0_i32 : i32, i32
  }
  func.func @transform_6(%arg0: i32, %arg1: i32) -> (i32, i32) {
    %c0_i32 = arith.constant 0 : i32
    %c0_i32_0 = arith.constant 0 : i32
    %c0_i32_1 = arith.constant 0 : i32
    return %c0_i32, %c0_i32_0 : i32, i32
  }
  func.func @transform_7(%arg0: i32, %arg1: i32) -> (i32, i32) {
    %c0_i32 = arith.constant 0 : i32
    %c0_i32_0 = arith.constant 0 : i32
    return %arg0, %c0_i32 : i32, i32
  }
  func.func @transform_8(%arg0: i32, %arg1: i32) -> (i32, i32) {
    %c0_i32 = arith.constant 0 : i32
    %c0_i32_0 = arith.constant 0 : i32
    return %arg0, %c0_i32 : i32, i32
  }
}

module attributes {stable_mosaic.version = 11 : i64} {
  func.func @_ln_linear_kernel(%arg0: i32, %arg1: memref<16x32xf32, #tpu.memory_space<vmem>>, %arg2: memref<1x32xf32, #tpu.memory_space<vmem>>, %arg3: memref<1x32xf32, #tpu.memory_space<vmem>>, %arg4: memref<32x7xbf16, #tpu.memory_space<vmem>>, %arg5: memref<1x7xf32, #tpu.memory_space<vmem>>, %arg6: memref<16x7xf32, #tpu.memory_space<vmem>>) attributes {dimension_semantics = [#tpu.dimension_semantics<parallel>], iteration_bounds = array<i64: 1>, scalar_prefetch = 0 : i64, scratch_operands = 0 : i64, tpu.core_type = #tpu.core_type<tc>, window_params = [{transform_indices = @transform_0, window_bounds = array<i64: 16, 32>}, {pipeline_mode = #tpu.pipeline_mode<synchronous>, transform_indices = @transform_1, window_bounds = array<i64: 1, 32>}, {pipeline_mode = #tpu.pipeline_mode<synchronous>, transform_indices = @transform_2, window_bounds = array<i64: 1, 32>}, {pipeline_mode = #tpu.pipeline_mode<synchronous>, transform_indices = @transform_3, window_bounds = array<i64: 32, 7>}, {pipeline_mode = #tpu.pipeline_mode<synchronous>, transform_indices = @transform_4, window_bounds = array<i64: 1, 7>}, {transform_indices = @transform_5, window_bounds = array<i64: 16, 7>}]} {
    %c0 = arith.constant 0 : index
    %c0_0 = arith.constant 0 : index
    %0 = vector.load %arg1[%c0, %c0_0] : memref<16x32xf32, #tpu.memory_space<vmem>>, vector<16x32xf32>
    %c0_1 = arith.constant 0 : index
    %c0_2 = arith.constant 0 : index
    %1 = vector.load %arg2[%c0_1, %c0_2] : memref<1x32xf32, #tpu.memory_space<vmem>>, vector<1x32xf32>
    %c0_3 = arith.constant 0 : index
    %c0_4 = arith.constant 0 : index
    %2 = vector.load %arg3[%c0_3, %c0_4] : memref<1x32xf32, #tpu.memory_space<vmem>>, vector<1x32xf32>
    %cst = arith.constant dense<0.000000e+00> : vector<16xf32>
    %3 = vector.multi_reduction <add>, %0, %cst [1] : vector<16x32xf32> to vector<16xf32>
    %4 = vector.shape_cast %3 : vector<16xf32> to vector<16x1xf32>
    %cst_5 = arith.constant 3.200000e+01 : f32
    %5 = vector.broadcast %cst_5 : f32 to vector<16x1xf32>
    %6 = arith.divf %4, %5 : vector<16x1xf32>
    %7 = vector.broadcast %6 : vector<16x1xf32> to vector<16x32xf32>
    %8 = arith.subf %0, %7 : vector<16x32xf32>
    %9 = arith.mulf %8, %8 : vector<16x32xf32>
    %cst_6 = arith.constant dense<0.000000e+00> : vector<16xf32>
    %10 = vector.multi_reduction <add>, %9, %cst_6 [1] : vector<16x32xf32> to vector<16xf32>
    %11 = vector.shape_cast %10 : vector<16xf32> to vector<16x1xf32>
    %cst_7 = arith.constant 3.200000e+01 : f32
    %12 = vector.broadcast %cst_7 : f32 to vector<16x1xf32>
    %13 = arith.divf %11, %12 : vector<16x1xf32>
    %14 = vector.broadcast %6 : vector<16x1xf32> to vector<16x32xf32>
    %15 = arith.subf %0, %14 : vector<16x32xf32>
    %cst_8 = arith.constant 9.99999974E-6 : f32
    %16 = vector.broadcast %cst_8 : f32 to vector<16x1xf32>
    %17 = arith.addf %13, %16 : vector<16x1xf32>
    %18 = math.rsqrt %17 : vector<16x1xf32>
    %19 = vector.broadcast %18 : vector<16x1xf32> to vector<16x32xf32>
    %20 = arith.mulf %15, %19 : vector<16x32xf32>
    %21 = vector.broadcast %1 : vector<1x32xf32> to vector<16x32xf32>
    %22 = arith.mulf %20, %21 : vector<16x32xf32>
    %23 = vector.broadcast %2 : vector<1x32xf32> to vector<16x32xf32>
    %24 = arith.addf %22, %23 : vector<16x32xf32>
    %25 = arith.truncf %24 : vector<16x32xf32> to vector<16x32xbf16>
    %c0_9 = arith.constant 0 : index
    %c0_10 = arith.constant 0 : index
    %26 = vector.load %arg4[%c0_9, %c0_10] : memref<32x7xbf16, #tpu.memory_space<vmem>>, vector<32x7xbf16>
    %cst_11 = arith.constant dense<0.000000e+00> : vector<16x7xf32>
    %27 = tpu.matmul %25, %26, %cst_11 {dimension_numbers = #tpu.dot_dimension_numbers<[1], [0], [0], [1], [0, 0, 1, 1], [], []>} : vector<16x32xbf16>, vector<32x7xbf16>, vector<16x7xf32> -> vector<16x7xf32>
    %c0_12 = arith.constant 0 : index
    %c0_13 = arith.constant 0 : index
    %28 = vector.load %arg5[%c0_12, %c0_13] : memref<1x7xf32, #tpu.memory_space<vmem>>, vector<1x7xf32>
    %29 = vector.broadcast %28 : vector<1x7xf32> to vector<16x7xf32>
    %30 = arith.addf %27, %29 : vector<16x7xf32>
    %c0_14 = arith.constant 0 : index
    %c0_15 = arith.constant 0 : index
    %31 = vector.load %arg6[%c0_14, %c0_15] : memref<16x7xf32, #tpu.memory_space<vmem>>, vector<16x7xf32>
    tpu.vector_store %arg6[%c0_14, %c0_15], %30 {strides = array<i32>} : memref<16x7xf32, #tpu.memory_space<vmem>>, vector<16x7xf32>,
    return
  }
  func.func @transform_0(%arg0: i32) -> (i32, i32) {
    %c0_i32 = arith.constant 0 : i32
    %c0_i32_0 = arith.constant 0 : i32
    return %arg0, %c0_i32 : i32, i32
  }
  func.func @transform_1(%arg0: i32) -> (i32, i32) {
    %c0_i32 = arith.constant 0 : i32
    %c0_i32_0 = arith.constant 0 : i32
    %c0_i32_1 = arith.constant 0 : i32
    return %c0_i32, %c0_i32_0 : i32, i32
  }
  func.func @transform_2(%arg0: i32) -> (i32, i32) {
    %c0_i32 = arith.constant 0 : i32
    %c0_i32_0 = arith.constant 0 : i32
    %c0_i32_1 = arith.constant 0 : i32
    return %c0_i32, %c0_i32_0 : i32, i32
  }
  func.func @transform_3(%arg0: i32) -> (i32, i32) {
    %c0_i32 = arith.constant 0 : i32
    %c0_i32_0 = arith.constant 0 : i32
    %c0_i32_1 = arith.constant 0 : i32
    return %c0_i32, %c0_i32_0 : i32, i32
  }
  func.func @transform_4(%arg0: i32) -> (i32, i32) {
    %c0_i32 = arith.constant 0 : i32
    %c0_i32_0 = arith.constant 0 : i32
    %c0_i32_1 = arith.constant 0 : i32
    return %c0_i32, %c0_i32_0 : i32, i32
  }
  func.func @transform_5(%arg0: i32) -> (i32, i32) {
    %c0_i32 = arith.constant 0 : i32
    %c0_i32_0 = arith.constant 0 : i32
    return %arg0, %c0_i32 : i32, i32
  }
}

module attributes {stable_mosaic.version = 11 : i64} {
  func.func @_ln_linear_kernel(%arg0: i32, %arg1: memref<16x32xf32, #tpu.memory_space<vmem>>, %arg2: memref<1x32xf32, #tpu.memory_space<vmem>>, %arg3: memref<1x32xf32, #tpu.memory_space<vmem>>, %arg4: memref<32x3xbf16, #tpu.memory_space<vmem>>, %arg5: memref<1x3xf32, #tpu.memory_space<vmem>>, %arg6: memref<16x3xf32, #tpu.memory_space<vmem>>) attributes {dimension_semantics = [#tpu.dimension_semantics<parallel>], iteration_bounds = array<i64: 1>, scalar_prefetch = 0 : i64, scratch_operands = 0 : i64, tpu.core_type = #tpu.core_type<tc>, window_params = [{transform_indices = @transform_0, window_bounds = array<i64: 16, 32>}, {pipeline_mode = #tpu.pipeline_mode<synchronous>, transform_indices = @transform_1, window_bounds = array<i64: 1, 32>}, {pipeline_mode = #tpu.pipeline_mode<synchronous>, transform_indices = @transform_2, window_bounds = array<i64: 1, 32>}, {pipeline_mode = #tpu.pipeline_mode<synchronous>, transform_indices = @transform_3, window_bounds = array<i64: 32, 3>}, {pipeline_mode = #tpu.pipeline_mode<synchronous>, transform_indices = @transform_4, window_bounds = array<i64: 1, 3>}, {transform_indices = @transform_5, window_bounds = array<i64: 16, 3>}]} {
    %c0 = arith.constant 0 : index
    %c0_0 = arith.constant 0 : index
    %0 = vector.load %arg1[%c0, %c0_0] : memref<16x32xf32, #tpu.memory_space<vmem>>, vector<16x32xf32>
    %c0_1 = arith.constant 0 : index
    %c0_2 = arith.constant 0 : index
    %1 = vector.load %arg2[%c0_1, %c0_2] : memref<1x32xf32, #tpu.memory_space<vmem>>, vector<1x32xf32>
    %c0_3 = arith.constant 0 : index
    %c0_4 = arith.constant 0 : index
    %2 = vector.load %arg3[%c0_3, %c0_4] : memref<1x32xf32, #tpu.memory_space<vmem>>, vector<1x32xf32>
    %cst = arith.constant dense<0.000000e+00> : vector<16xf32>
    %3 = vector.multi_reduction <add>, %0, %cst [1] : vector<16x32xf32> to vector<16xf32>
    %4 = vector.shape_cast %3 : vector<16xf32> to vector<16x1xf32>
    %cst_5 = arith.constant 3.200000e+01 : f32
    %5 = vector.broadcast %cst_5 : f32 to vector<16x1xf32>
    %6 = arith.divf %4, %5 : vector<16x1xf32>
    %7 = vector.broadcast %6 : vector<16x1xf32> to vector<16x32xf32>
    %8 = arith.subf %0, %7 : vector<16x32xf32>
    %9 = arith.mulf %8, %8 : vector<16x32xf32>
    %cst_6 = arith.constant dense<0.000000e+00> : vector<16xf32>
    %10 = vector.multi_reduction <add>, %9, %cst_6 [1] : vector<16x32xf32> to vector<16xf32>
    %11 = vector.shape_cast %10 : vector<16xf32> to vector<16x1xf32>
    %cst_7 = arith.constant 3.200000e+01 : f32
    %12 = vector.broadcast %cst_7 : f32 to vector<16x1xf32>
    %13 = arith.divf %11, %12 : vector<16x1xf32>
    %14 = vector.broadcast %6 : vector<16x1xf32> to vector<16x32xf32>
    %15 = arith.subf %0, %14 : vector<16x32xf32>
    %cst_8 = arith.constant 9.99999974E-6 : f32
    %16 = vector.broadcast %cst_8 : f32 to vector<16x1xf32>
    %17 = arith.addf %13, %16 : vector<16x1xf32>
    %18 = math.rsqrt %17 : vector<16x1xf32>
    %19 = vector.broadcast %18 : vector<16x1xf32> to vector<16x32xf32>
    %20 = arith.mulf %15, %19 : vector<16x32xf32>
    %21 = vector.broadcast %1 : vector<1x32xf32> to vector<16x32xf32>
    %22 = arith.mulf %20, %21 : vector<16x32xf32>
    %23 = vector.broadcast %2 : vector<1x32xf32> to vector<16x32xf32>
    %24 = arith.addf %22, %23 : vector<16x32xf32>
    %25 = arith.truncf %24 : vector<16x32xf32> to vector<16x32xbf16>
    %c0_9 = arith.constant 0 : index
    %c0_10 = arith.constant 0 : index
    %26 = vector.load %arg4[%c0_9, %c0_10] : memref<32x3xbf16, #tpu.memory_space<vmem>>, vector<32x3xbf16>
    %cst_11 = arith.constant dense<0.000000e+00> : vector<16x3xf32>
    %27 = tpu.matmul %25, %26, %cst_11 {dimension_numbers = #tpu.dot_dimension_numbers<[1], [0], [0], [1], [0, 0, 1, 1], [], []>} : vector<16x32xbf16>, vector<32x3xbf16>, vector<16x3xf32> -> vector<16x3xf32>
    %c0_12 = arith.constant 0 : index
    %c0_13 = arith.constant 0 : index
    %28 = vector.load %arg5[%c0_12, %c0_13] : memref<1x3xf32, #tpu.memory_space<vmem>>, vector<1x3xf32>
    %29 = vector.broadcast %28 : vector<1x3xf32> to vector<16x3xf32>
    %30 = arith.addf %27, %29 : vector<16x3xf32>
    %c0_14 = arith.constant 0 : index
    %c0_15 = arith.constant 0 : index
    %31 = vector.load %arg6[%c0_14, %c0_15] : memref<16x3xf32, #tpu.memory_space<vmem>>, vector<16x3xf32>
    tpu.vector_store %arg6[%c0_14, %c0_15], %30 {strides = array<i32>} : memref<16x3xf32, #tpu.memory_space<vmem>>, vector<16x3xf32>,
    return
  }
  func.func @transform_0(%arg0: i32) -> (i32, i32) {
    %c0_i32 = arith.constant 0 : i32
    %c0_i32_0 = arith.constant 0 : i32
    return %arg0, %c0_i32 : i32, i32
  }
  func.func @transform_1(%arg0: i32) -> (i32, i32) {
    %c0_i32 = arith.constant 0 : i32
    %c0_i32_0 = arith.constant 0 : i32
    %c0_i32_1 = arith.constant 0 : i32
    return %c0_i32, %c0_i32_0 : i32, i32
  }
  func.func @transform_2(%arg0: i32) -> (i32, i32) {
    %c0_i32 = arith.constant 0 : i32
    %c0_i32_0 = arith.constant 0 : i32
    %c0_i32_1 = arith.constant 0 : i32
    return %c0_i32, %c0_i32_0 : i32, i32
  }
  func.func @transform_3(%arg0: i32) -> (i32, i32) {
    %c0_i32 = arith.constant 0 : i32
    %c0_i32_0 = arith.constant 0 : i32
    %c0_i32_1 = arith.constant 0 : i32
    return %c0_i32, %c0_i32_0 : i32, i32
  }
  func.func @transform_4(%arg0: i32) -> (i32, i32) {
    %c0_i32 = arith.constant 0 : i32
    %c0_i32_0 = arith.constant 0 : i32
    %c0_i32_1 = arith.constant 0 : i32
    return %c0_i32, %c0_i32_0 : i32, i32
  }
  func.func @transform_5(%arg0: i32) -> (i32, i32) {
    %c0_i32 = arith.constant 0 : i32
    %c0_i32_0 = arith.constant 0 : i32
    return %arg0, %c0_i32 : i32, i32
  }
}

</mosaic_0001>

<llo_original>
// kernel: gpt_decoder_forward.15
$region0: #{gpt_decoder_forward.15}
  #allocation0 [shape = 'u32[]', space=smem, size = 0x4, offset = 0x4, fixed_abs, tag = 'smem constant byte address 0x4 - core index']
  #allocation1 [shape = 'u32[72,128]{1,0:T(1,128)}', space=vmem, size = 0x9000, scoped, tag = 'internal scratch']
  %s0 = inlined_call_operand.vmem [shape: f32[2,24,96], index: 0, kind: input, shape index: {}]
  %s1 = inlined_call_operand.vmem [shape: f32[2,1,24], index: 1, kind: input, shape index: {}]
  %s2 = inlined_call_operand.vmem [shape: f32[2,24,32], index: 2, kind: output, shape index: {}]
  %s3 = sld [smem:[#allocation0]]
  $region41: #{gpt_decoder_forward.15} parent=0
    _
  %s5 = ssub.s32 1, %s3
  %s6 = scalar_select 0, %s5, %s3
  loop: start=0, step=1, limit=4
  $region2: #{gpt_decoder_forward.15} parent=0 // loop_pre_header
    _
  $region3: #{gpt_decoder_forward.15} parent=0 // loop_header
    %s8 = sphi 0, %s12
    %p9 = scmp.ge.s32.totalorder %s8, 4
    %s18 = sphi 0, %s20
    %s21 = sphi 0, %s18
    %s22 = sphi 0, %s21
    %s38 = sphi 0, %s22
    %s44 = sphi 0, %s46
    %s47 = sphi 0, %s44
    %s48 = sphi 0, %s47
    %s64 = sphi 0, %s48
    %s70 = sphi 0, %s72
    %s73 = sphi 0, %s70
    %s74 = sphi 0, %s73
    %s90 = sphi 0, %s74
  $region4: #{gpt_decoder_forward.15} parent=0 // loop_header_branch
    %11 = sbr.rel (%p9) target = $region8
  $region5: #{gpt_decoder_forward.15} parent=0 // loop_body
    %s13 = ssub.s32 %s8, 1
    %s14 = ssub.s32 %s8, 2
    %s15 = sadd.s32 %s8, 1
    %s16 = ssub.s32 %s8, %s15
    %p17 = scmp.eq.s32.totalorder %s16, 0
    %s19 = sadd.s32 %s18, 1
    %s20 = scalar_select %p17, %s18, %s19
    %p23 = pneg %p17
    %p24 = scmp.eq.s32.totalorder %s8, 1
    %p25 = por %p23, %p24
    %p26 = scmp.ne.s32.totalorder %s18, %s21
    %p27 = scmp.eq.s32.totalorder %s8, 0
    %p28 = por %p26, %p27
    %p29 = scmp.ne.s32.totalorder %s18, %s21
    %p30 = scmp.eq.s32.totalorder %s13, 1
    %p31 = por %p29, %p30
    %p32 = scmp.ne.s32.totalorder %s21, %s22
    %p33 = scmp.eq.s32.totalorder %s13, 0
    %p34 = por %p32, %p33
    %p35 = scmp.ne.s32.totalorder %s21, %s22
    %p36 = scmp.eq.s32.totalorder %s14, 1
    %p37 = por %p35, %p36
    %p39 = scmp.ne.s32.totalorder %s22, %s38
    %p40 = scmp.eq.s32.totalorder %s14, 0
    %p41 = por %p39, %p40
    %s42 = ssub.s32 %s8, %s15
    %p43 = scmp.eq.s32.totalorder %s42, 0
    %s45 = sadd.s32 %s44, 1
    %s46 = scalar_select %p43, %s44, %s45
    %p49 = pneg %p43
    %p50 = scmp.eq.s32.totalorder %s8, 1
    %p51 = por %p49, %p50
    %p52 = scmp.ne.s32.totalorder %s44, %s47
    %p53 = scmp.eq.s32.totalorder %s8, 0
    %p54 = por %p52, %p53
    %p55 = scmp.ne.s32.totalorder %s44, %s47
    %p56 = scmp.eq.s32.totalorder %s13, 1
    %p57 = por %p55, %p56
    %p58 = scmp.ne.s32.totalorder %s47, %s48
    %p59 = scmp.eq.s32.totalorder %s13, 0
    %p60 = por %p58, %p59
    %p61 = scmp.ne.s32.totalorder %s47, %s48
    %p62 = scmp.eq.s32.totalorder %s14, 1
    %p63 = por %p61, %p62
    %p65 = scmp.ne.s32.totalorder %s48, %s64
    %p66 = scmp.eq.s32.totalorder %s14, 0
    %p67 = por %p65, %p66
    %s68 = ssub.s32 %s8, %s15
    %p69 = scmp.eq.s32.totalorder %s68, 0
    %s71 = sadd.s32 %s70, 1
    %s72 = scalar_select %p69, %s70, %s71
    %p75 = pneg %p69
    %p76 = scmp.eq.s32.totalorder %s8, 1
    %p77 = por %p75, %p76
    %p78 = scmp.ne.s32.totalorder %s70, %s73
    %p79 = scmp.eq.s32.totalorder %s8, 0
    %p80 = por %p78, %p79
    %p81 = scmp.ne.s32.totalorder %s70, %s73
    %p82 = scmp.eq.s32.totalorder %s13, 1
    %p83 = por %p81, %p82
    %p84 = scmp.ne.s32.totalorder %s73, %s74
    %p85 = scmp.eq.s32.totalorder %s13, 0
    %p86 = por %p84, %p85
    %p87 = scmp.ne.s32.totalorder %s73, %s74
    %p88 = scmp.eq.s32.totalorder %s14, 1
    %p89 = por %p87, %p88
    %p91 = scmp.ne.s32.totalorder %s74, %s90
    %p92 = scmp.eq.s32.totalorder %s14, 0
    %p93 = por %p91, %p92
    %p94 = scmp.le.s32.totalorder 1, %s8
    %p95 = scmp.lt.s32.totalorder %s8, 3
    %p96 = pnand %p94, %p95
    %p97 = pneg %p96
    // Predicated region
    $region9: #{gpt_decoder_forward.15} parent=5 // pred_check
      _
    $region10: #{gpt_decoder_forward.15} parent=5 // pred_check_branch
      %99 = sbr.rel (%p96) target = $region12
    $region11: #{gpt_decoder_forward.15} parent=5 // pred_region
      %s100 = ssub.s32 %s8, 1
    $region12: #{gpt_decoder_forward.15} parent=5 // pred_fallthru
      _
    %p101 = scmp.lt.s32.totalorder %s8, 2
    // Predicated region
    $region13: #{gpt_decoder_forward.15} parent=5 // pred_check
      %p102 = pneg %p101
    $region14: #{gpt_decoder_forward.15} parent=5 // pred_check_branch
      %104 = sbr.rel (%p102) target = $region16
    $region15: #{gpt_decoder_forward.15} parent=5 // pred_region
      // Predicated region
      $region17: #{gpt_decoder_forward.15} parent=15 // pred_check
        %p105 = pneg %p28
      $region18: #{gpt_decoder_forward.15} parent=15 // pred_check_branch
        %107 = sbr.rel (%p105) target = $region20
      $region19: #{gpt_decoder_forward.15} parent=15 // pred_region
        %p108 = scmp.lt.s32.totalorder %s8, 1
        %s109 = scalar_select %p108, %s8, 1
        %s110 = smul.addr %s109, 3
        %s111 = smul.addr %s110, 8
        %s112 = scalar_lea.vmem %s0, %s111
      $region20: #{gpt_decoder_forward.15} parent=15 // pred_fallthru
        _
      // Predicated region
      $region21: #{gpt_decoder_forward.15} parent=15 // pred_check
        %p113 = pneg %p54
      $region22: #{gpt_decoder_forward.15} parent=15 // pred_check_branch
        %115 = sbr.rel (%p113) target = $region24
      $region23: #{gpt_decoder_forward.15} parent=15 // pred_region
        %p116 = scmp.lt.s32.totalorder %s8, 1
        %s117 = scalar_select %p116, %s8, 1
        %s118 = scalar_lea.vmem %s1, %s117
      $region24: #{gpt_decoder_forward.15} parent=15 // pred_fallthru
        _
    $region16: #{gpt_decoder_forward.15} parent=5 // pred_fallthru
      _
    %p119 = scmp.le.s32.totalorder 1, %s8
    %p120 = scmp.lt.s32.totalorder %s8, 3
    %p121 = pnand %p119, %p120
    %p122 = pneg %p121
    // Predicated region
    $region25: #{gpt_decoder_forward.15} parent=5 // pred_check
      _
    $region26: #{gpt_decoder_forward.15} parent=5 // pred_check_branch
      %124 = sbr.rel (%p121) target = $region28
    $region27: #{gpt_decoder_forward.15} parent=5 // pred_region
      %s125 = ssub.s32 %s8, 1
      %p126 = scmp.lt.s32.totalorder %s13, 1
      %s127 = scalar_select %p126, %s13, 1
      %s128 = smul.addr %s127, 3
      %s129 = smul.addr %s128, 8
      %s130 = scalar_lea.vmem %s0, %s129
      %p131 = pneg %p34
      %p132 = pneg %p31
      %p133 = scmp.lt.s32.totalorder %s13, 1
      %s134 = scalar_select %p133, %s13, 1
      %s135 = scalar_lea.vmem %s1, %s134
      %p136 = pneg %p60
      %p137 = pneg %p57
      %p138 = pneg %p86
      %p139 = pneg %p83
      %p140 = scmp.lt.s32.totalorder %s13, 1
      %s141 = scalar_select %p140, %s13, 1
      %s142 = smul.addr %s141, 3
      %s143 = smul.addr %s142, 8
      %s144 = scalar_lea.vmem %s2, %s143
      %p145 = scmp.lt.s32.totalorder %s13, 1
      %s146 = scalar_select %p145, %s13, 1
      %s147 = smul.addr %s146, 3
      %s148 = smul.addr %s147, 8
      %s149 = scalar_lea.vmem %s0, %s148
      %p150 = scmp.lt.s32.totalorder %s13, 1
      %s151 = scalar_select %p150, %s13, 1
      %s152 = scalar_lea.vmem %s1, %s151
      %p153 = scmp.lt.s32.totalorder %s13, 1
      %s154 = scalar_select %p153, %s13, 1
      %s155 = smul.addr %s154, 3
      %s156 = smul.addr %s155, 8
      %s157 = scalar_lea.vmem %s2, %s156
      %v159 = vld [vmem:[%s149] sm:$0xff]
      %v160 = vld [vmem:[%s149 + $0x8] sm:$0xff]
      %v161 = vld [vmem:[%s149 + $0x10] sm:$0xff]
      %v162 = vld [vmem:[%s152] sm:$0x1]
      %vm163 = vcmp.gt.f32.partialorder %v162, 0.0
      %v164 = vlaneseq
      %v165 = vshrl.u32 %v164, 7
      %v166 = vadd.s32 %v165, 8
      %v167 = vadd.s32 %v165, 16
      %v168 = vlaneseq
      %v169 = vand.u32 %v168, 127
      %vm170 = vcmp.le.s32.totalorder %v169, %v165
      %vm171 = vcmp.le.s32.totalorder %v169, %v166
      %vm172 = vcmp.le.s32.totalorder %v169, %v167
      %v173 = vsel %vm163, 1, 0
      %v174 = vperm.slane %v173, 0
      %vm175 = vcmp.eq.s32.totalorder %v174, 1
      %vm176 = vmand %vm170, %vm175
      %vm177 = vmand %vm171, %vm175
      %vm178 = vmand %vm172, %vm175
      %v179 = vsel %vm176, 0.0, -1e+30
      %v180 = vsel %vm177, 0.0, -1e+30
      %v181 = vsel %vm178, 0.0, -1e+30
      %v182 = vpack.c.bf16 %v160, %v159
      %v183 = vpack.c.bf16 %v161, %v161
      %186 = vrot.lane.b32.xlu0 %v182, 96
      %v187 = vpop.permute.xlu0 %186
      %188 = vrot.lane.b32.xlu0 %v183, 96
      %v189 = vpop.permute.xlu0 %188
      %vm190 = vcmask 64512
      %v192 = vsel %vm190, %v182, 0
      %v195 = vsel %vm190, %v183, 0
      %v198 = vsel %vm190, %v187, 0
      %v201 = vsel %vm190, %v189, 0
      %203 = vmatpush.bf16.xpose.msra.mxu0 0
      %204 = vmatpush.bf16.xpose.msra.mxu0 0
      %205 = vmatpush.bf16.xpose.msra.mxu0 0
      %206 = vmatpush.bf16.xpose.msra.mxu0 0
      %207 = vmatpush.bf16.xpose.msra.mxu0 0
      %208 = vmatpush.bf16.xpose.msra.mxu0 0
      %209 = vmatpush.bf16.xpose.msra.mxu0 %v201
      %210 = vmatpush.bf16.xpose.msra.mxu0 %v198
      %211 = vmatmul.bf16.gmra.mxu0 %v192
      %v212 = vpop.f32.mrf.mxu0
      %v213 = vadd.f32 0.0, %v212
      %v214 = vpop.f32.mrf.mxu0
      %v215 = vadd.f32 0.0, %v214
      %216 = vmatmul.bf16.gmra.mxu0 %v195
      %v217 = vpop.f32.mrf.mxu0
      %v218 = vadd.f32 0.0, %v217
      %v219 = vpop.f32.mrf.mxu0
      %220 = vdwg.mxu0
      %v221 = vmul.f32 %v213, 0.35355338
      %v222 = vmul.f32 %v215, 0.35355338
      %v223 = vmul.f32 %v218, 0.35355338
      %v224 = vadd.f32 %v221, %v179
      %v225 = vadd.f32 %v222, %v180
      %v226 = vadd.f32 %v223, %v181
      %vm227 = vcmask 195584
      %v228 = vsel %vm227, %v224, -inf
      %229 = vmax.xlane.f32.xlu0 %v228
      %v230 = vpop.xlane.xlu0 %229
      %v231 = vsel %vm227, %v225, -inf
      %232 = vmax.xlane.f32.xlu0 %v231
      %v233 = vpop.xlane.xlu0 %232
      %v234 = vsel %vm227, %v226, -inf
      %235 = vmax.xlane.f32.xlu0 %v234
      %v236 = vpop.xlane.xlu0 %235
      %v237 = vsub.f32 %v224, %v230
      %v238 = vsub.f32 %v225, %v233
      %v239 = vsub.f32 %v226, %v236
      %v240 = vmul.f32 %v237, 1.442695
      %v241 = vpow.pop %v240
      %v242 = vmul.f32 %v238, 1.442695
      %v243 = vpow.pop %v242
      %v244 = vmul.f32 %v239, 1.442695
      %v245 = vpow.pop %v244
      %v246 = vsel %vm227, %v241, 0.0
      %247 = vadd.xlane.f32.xlu0 %v246
      %v248 = vpop.xlane.xlu0 %247
      %v249 = vsel %vm227, %v243, 0.0
      %250 = vadd.xlane.f32.xlu0 %v249
      %v251 = vpop.xlane.xlu0 %250
      %v252 = vsel %vm227, %v245, 0.0
      %253 = vadd.xlane.f32.xlu0 %v252
      %v254 = vpop.xlane.xlu0 %253
      %v255 = vrcp.pop %v248
      %v256 = vmul.f32 %v248, %v255
      %v257 = vsub.f32 1.0, %v256
      %v258 = vmul.f32 %v255, %v257
      %v259 = vadd.f32 %v255, %v258
      %vm260 = vweird.f32 %v248
      %vm261 = vweird.f32 %v255
      %vm262 = vmor %vm260, %vm261
      %v263 = vsel %vm262, %v255, %v259
      %v264 = vand.u32 2147483647, %v248
      %vm265 = vcmp.eq.f32.partialorder %v264, 8.507059e+37
      %v266 = vand.u32 %v248, 2147483648
      %v267 = vor.u32 1.1754944e-38, %v266
      %v268 = vsel %vm265, %v267, %v263
      %v269 = vmul.f32 %v241, %v268
      %v270 = vrcp.pop %v251
      %v271 = vmul.f32 %v251, %v270
      %v272 = vsub.f32 1.0, %v271
      %v273 = vmul.f32 %v270, %v272
      %v274 = vadd.f32 %v270, %v273
      %vm275 = vweird.f32 %v251
      %vm276 = vweird.f32 %v270
      %vm277 = vmor %vm275, %vm276
      %v278 = vsel %vm277, %v270, %v274
      %v279 = vand.u32 2147483647, %v251
      %vm280 = vcmp.eq.f32.partialorder %v279, 8.507059e+37
      %v281 = vand.u32 %v251, 2147483648
      %v282 = vor.u32 1.1754944e-38, %v281
      %v283 = vsel %vm280, %v282, %v278
      %v284 = vmul.f32 %v243, %v283
      %v285 = vrcp.pop %v254
      %v286 = vmul.f32 %v254, %v285
      %v287 = vsub.f32 1.0, %v286
      %v288 = vmul.f32 %v285, %v287
      %v289 = vadd.f32 %v285, %v288
      %vm290 = vweird.f32 %v254
      %vm291 = vweird.f32 %v285
      %vm292 = vmor %vm290, %vm291
      %v293 = vsel %vm292, %v285, %v289
      %v294 = vand.u32 2147483647, %v254
      %vm295 = vcmp.eq.f32.partialorder %v294, 8.507059e+37
      %v296 = vand.u32 %v254, 2147483648
      %v297 = vor.u32 1.1754944e-38, %v296
      %v298 = vsel %vm295, %v297, %v293
      %v299 = vmul.f32 %v245, %v298
      %v300 = vpack.c.bf16 %v284, %v269
      %v301 = vpack.c.bf16 %v299, %v299
      %302 = vrot.lane.b32.xlu0 %v182, 64
      %v303 = vpop.permute.xlu0 %302
      %304 = vrot.lane.b32.xlu0 %v183, 64
      %v305 = vpop.permute.xlu0 %304
      %v308 = vsel %vm227, %v300, 0
      %v311 = vsel %vm227, %v301, 0
      %vm313 = vcmask 1043456
      %v315 = vsel %vm313, %v305, 0
      %317 = vmatpush.bf16.msra.mxu0 0
      %318 = vmatpush.bf16.msra.mxu0 0
      %319 = vmatpush.bf16.msra.mxu0 0
      %320 = vmatpush.bf16.msra.mxu0 0
      %321 = vmatpush.bf16.msra.mxu0 0
      %322 = vmatpush.bf16.msra.mxu0 0
      %323 = vmatpush.bf16.msra.mxu0 %v315
      %324 = vmatpush.bf16.msra.mxu0 %v303
      %325 = vmatmul.bf16.gmra.mxu0 %v308
      %v326 = vpop.f32.mrf.mxu0
      %v327 = vadd.f32 0.0, %v326
      %v328 = vpop.f32.mrf.mxu0
      %v329 = vadd.f32 0.0, %v328
      %330 = vmatmul.bf16.gmra.mxu0 %v311
      %v331 = vpop.f32.mrf.mxu0
      %v332 = vadd.f32 0.0, %v331
      %v333 = vpop.f32.mrf.mxu0
      %334 = vdwg.mxu0
      %335 = vrot.lane.b32.xlu0 %v182, 120
      %v336 = vpop.permute.xlu0 %335
      %337 = vrot.lane.b32.xlu0 %v183, 120
      %v338 = vpop.permute.xlu0 %337
      %339 = vrot.lane.b32.xlu0 %v182, 88
      %v340 = vpop.permute.xlu0 %339
      %341 = vrot.lane.b32.xlu0 %v183, 88
      %v342 = vpop.permute.xlu0 %341
      %v344 = vsel %vm190, %v336, 0
      %v347 = vsel %vm190, %v338, 0
      %v350 = vsel %vm190, %v340, 0
      %v353 = vsel %vm190, %v342, 0
      %355 = vmatpush.bf16.xpose.msra.mxu0 0
      %356 = vmatpush.bf16.xpose.msra.mxu0 0
      %357 = vmatpush.bf16.xpose.msra.mxu0 0
      %358 = vmatpush.bf16.xpose.msra.mxu0 0
      %359 = vmatpush.bf16.xpose.msra.mxu0 0
      %360 = vmatpush.bf16.xpose.msra.mxu0 0
      %361 = vmatpush.bf16.xpose.msra.mxu0 %v353
      %362 = vmatpush.bf16.xpose.msra.mxu0 %v350
      %363 = vmatmul.bf16.gmra.mxu0 %v344
      %v364 = vpop.f32.mrf.mxu0
      %v365 = vadd.f32 0.0, %v364
      %v366 = vpop.f32.mrf.mxu0
      %v367 = vadd.f32 0.0, %v366
      %368 = vmatmul.bf16.gmra.mxu0 %v347
      %v369 = vpop.f32.mrf.mxu0
      %v370 = vadd.f32 0.0, %v369
      %v371 = vpop.f32.mrf.mxu0
      %372 = vdwg.mxu0
      %v373 = vmul.f32 %v365, 0.35355338
      %v374 = vmul.f32 %v367, 0.35355338
      %v375 = vmul.f32 %v370, 0.35355338
      %v376 = vadd.f32 %v373, %v179
      %v377 = vadd.f32 %v374, %v180
      %v378 = vadd.f32 %v375, %v181
      %v379 = vsel %vm227, %v376, -inf
      %380 = vmax.xlane.f32.xlu0 %v379
      %v381 = vpop.xlane.xlu0 %380
      %v382 = vsel %vm227, %v377, -inf
      %383 = vmax.xlane.f32.xlu0 %v382
      %v384 = vpop.xlane.xlu0 %383
      %v385 = vsel %vm227, %v378, -inf
      %386 = vmax.xlane.f32.xlu0 %v385
      %v387 = vpop.xlane.xlu0 %386
      %v388 = vsub.f32 %v376, %v381
      %v389 = vsub.f32 %v377, %v384
      %v390 = vsub.f32 %v378, %v387
      %v391 = vmul.f32 %v388, 1.442695
      %v392 = vpow.pop %v391
      %v393 = vmul.f32 %v389, 1.442695
      %v394 = vpow.pop %v393
      %v395 = vmul.f32 %v390, 1.442695
      %v396 = vpow.pop %v395
      %v397 = vsel %vm227, %v392, 0.0
      %398 = vadd.xlane.f32.xlu0 %v397
      %v399 = vpop.xlane.xlu0 %398
      %v400 = vsel %vm227, %v394, 0.0
      %401 = vadd.xlane.f32.xlu0 %v400
      %v402 = vpop.xlane.xlu0 %401
      %v403 = vsel %vm227, %v396, 0.0
      %404 = vadd.xlane.f32.xlu0 %v403
      %v405 = vpop.xlane.xlu0 %404
      %v406 = vrcp.pop %v399
      %v407 = vmul.f32 %v399, %v406
      %v408 = vsub.f32 1.0, %v407
      %v409 = vmul.f32 %v406, %v408
      %v410 = vadd.f32 %v406, %v409
      %vm411 = vweird.f32 %v399
      %vm412 = vweird.f32 %v406
      %vm413 = vmor %vm411, %vm412
      %v414 = vsel %vm413, %v406, %v410
      %v415 = vand.u32 2147483647, %v399
      %vm416 = vcmp.eq.f32.partialorder %v415, 8.507059e+37
      %v417 = vand.u32 %v399, 2147483648
      %v418 = vor.u32 1.1754944e-38, %v417
      %v419 = vsel %vm416, %v418, %v414
      %v420 = vmul.f32 %v392, %v419
      %v421 = vrcp.pop %v402
      %v422 = vmul.f32 %v402, %v421
      %v423 = vsub.f32 1.0, %v422
      %v424 = vmul.f32 %v421, %v423
      %v425 = vadd.f32 %v421, %v424
      %vm426 = vweird.f32 %v402
      %vm427 = vweird.f32 %v421
      %vm428 = vmor %vm426, %vm427
      %v429 = vsel %vm428, %v421, %v425
      %v430 = vand.u32 2147483647, %v402
      %vm431 = vcmp.eq.f32.partialorder %v430, 8.507059e+37
      %v432 = vand.u32 %v402, 2147483648
      %v433 = vor.u32 1.1754944e-38, %v432
      %v434 = vsel %vm431, %v433, %v429
      %v435 = vmul.f32 %v394, %v434
      %v436 = vrcp.pop %v405
      %v437 = vmul.f32 %v405, %v436
      %v438 = vsub.f32 1.0, %v437
      %v439 = vmul.f32 %v436, %v438
      %v440 = vadd.f32 %v436, %v439
      %vm441 = vweird.f32 %v405
      %vm442 = vweird.f32 %v436
      %vm443 = vmor %vm441, %vm442
      %v444 = vsel %vm443, %v436, %v440
      %v445 = vand.u32 2147483647, %v405
      %vm446 = vcmp.eq.f32.partialorder %v445, 8.507059e+37
      %v447 = vand.u32 %v405, 2147483648
      %v448 = vor.u32 1.1754944e-38, %v447
      %v449 = vsel %vm446, %v448, %v444
      %v450 = vmul.f32 %v396, %v449
      %v451 = vpack.c.bf16 %v435, %v420
      %v452 = vpack.c.bf16 %v450, %v450
      %453 = vrot.lane.b32.xlu0 %v182, 56
      %v454 = vpop.permute.xlu0 %453
      %455 = vrot.lane.b32.xlu0 %v183, 56
      %v456 = vpop.permute.xlu0 %455
      %v459 = vsel %vm227, %v451, 0
      %v462 = vsel %vm227, %v452, 0
      %v465 = vsel %vm313, %v456, 0
      %467 = vmatpush.bf16.msra.mxu0 0
      %468 = vmatpush.bf16.msra.mxu0 0
      %469 = vmatpush.bf16.msra.mxu0 0
      %470 = vmatpush.bf16.msra.mxu0 0
      %471 = vmatpush.bf16.msra.mxu0 0
      %472 = vmatpush.bf16.msra.mxu0 0
      %473 = vmatpush.bf16.msra.mxu0 %v465
      %474 = vmatpush.bf16.msra.mxu0 %v454
      %475 = vmatmul.bf16.gmra.mxu0 %v459
      %v476 = vpop.f32.mrf.mxu0
      %v477 = vadd.f32 0.0, %v476
      %v478 = vpop.f32.mrf.mxu0
      %v479 = vadd.f32 0.0, %v478
      %480 = vmatmul.bf16.gmra.mxu0 %v462
      %v481 = vpop.f32.mrf.mxu0
      %v482 = vadd.f32 0.0, %v481
      %v483 = vpop.f32.mrf.mxu0
      %484 = vdwg.mxu0
      %485 = vrot.lane.b32.xlu0 %v182, 112
      %v486 = vpop.permute.xlu0 %485
      %487 = vrot.lane.b32.xlu0 %v183, 112
      %v488 = vpop.permute.xlu0 %487
      %489 = vrot.lane.b32.xlu0 %v182, 80
      %v490 = vpop.permute.xlu0 %489
      %491 = vrot.lane.b32.xlu0 %v183, 80
      %v492 = vpop.permute.xlu0 %491
      %v494 = vsel %vm190, %v486, 0
      %v497 = vsel %vm190, %v488, 0
      %v500 = vsel %vm190, %v490, 0
      %v503 = vsel %vm190, %v492, 0
      %505 = vmatpush.bf16.xpose.msra.mxu0 0
      %506 = vmatpush.bf16.xpose.msra.mxu0 0
      %507 = vmatpush.bf16.xpose.msra.mxu0 0
      %508 = vmatpush.bf16.xpose.msra.mxu0 0
      %509 = vmatpush.bf16.xpose.msra.mxu0 0
      %510 = vmatpush.bf16.xpose.msra.mxu0 0
      %511 = vmatpush.bf16.xpose.msra.mxu0 %v503
      %512 = vmatpush.bf16.xpose.msra.mxu0 %v500
      %513 = vmatmul.bf16.gmra.mxu0 %v494
      %v514 = vpop.f32.mrf.mxu0
      %v515 = vadd.f32 0.0, %v514
      %v516 = vpop.f32.mrf.mxu0
      %v517 = vadd.f32 0.0, %v516
      %518 = vmatmul.bf16.gmra.mxu0 %v497
      %v519 = vpop.f32.mrf.mxu0
      %v520 = vadd.f32 0.0, %v519
      %v521 = vpop.f32.mrf.mxu0
      %522 = vdwg.mxu0
      %v523 = vmul.f32 %v515, 0.35355338
      %v524 = vmul.f32 %v517, 0.35355338
      %v525 = vmul.f32 %v520, 0.35355338
      %v526 = vadd.f32 %v523, %v179
      %v527 = vadd.f32 %v524, %v180
      %v528 = vadd.f32 %v525, %v181
      %v529 = vsel %vm227, %v526, -inf
      %530 = vmax.xlane.f32.xlu0 %v529
      %v531 = vpop.xlane.xlu0 %530
      %v532 = vsel %vm227, %v527, -inf
      %533 = vmax.xlane.f32.xlu0 %v532
      %v534 = vpop.xlane.xlu0 %533
      %v535 = vsel %vm227, %v528, -inf
      %536 = vmax.xlane.f32.xlu0 %v535
      %v537 = vpop.xlane.xlu0 %536
      %v538 = vsub.f32 %v526, %v531
      %v539 = vsub.f32 %v527, %v534
      %v540 = vsub.f32 %v528, %v537
      %v541 = vmul.f32 %v538, 1.442695
      %v542 = vpow.pop %v541
      %v543 = vmul.f32 %v539, 1.442695
      %v544 = vpow.pop %v543
      %v545 = vmul.f32 %v540, 1.442695
      %v546 = vpow.pop %v545
      %v547 = vsel %vm227, %v542, 0.0
      %548 = vadd.xlane.f32.xlu0 %v547
      %v549 = vpop.xlane.xlu0 %548
      %v550 = vsel %vm227, %v544, 0.0
      %551 = vadd.xlane.f32.xlu0 %v550
      %v552 = vpop.xlane.xlu0 %551
      %v553 = vsel %vm227, %v546, 0.0
      %554 = vadd.xlane.f32.xlu0 %v553
      %v555 = vpop.xlane.xlu0 %554
      %v556 = vrcp.pop %v549
      %v557 = vmul.f32 %v549, %v556
      %v558 = vsub.f32 1.0, %v557
      %v559 = vmul.f32 %v556, %v558
      %v560 = vadd.f32 %v556, %v559
      %vm561 = vweird.f32 %v549
      %vm562 = vweird.f32 %v556
      %vm563 = vmor %vm561, %vm562
      %v564 = vsel %vm563, %v556, %v560
      %v565 = vand.u32 2147483647, %v549
      %vm566 = vcmp.eq.f32.partialorder %v565, 8.507059e+37
      %v567 = vand.u32 %v549, 2147483648
      %v568 = vor.u32 1.1754944e-38, %v567
      %v569 = vsel %vm566, %v568, %v564
      %v570 = vmul.f32 %v542, %v569
      %v571 = vrcp.pop %v552
      %v572 = vmul.f32 %v552, %v571
      %v573 = vsub.f32 1.0, %v572
      %v574 = vmul.f32 %v571, %v573
      %v575 = vadd.f32 %v571, %v574
      %vm576 = vweird.f32 %v552
      %vm577 = vweird.f32 %v571
      %vm578 = vmor %vm576, %vm577
      %v579 = vsel %vm578, %v571, %v575
      %v580 = vand.u32 2147483647, %v552
      %vm581 = vcmp.eq.f32.partialorder %v580, 8.507059e+37
      %v582 = vand.u32 %v552, 2147483648
      %v583 = vor.u32 1.1754944e-38, %v582
      %v584 = vsel %vm581, %v583, %v579
      %v585 = vmul.f32 %v544, %v584
      %v586 = vrcp.pop %v555
      %v587 = vmul.f32 %v555, %v586
      %v588 = vsub.f32 1.0, %v587
      %v589 = vmul.f32 %v586, %v588
      %v590 = vadd.f32 %v586, %v589
      %vm591 = vweird.f32 %v555
      %vm592 = vweird.f32 %v586
      %vm593 = vmor %vm591, %vm592
      %v594 = vsel %vm593, %v586, %v590
      %v595 = vand.u32 2147483647, %v555
      %vm596 = vcmp.eq.f32.partialorder %v595, 8.507059e+37
      %v597 = vand.u32 %v555, 2147483648
      %v598 = vor.u32 1.1754944e-38, %v597
      %v599 = vsel %vm596, %v598, %v594
      %v600 = vmul.f32 %v546, %v599
      %v601 = vpack.c.bf16 %v585, %v570
      %v602 = vpack.c.bf16 %v600, %v600
      %603 = vrot.lane.b32.xlu0 %v182, 48
      %v604 = vpop.permute.xlu0 %603
      %605 = vrot.lane.b32.xlu0 %v183, 48
      %v606 = vpop.permute.xlu0 %605
      %v609 = vsel %vm227, %v601, 0
      %v612 = vsel %vm227, %v602, 0
      %v615 = vsel %vm313, %v606, 0
      %617 = vmatpush.bf16.msra.mxu0 0
      %618 = vmatpush.bf16.msra.mxu0 0
      %619 = vmatpush.bf16.msra.mxu0 0
      %620 = vmatpush.bf16.msra.mxu0 0
      %621 = vmatpush.bf16.msra.mxu0 0
      %622 = vmatpush.bf16.msra.mxu0 0
      %623 = vmatpush.bf16.msra.mxu0 %v615
      %624 = vmatpush.bf16.msra.mxu0 %v604
      %625 = vmatmul.bf16.gmra.mxu0 %v609
      %v626 = vpop.f32.mrf.mxu0
      %v627 = vadd.f32 0.0, %v626
      %v628 = vpop.f32.mrf.mxu0
      %v629 = vadd.f32 0.0, %v628
      %630 = vmatmul.bf16.gmra.mxu0 %v612
      %v631 = vpop.f32.mrf.mxu0
      %v632 = vadd.f32 0.0, %v631
      %v633 = vpop.f32.mrf.mxu0
      %634 = vdwg.mxu0
      %635 = vrot.lane.b32.xlu0 %v182, 104
      %v636 = vpop.permute.xlu0 %635
      %637 = vrot.lane.b32.xlu0 %v183, 104
      %v638 = vpop.permute.xlu0 %637
      %639 = vrot.lane.b32.xlu0 %v182, 72
      %v640 = vpop.permute.xlu0 %639
      %641 = vrot.lane.b32.xlu0 %v183, 72
      %v642 = vpop.permute.xlu0 %641
      %v644 = vsel %vm190, %v636, 0
      %v647 = vsel %vm190, %v638, 0
      %v650 = vsel %vm190, %v640, 0
      %v653 = vsel %vm190, %v642, 0
      %655 = vmatpush.bf16.xpose.msra.mxu0 0
      %656 = vmatpush.bf16.xpose.msra.mxu0 0
      %657 = vmatpush.bf16.xpose.msra.mxu0 0
      %658 = vmatpush.bf16.xpose.msra.mxu0 0
      %659 = vmatpush.bf16.xpose.msra.mxu0 0
      %660 = vmatpush.bf16.xpose.msra.mxu0 0
      %661 = vmatpush.bf16.xpose.msra.mxu0 %v653
      %662 = vmatpush.bf16.xpose.msra.mxu0 %v650
      %663 = vmatmul.bf16.gmra.mxu0 %v644
      %v664 = vpop.f32.mrf.mxu0
      %v665 = vadd.f32 0.0, %v664
      %v666 = vpop.f32.mrf.mxu0
      %v667 = vadd.f32 0.0, %v666
      %668 = vmatmul.bf16.gmra.mxu0 %v647
      %v669 = vpop.f32.mrf.mxu0
      %v670 = vadd.f32 0.0, %v669
      %v671 = vpop.f32.mrf.mxu0
      %672 = vdwg.mxu0
      %v673 = vmul.f32 %v665, 0.35355338
      %v674 = vmul.f32 %v667, 0.35355338
      %v675 = vmul.f32 %v670, 0.35355338
      %v676 = vadd.f32 %v673, %v179
      %v677 = vadd.f32 %v674, %v180
      %v678 = vadd.f32 %v675, %v181
      %v679 = vsel %vm227, %v676, -inf
      %680 = vmax.xlane.f32.xlu0 %v679
      %v681 = vpop.xlane.xlu0 %680
      %v682 = vsel %vm227, %v677, -inf
      %683 = vmax.xlane.f32.xlu0 %v682
      %v684 = vpop.xlane.xlu0 %683
      %v685 = vsel %vm227, %v678, -inf
      %686 = vmax.xlane.f32.xlu0 %v685
      %v687 = vpop.xlane.xlu0 %686
      %v688 = vsub.f32 %v676, %v681
      %v689 = vsub.f32 %v677, %v684
      %v690 = vsub.f32 %v678, %v687
      %v691 = vmul.f32 %v688, 1.442695
      %v692 = vpow.pop %v691
      %v693 = vmul.f32 %v689, 1.442695
      %v694 = vpow.pop %v693
      %v695 = vmul.f32 %v690, 1.442695
      %v696 = vpow.pop %v695
      %v697 = vsel %vm227, %v692, 0.0
      %698 = vadd.xlane.f32.xlu0 %v697
      %v699 = vpop.xlane.xlu0 %698
      %v700 = vsel %vm227, %v694, 0.0
      %701 = vadd.xlane.f32.xlu0 %v700
      %v702 = vpop.xlane.xlu0 %701
      %v703 = vsel %vm227, %v696, 0.0
      %704 = vadd.xlane.f32.xlu0 %v703
      %v705 = vpop.xlane.xlu0 %704
      %v706 = vrcp.pop %v699
      %v707 = vmul.f32 %v699, %v706
      %v708 = vsub.f32 1.0, %v707
      %v709 = vmul.f32 %v706, %v708
      %v710 = vadd.f32 %v706, %v709
      %vm711 = vweird.f32 %v699
      %vm712 = vweird.f32 %v706
      %vm713 = vmor %vm711, %vm712
      %v714 = vsel %vm713, %v706, %v710
      %v715 = vand.u32 2147483647, %v699
      %vm716 = vcmp.eq.f32.partialorder %v715, 8.507059e+37
      %v717 = vand.u32 %v699, 2147483648
      %v718 = vor.u32 1.1754944e-38, %v717
      %v719 = vsel %vm716, %v718, %v714
      %v720 = vmul.f32 %v692, %v719
      %v721 = vrcp.pop %v702
      %v722 = vmul.f32 %v702, %v721
      %v723 = vsub.f32 1.0, %v722
      %v724 = vmul.f32 %v721, %v723
      %v725 = vadd.f32 %v721, %v724
      %vm726 = vweird.f32 %v702
      %vm727 = vweird.f32 %v721
      %vm728 = vmor %vm726, %vm727
      %v729 = vsel %vm728, %v721, %v725
      %v730 = vand.u32 2147483647, %v702
      %vm731 = vcmp.eq.f32.partialorder %v730, 8.507059e+37
      %v732 = vand.u32 %v702, 2147483648
      %v733 = vor.u32 1.1754944e-38, %v732
      %v734 = vsel %vm731, %v733, %v729
      %v735 = vmul.f32 %v694, %v734
      %v736 = vrcp.pop %v705
      %v737 = vmul.f32 %v705, %v736
      %v738 = vsub.f32 1.0, %v737
      %v739 = vmul.f32 %v736, %v738
      %v740 = vadd.f32 %v736, %v739
      %vm741 = vweird.f32 %v705
      %vm742 = vweird.f32 %v736
      %vm743 = vmor %vm741, %vm742
      %v744 = vsel %vm743, %v736, %v740
      %v745 = vand.u32 2147483647, %v705
      %vm746 = vcmp.eq.f32.partialorder %v745, 8.507059e+37
      %v747 = vand.u32 %v705, 2147483648
      %v748 = vor.u32 1.1754944e-38, %v747
      %v749 = vsel %vm746, %v748, %v744
      %v750 = vmul.f32 %v696, %v749
      %v751 = vpack.c.bf16 %v735, %v720
      %v752 = vpack.c.bf16 %v750, %v750
      %753 = vrot.lane.b32.xlu0 %v182, 40
      %v754 = vpop.permute.xlu0 %753
      %755 = vrot.lane.b32.xlu0 %v183, 40
      %v756 = vpop.permute.xlu0 %755
      %v759 = vsel %vm227, %v751, 0
      %v762 = vsel %vm227, %v752, 0
      %v765 = vsel %vm313, %v756, 0
      %767 = vmatpush.bf16.msra.mxu0 0
      %768 = vmatpush.bf16.msra.mxu0 0
      %769 = vmatpush.bf16.msra.mxu0 0
      %770 = vmatpush.bf16.msra.mxu0 0
      %771 = vmatpush.bf16.msra.mxu0 0
      %772 = vmatpush.bf16.msra.mxu0 0
      %773 = vmatpush.bf16.msra.mxu0 %v765
      %774 = vmatpush.bf16.msra.mxu0 %v754
      %775 = vmatmul.bf16.gmra.mxu0 %v759
      %v776 = vpop.f32.mrf.mxu0
      %v777 = vadd.f32 0.0, %v776
      %v778 = vpop.f32.mrf.mxu0
      %v779 = vadd.f32 0.0, %v778
      %780 = vmatmul.bf16.gmra.mxu0 %v762
      %v781 = vpop.f32.mrf.mxu0
      %v782 = vadd.f32 0.0, %v781
      %v783 = vpop.f32.mrf.mxu0
      %784 = vdwg.mxu0
      %788 = vrot.lane.b32.xlu0 %v477, 8
      %v789 = vpop.permute.xlu0 %788
      %790 = vrot.lane.b32.xlu0 %v479, 8
      %v791 = vpop.permute.xlu0 %790
      %792 = vrot.lane.b32.xlu0 %v482, 8
      %v793 = vpop.permute.xlu0 %792
      %800 = vrot.lane.b32.xlu0 %v627, 16
      %v801 = vpop.permute.xlu0 %800
      %802 = vrot.lane.b32.xlu0 %v629, 16
      %v803 = vpop.permute.xlu0 %802
      %804 = vrot.lane.b32.xlu0 %v632, 16
      %v805 = vpop.permute.xlu0 %804
      %812 = vrot.lane.b32.xlu0 %v777, 24
      %v813 = vpop.permute.xlu0 %812
      %814 = vrot.lane.b32.xlu0 %v779, 24
      %v815 = vpop.permute.xlu0 %814
      %816 = vrot.lane.b32.xlu0 %v782, 24
      %v817 = vpop.permute.xlu0 %816
      %v821 = vsel %vm190, %v327, %v789
      %v822 = vsel %vm190, %v329, %v791
      %v823 = vsel %vm190, %v332, %v793
      %vm824 = vcmask 130048
      %v825 = vsel %vm824, %v821, %v801
      %v826 = vsel %vm824, %v822, %v803
      %v827 = vsel %vm824, %v823, %v805
      %v828 = vsel %vm227, %v825, %v813
      %v829 = vsel %vm227, %v826, %v815
      %v830 = vsel %vm227, %v827, %v817
      %vm831 = vcmask 261120
      %832 = vst.msk [vmem:[%s157] sm:$0xff] %vm831, %v828
      %833 = vst.msk [vmem:[%s157 + $0x8] sm:$0xff] %vm831, %v829
      %834 = vst.msk [vmem:[%s157 + $0x10] sm:$0xff] %vm831, %v830
      %p835 = scmp.lt.s32.totalorder %s13, 1
      %s836 = scalar_select %p835, %s13, 1
      %s837 = smul.addr %s836, 3
      %s838 = smul.addr %s837, 8
      %s839 = scalar_lea.vmem %s2, %s838
      // Predicated region
      $region29: #{gpt_decoder_forward.15} parent=27 // pred_check
        %p840 = pneg %p83
      $region30: #{gpt_decoder_forward.15} parent=27 // pred_check_branch
        %842 = sbr.rel (%p840) target = $region32
      $region31: #{gpt_decoder_forward.15} parent=27 // pred_region
        _
      $region32: #{gpt_decoder_forward.15} parent=27 // pred_fallthru
        _
    $region28: #{gpt_decoder_forward.15} parent=5 // pred_fallthru
      _
    %p843 = scmp.le.s32.totalorder 2, %s8
    // Predicated region
    $region33: #{gpt_decoder_forward.15} parent=5 // pred_check
      %p844 = pneg %p843
    $region34: #{gpt_decoder_forward.15} parent=5 // pred_check_branch
      %846 = sbr.rel (%p844) target = $region36
    $region35: #{gpt_decoder_forward.15} parent=5 // pred_region
      %s847 = ssub.s32 %s8, 2
      // Predicated region
      $region37: #{gpt_decoder_forward.15} parent=35 // pred_check
        %p848 = pneg %p89
      $region38: #{gpt_decoder_forward.15} parent=35 // pred_check_branch
        %850 = sbr.rel (%p848) target = $region40
      $region39: #{gpt_decoder_forward.15} parent=35 // pred_region
        %p851 = scmp.lt.s32.totalorder %s14, 1
        %s852 = scalar_select %p851, %s14, 1
        %s853 = smul.addr %s852, 3
        %s854 = smul.addr %s853, 8
        %s855 = scalar_lea.vmem %s2, %s854
      $region40: #{gpt_decoder_forward.15} parent=35 // pred_fallthru
        _
    $region36: #{gpt_decoder_forward.15} parent=5 // pred_fallthru
      _
  $region6: #{gpt_decoder_forward.15} parent=0 // loop_footer
    %s12 = sadd.s32 1, %s8
  $region7: #{gpt_decoder_forward.15} parent=0 // loop_footer_branch
    %7 = sbr.rel target = $region3
  $region8: #{gpt_decoder_forward.15} parent=0 // loop_exit
    _

// kernel: gpt_decoder_forward.14
$region0: #{gpt_decoder_forward.14}
  #allocation0 [shape = 'u32[]', space=smem, size = 0x4, offset = 0x4, fixed_abs, tag = 'smem constant byte address 0x4 - core index']
  #allocation1 [shape = 'u32[72,128]{1,0:T(1,128)}', space=vmem, size = 0x9000, scoped, tag = 'internal scratch']
  %s0 = inlined_call_operand.vmem [shape: f32[48,32], index: 0, kind: input, shape index: {}]
  %s1 = inlined_call_operand.vmem [shape: f32[1,32], index: 1, kind: input, shape index: {}]
  %s2 = inlined_call_operand.vmem [shape: f32[1,32], index: 2, kind: input, shape index: {}]
  %s3 = inlined_call_operand.vmem [shape: bf16[32,96], index: 3, kind: input, shape index: {}]
  %s4 = inlined_call_operand.vmem [shape: f32[1,96], index: 4, kind: input, shape index: {}]
  %s5 = inlined_call_operand.vmem [shape: f32[48,96], index: 5, kind: output, shape index: {}]
  %s6 = sld [smem:[#allocation0]]
  $region30: #{gpt_decoder_forward.14} parent=0
    _
  %s8 = ssub.s32 1, %s6
  %s9 = scalar_select 0, %s8, %s6
  // Predicated region
  $region2: #{gpt_decoder_forward.14} parent=0 // pred_check
    _
  $region3: #{gpt_decoder_forward.14} parent=0 // pred_check_branch
    %11 = sbr.rel (0) target = $region5
  $region4: #{gpt_decoder_forward.14} parent=0 // pred_region
    _
  $region5: #{gpt_decoder_forward.14} parent=0 // pred_fallthru
    _
  // Predicated region
  $region6: #{gpt_decoder_forward.14} parent=0 // pred_check
    _
  $region7: #{gpt_decoder_forward.14} parent=0 // pred_check_branch
    %13 = sbr.rel (0) target = $region9
  $region8: #{gpt_decoder_forward.14} parent=0 // pred_region
    _
  $region9: #{gpt_decoder_forward.14} parent=0 // pred_fallthru
    _
  // Predicated region
  $region10: #{gpt_decoder_forward.14} parent=0 // pred_check
    _
  $region11: #{gpt_decoder_forward.14} parent=0 // pred_check_branch
    %15 = sbr.rel (0) target = $region13
  $region12: #{gpt_decoder_forward.14} parent=0 // pred_region
    _
  $region13: #{gpt_decoder_forward.14} parent=0 // pred_fallthru
    _
  // Predicated region
  $region14: #{gpt_decoder_forward.14} parent=0 // pred_check
    _
  $region15: #{gpt_decoder_forward.14} parent=0 // pred_check_branch
    %17 = sbr.rel (0) target = $region17
  $region16: #{gpt_decoder_forward.14} parent=0 // pred_region
    _
  $region17: #{gpt_decoder_forward.14} parent=0 // pred_fallthru
    _
  // Predicated region
  $region18: #{gpt_decoder_forward.14} parent=0 // pred_check
    _
  $region19: #{gpt_decoder_forward.14} parent=0 // pred_check_branch
    %19 = sbr.rel (0) target = $region21
  $region20: #{gpt_decoder_forward.14} parent=0 // pred_region
    _
  $region21: #{gpt_decoder_forward.14} parent=0 // pred_fallthru
    _
  %v21 = vld [vmem:[%s0] sm:$0xff]
  %v22 = vld [vmem:[%s0 + $0x8] sm:$0xff]
  %v23 = vld [vmem:[%s0 + $0x10] sm:$0xff]
  %v24 = vld [vmem:[%s0 + $0x18] sm:$0xff]
  %v25 = vld [vmem:[%s0 + $0x20] sm:$0xff]
  %v26 = vld [vmem:[%s0 + $0x28] sm:$0xff]
  %v27 = vld [vmem:[%s1] sm:$0x1]
  %v28 = vld [vmem:[%s2] sm:$0x1]
  %vm29 = vcmask 261120
  %v30 = vsel %vm29, %v21, 0.0
  %31 = vadd.xlane.f32.xlu0 %v30
  %v32 = vpop.xlane.xlu0 %31
  %v33 = vsel %vm29, %v22, 0.0
  %34 = vadd.xlane.f32.xlu0 %v33
  %v35 = vpop.xlane.xlu0 %34
  %v36 = vsel %vm29, %v23, 0.0
  %37 = vadd.xlane.f32.xlu0 %v36
  %v38 = vpop.xlane.xlu0 %37
  %v39 = vsel %vm29, %v24, 0.0
  %40 = vadd.xlane.f32.xlu0 %v39
  %v41 = vpop.xlane.xlu0 %40
  %v42 = vsel %vm29, %v25, 0.0
  %43 = vadd.xlane.f32.xlu0 %v42
  %v44 = vpop.xlane.xlu0 %43
  %v45 = vsel %vm29, %v26, 0.0
  %46 = vadd.xlane.f32.xlu0 %v45
  %v47 = vpop.xlane.xlu0 %46
  %v48 = vrcp.pop 32.0
  %v49 = vmul.f32 32.0, %v48
  %v50 = vsub.f32 1.0, %v49
  %v51 = vmul.f32 %v48, %v50
  %v52 = vadd.f32 %v48, %v51
  %vm53 = vweird.f32 %v48
  %v54 = vsel %vm53, %v48, %v52
  %v55 = vmul.f32 %v32, %v54
  %v56 = vmul.f32 %v35, %v54
  %v57 = vmul.f32 %v38, %v54
  %v58 = vmul.f32 %v41, %v54
  %v59 = vmul.f32 %v44, %v54
  %v60 = vmul.f32 %v47, %v54
  %v61 = vsub.f32 %v21, %v55
  %v62 = vsub.f32 %v22, %v56
  %v63 = vsub.f32 %v23, %v57
  %v64 = vsub.f32 %v24, %v58
  %v65 = vsub.f32 %v25, %v59
  %v66 = vsub.f32 %v26, %v60
  %v67 = vmul.f32 %v61, %v61
  %v68 = vmul.f32 %v62, %v62
  %v69 = vmul.f32 %v63, %v63
  %v70 = vmul.f32 %v64, %v64
  %v71 = vmul.f32 %v65, %v65
  %v72 = vmul.f32 %v66, %v66
  %v73 = vsel %vm29, %v67, 0.0
  %74 = vadd.xlane.f32.xlu0 %v73
  %v75 = vpop.xlane.xlu0 %74
  %v76 = vsel %vm29, %v68, 0.0
  %77 = vadd.xlane.f32.xlu0 %v76
  %v78 = vpop.xlane.xlu0 %77
  %v79 = vsel %vm29, %v69, 0.0
  %80 = vadd.xlane.f32.xlu0 %v79
  %v81 = vpop.xlane.xlu0 %80
  %v82 = vsel %vm29, %v70, 0.0
  %83 = vadd.xlane.f32.xlu0 %v82
  %v84 = vpop.xlane.xlu0 %83
  %v85 = vsel %vm29, %v71, 0.0
  %86 = vadd.xlane.f32.xlu0 %v85
  %v87 = vpop.xlane.xlu0 %86
  %v88 = vsel %vm29, %v72, 0.0
  %89 = vadd.xlane.f32.xlu0 %v88
  %v90 = vpop.xlane.xlu0 %89
  %v91 = vmul.f32 %v75, %v54
  %v92 = vmul.f32 %v78, %v54
  %v93 = vmul.f32 %v81, %v54
  %v94 = vmul.f32 %v84, %v54
  %v95 = vmul.f32 %v87, %v54
  %v96 = vmul.f32 %v90, %v54
  %v97 = vadd.f32 %v91, 1e-05
  %v98 = vadd.f32 %v92, 1e-05
  %v99 = vadd.f32 %v93, 1e-05
  %v100 = vadd.f32 %v94, 1e-05
  %v101 = vadd.f32 %v95, 1e-05
  %v102 = vadd.f32 %v96, 1e-05
  %v103 = vrsqrt.pop %v97
  %v104 = vmul.f32 %v103, %v97
  %v105 = vmul.f32 %v104, %v103
  %v106 = vmul.f32 0.5, %v105
  %v107 = vsub.f32 1.5, %v106
  %v108 = vmul.f32 %v103, %v107
  %vm109 = vweird.f32 %v97
  %vm110 = vweird.f32 %v103
  %vm111 = vmor %vm109, %vm110
  %v112 = vsel %vm111, %v103, %v108
  %v113 = vrsqrt.pop %v98
  %v114 = vmul.f32 %v113, %v98
  %v115 = vmul.f32 %v114, %v113
  %v116 = vmul.f32 0.5, %v115
  %v117 = vsub.f32 1.5, %v116
  %v118 = vmul.f32 %v113, %v117
  %vm119 = vweird.f32 %v98
  %vm120 = vweird.f32 %v113
  %vm121 = vmor %vm119, %vm120
  %v122 = vsel %vm121, %v113, %v118
  %v123 = vrsqrt.pop %v99
  %v124 = vmul.f32 %v123, %v99
  %v125 = vmul.f32 %v124, %v123
  %v126 = vmul.f32 0.5, %v125
  %v127 = vsub.f32 1.5, %v126
  %v128 = vmul.f32 %v123, %v127
  %vm129 = vweird.f32 %v99
  %vm130 = vweird.f32 %v123
  %vm131 = vmor %vm129, %vm130
  %v132 = vsel %vm131, %v123, %v128
  %v133 = vrsqrt.pop %v100
  %v134 = vmul.f32 %v133, %v100
  %v135 = vmul.f32 %v134, %v133
  %v136 = vmul.f32 0.5, %v135
  %v137 = vsub.f32 1.5, %v136
  %v138 = vmul.f32 %v133, %v137
  %vm139 = vweird.f32 %v100
  %vm140 = vweird.f32 %v133
  %vm141 = vmor %vm139, %vm140
  %v142 = vsel %vm141, %v133, %v138
  %v143 = vrsqrt.pop %v101
  %v144 = vmul.f32 %v143, %v101
  %v145 = vmul.f32 %v144, %v143
  %v146 = vmul.f32 0.5, %v145
  %v147 = vsub.f32 1.5, %v146
  %v148 = vmul.f32 %v143, %v147
  %vm149 = vweird.f32 %v101
  %vm150 = vweird.f32 %v143
  %vm151 = vmor %vm149, %vm150
  %v152 = vsel %vm151, %v143, %v148
  %v153 = vrsqrt.pop %v102
  %v154 = vmul.f32 %v153, %v102
  %v155 = vmul.f32 %v154, %v153
  %v156 = vmul.f32 0.5, %v155
  %v157 = vsub.f32 1.5, %v156
  %v158 = vmul.f32 %v153, %v157
  %vm159 = vweird.f32 %v102
  %vm160 = vweird.f32 %v153
  %vm161 = vmor %vm159, %vm160
  %v162 = vsel %vm161, %v153, %v158
  %v163 = vmul.f32 %v61, %v112
  %v164 = vmul.f32 %v62, %v122
  %v165 = vmul.f32 %v63, %v132
  %v166 = vmul.f32 %v64, %v142
  %v167 = vmul.f32 %v65, %v152
  %v168 = vmul.f32 %v66, %v162
  %v170 = vperm.slane %v27, 0
  %v172 = vmul.f32 %v163, %v170
  %v173 = vmul.f32 %v164, %v170
  %v174 = vmul.f32 %v165, %v170
  %v175 = vmul.f32 %v166, %v170
  %v176 = vmul.f32 %v167, %v170
  %v177 = vmul.f32 %v168, %v170
  %v179 = vperm.slane %v28, 0
  %v181 = vadd.f32 %v172, %v179
  %v182 = vadd.f32 %v173, %v179
  %v183 = vadd.f32 %v174, %v179
  %v184 = vadd.f32 %v175, %v179
  %v185 = vadd.f32 %v176, %v179
  %v186 = vadd.f32 %v177, %v179
  %v187 = vpack.c.bf16 %v182, %v181
  %v188 = vpack.c.bf16 %v184, %v183
  %v189 = vpack.c.bf16 %v186, %v185
  %v190 = vld [vmem:[%s3] sm:$0xf]
  %v191 = vld [vmem:[%s3 + $0x4] sm:$0xf]
  %v192 = vld [vmem:[%s3 + $0x8] sm:$0xf]
  %v193 = vld [vmem:[%s3 + $0xc] sm:$0xf]
  %v194 = vld [vmem:[%s4] sm:$0x1]
  %v196 = vperm.slane %v194, 0
  %v202 = vunpack.c.l.b16 %v190
  %v203 = vunpack.c.l.b16 %v191
  %v204 = vunpack.c.l.b16 %v192
  %v205 = vunpack.c.l.b16 %v193
  %v206 = vpack.c.b16 %v203, %v202
  %v207 = vpack.c.b16 %v205, %v204
  %v211 = vsel %vm29, %v187, 0
  %v214 = vsel %vm29, %v188, 0
  %v217 = vsel %vm29, %v189, 0
  %219 = vmatpush.bf16.msra.mxu0 0
  %220 = vmatpush.bf16.msra.mxu0 0
  %221 = vmatpush.bf16.msra.mxu0 0
  %222 = vmatpush.bf16.msra.mxu0 0
  %223 = vmatpush.bf16.msra.mxu0 0
  %224 = vmatpush.bf16.msra.mxu0 0
  %225 = vmatpush.bf16.msra.mxu0 %v207
  %226 = vmatpush.bf16.msra.mxu0 %v206
  %227 = vmatmul.bf16.gmra.mxu0 %v211
  %v228 = vpop.f32.mrf.mxu0
  %v229 = vadd.f32 %v196, %v228
  %v230 = vpop.f32.mrf.mxu0
  %v231 = vadd.f32 %v196, %v230
  %232 = vmatmul.bf16.gmra.mxu0 %v214
  %v233 = vpop.f32.mrf.mxu0
  %v234 = vadd.f32 %v196, %v233
  %v235 = vpop.f32.mrf.mxu0
  %v236 = vadd.f32 %v196, %v235
  %237 = vmatmul.bf16.gmra.mxu0 %v217
  %v238 = vpop.f32.mrf.mxu0
  %v239 = vadd.f32 %v196, %v238
  %v240 = vpop.f32.mrf.mxu0
  %v241 = vadd.f32 %v196, %v240
  %242 = vdwg.mxu0
  %vm243 = vcmask 785408
  %244 = vst.msk [vmem:[%s5] sm:$0xff] %vm243, %v229
  %245 = vst.msk [vmem:[%s5 + $0x8] sm:$0xff] %vm243, %v231
  %246 = vst.msk [vmem:[%s5 + $0x10] sm:$0xff] %vm243, %v234
  %247 = vst.msk [vmem:[%s5 + $0x18] sm:$0xff] %vm243, %v236
  %248 = vst.msk [vmem:[%s5 + $0x20] sm:$0xff] %vm243, %v239
  %249 = vst.msk [vmem:[%s5 + $0x28] sm:$0xff] %vm243, %v241
  // Predicated region
  $region22: #{gpt_decoder_forward.14} parent=0 // pred_check
    _
  $region23: #{gpt_decoder_forward.14} parent=0 // pred_check_branch
    %251 = sbr.rel (0) target = $region25
  $region24: #{gpt_decoder_forward.14} parent=0 // pred_region
    _
  $region25: #{gpt_decoder_forward.14} parent=0 // pred_fallthru
    _
  // Predicated region
  $region26: #{gpt_decoder_forward.14} parent=0 // pred_check
    _
  $region27: #{gpt_decoder_forward.14} parent=0 // pred_check_branch
    %253 = sbr.rel (0) target = $region29
  $region28: #{gpt_decoder_forward.14} parent=0 // pred_region
    _
  $region29: #{gpt_decoder_forward.14} parent=0 // pred_fallthru
    _

// kernel: gpt_decoder_forward.12
$region0: #{gpt_decoder_forward.12}
  #allocation0 [shape = 'u32[]', space=smem, size = 0x4, offset = 0x4, fixed_abs, tag = 'smem constant byte address 0x4 - core index']
  #allocation1 [shape = 'u32[72,128]{1,0:T(1,128)}', space=vmem, size = 0x9000, scoped, tag = 'internal scratch']
  %s0 = inlined_call_operand.vmem [shape: f32[16,10], index: 0, kind: input, shape index: {}]
  %s1 = inlined_call_operand.vmem [shape: bf16[10,96], index: 1, kind: input, shape index: {}]
  %s2 = inlined_call_operand.vmem [shape: f32[1,96], index: 2, kind: input, shape index: {}]
  %s3 = inlined_call_operand.vmem [shape: f32[16,96], index: 3, kind: output, shape index: {}]
  %s4 = sld [smem:[#allocation0]]
  $region22: #{gpt_decoder_forward.12} parent=0
    _
  %s6 = ssub.s32 1, %s4
  %s7 = scalar_select 0, %s6, %s4
  // Predicated region
  $region2: #{gpt_decoder_forward.12} parent=0 // pred_check
    _
  $region3: #{gpt_decoder_forward.12} parent=0 // pred_check_branch
    %9 = sbr.rel (0) target = $region5
  $region4: #{gpt_decoder_forward.12} parent=0 // pred_region
    _
  $region5: #{gpt_decoder_forward.12} parent=0 // pred_fallthru
    _
  // Predicated region
  $region6: #{gpt_decoder_forward.12} parent=0 // pred_check
    _
  $region7: #{gpt_decoder_forward.12} parent=0 // pred_check_branch
    %11 = sbr.rel (0) target = $region9
  $region8: #{gpt_decoder_forward.12} parent=0 // pred_region
    _
  $region9: #{gpt_decoder_forward.12} parent=0 // pred_fallthru
    _
  // Predicated region
  $region10: #{gpt_decoder_forward.12} parent=0 // pred_check
    _
  $region11: #{gpt_decoder_forward.12} parent=0 // pred_check_branch
    %13 = sbr.rel (0) target = $region13
  $region12: #{gpt_decoder_forward.12} parent=0 // pred_region
    _
  $region13: #{gpt_decoder_forward.12} parent=0 // pred_fallthru
    _
  %v15 = vld [vmem:[%s0] sm:$0xff]
  %v16 = vld [vmem:[%s0 + $0x8] sm:$0xff]
  %v17 = vpack.c.bf16 %v16, %v15
  %v18 = vld [vmem:[%s1] sm:$0xf]
  %v19 = vld [vmem:[%s1 + $0x4] sm:$0x1]
  %v20 = vld [vmem:[%s2] sm:$0x1]
  %v22 = vperm.slane %v20, 0
  %v26 = vunpack.c.l.b16 %v18
  %v27 = vunpack.c.l.b16 %v19
  %v28 = vpack.c.b16 %v27, %v26
  %vm29 = vcmask 80896
  %v31 = vsel %vm29, %v17, 0
  %vm33 = vcmask 1044480
  %v35 = vsel %vm33, %v28, 0
  %37 = vmatpush.bf16.msra.mxu0 0
  %38 = vmatpush.bf16.msra.mxu0 0
  %39 = vmatpush.bf16.msra.mxu0 0
  %40 = vmatpush.bf16.msra.mxu0 0
  %41 = vmatpush.bf16.msra.mxu0 0
  %42 = vmatpush.bf16.msra.mxu0 0
  %43 = vmatpush.bf16.msra.mxu0 0
  %44 = vmatpush.bf16.msra.mxu0 %v35
  %45 = vmatmul.bf16.gmra.mxu0 %v31
  %v46 = vpop.f32.mrf.mxu0
  %v47 = vadd.f32 %v22, %v46
  %v48 = vpop.f32.mrf.mxu0
  %v49 = vadd.f32 %v22, %v48
  %50 = vdwg.mxu0
  %vm51 = vcmask 785408
  %52 = vst.msk [vmem:[%s3] sm:$0xff] %vm51, %v47
  %53 = vst.msk [vmem:[%s3 + $0x8] sm:$0xff] %vm51, %v49
  // Predicated region
  $region14: #{gpt_decoder_forward.12} parent=0 // pred_check
    _
  $region15: #{gpt_decoder_forward.12} parent=0 // pred_check_branch
    %55 = sbr.rel (0) target = $region17
  $region16: #{gpt_decoder_forward.12} parent=0 // pred_region
    _
  $region17: #{gpt_decoder_forward.12} parent=0 // pred_fallthru
    _
  // Predicated region
  $region18: #{gpt_decoder_forward.12} parent=0 // pred_check
    _
  $region19: #{gpt_decoder_forward.12} parent=0 // pred_check_branch
    %57 = sbr.rel (0) target = $region21
  $region20: #{gpt_decoder_forward.12} parent=0 // pred_region
    _
  $region21: #{gpt_decoder_forward.12} parent=0 // pred_fallthru
    _

// kernel: gpt_decoder_forward.13
$region0: #{gpt_decoder_forward.13}
  #allocation0 [shape = 'u32[]', space=smem, size = 0x4, offset = 0x4, fixed_abs, tag = 'smem constant byte address 0x4 - core index']
  #allocation1 [shape = 'u32[72,128]{1,0:T(1,128)}', space=vmem, size = 0x9000, scoped, tag = 'internal scratch']
  %s0 = inlined_call_operand.vmem [shape: f32[2,24,32], index: 0, kind: input, shape index: {}]
  %s1 = inlined_call_operand.vmem [shape: f32[1,32], index: 1, kind: input, shape index: {}]
  %s2 = inlined_call_operand.vmem [shape: f32[1,32], index: 2, kind: input, shape index: {}]
  %s3 = inlined_call_operand.vmem [shape: f32[24,32], index: 3, kind: input, shape index: {}]
  %s4 = inlined_call_operand.vmem [shape: f32[2,24,32], index: 4, kind: output, shape index: {}]
  %s5 = sld [smem:[#allocation0]]
  $region49: #{gpt_decoder_forward.13} parent=0
    _
  %s7 = ssub.s32 1, %s5
  %s8 = scalar_select 0, %s7, %s5
  loop: start=0, step=1, limit=4
  $region2: #{gpt_decoder_forward.13} parent=0 // loop_pre_header
    _
  $region3: #{gpt_decoder_forward.13} parent=0 // loop_header
    %s10 = sphi 0, %s14
    %p11 = scmp.ge.s32.totalorder %s10, 4
    %s17 = sphi 0, %s29
    %s18 = sphi 0, %s25
    %s19 = sphi 0, %s17
    %s20 = sphi 0, %s18
    %s21 = sphi 0, %s19
    %s22 = sphi 0, %s20
    %s34 = sphi 0, %s36
    %s37 = sphi 0, %s34
    %s38 = sphi 0, %s37
    %s54 = sphi 0, %s38
    %s58 = sphi 0, %s58
    %s60 = sphi 0, %s58
    %s61 = sphi 0, %s60
    %s75 = sphi 0, %s61
    %s79 = sphi 0, %s79
    %s81 = sphi 0, %s79
    %s82 = sphi 0, %s81
    %s96 = sphi 0, %s82
    %s102 = sphi 0, %s104
    %s105 = sphi 0, %s102
    %s106 = sphi 0, %s105
    %s122 = sphi 0, %s106
    %s130 = sphi 0, %s132
    %s133 = sphi 0, %s130
    %s134 = sphi 0, %s133
    %s150 = sphi 0, %s134
  $region4: #{gpt_decoder_forward.13} parent=0 // loop_header_branch
    %13 = sbr.rel (%p11) target = $region8
  $region5: #{gpt_decoder_forward.13} parent=0 // loop_body
    %s15 = ssub.s32 %s10, 1
    %s16 = ssub.s32 %s10, 2
    %s23 = sadd.s32 1, %s18
    %p24 = scmp.ge.s32.totalorder %s23, 1
    %s25 = scalar_select %p24, 0, %s23
    %s26 = sadd.s32 1, %s17
    %s27 = scalar_select %p24, %s26, %s17
    %p28 = scmp.ge.s32.totalorder %s27, 2
    %s29 = scalar_select %p28, 0, %s27
    %s30 = ssub.s32 %s17, %s29
    %s31 = ssub.s32 %s18, %s25
    %s32 = sor.u32 %s30, %s31
    %p33 = scmp.eq.s32.totalorder %s32, 0
    %s35 = sadd.s32 %s34, 1
    %s36 = scalar_select %p33, %s34, %s35
    %p39 = pneg %p33
    %p40 = scmp.eq.s32.totalorder %s10, 1
    %p41 = por %p39, %p40
    %p42 = scmp.ne.s32.totalorder %s34, %s37
    %p43 = scmp.eq.s32.totalorder %s10, 0
    %p44 = por %p42, %p43
    %p45 = scmp.ne.s32.totalorder %s34, %s37
    %p46 = scmp.eq.s32.totalorder %s15, 1
    %p47 = por %p45, %p46
    %p48 = scmp.ne.s32.totalorder %s37, %s38
    %p49 = scmp.eq.s32.totalorder %s15, 0
    %p50 = por %p48, %p49
    %p51 = scmp.ne.s32.totalorder %s37, %s38
    %p52 = scmp.eq.s32.totalorder %s16, 1
    %p53 = por %p51, %p52
    %p55 = scmp.ne.s32.totalorder %s38, %s54
    %p56 = scmp.eq.s32.totalorder %s16, 0
    %p57 = por %p55, %p56
    %s59 = sadd.s32 %s58, 1
    %p62 = scmp.eq.s32.totalorder %s10, 1
    %p63 = scmp.ne.s32.totalorder %s58, %s60
    %p64 = scmp.eq.s32.totalorder %s10, 0
    %p65 = por %p63, %p64
    %p66 = scmp.ne.s32.totalorder %s58, %s60
    %p67 = scmp.eq.s32.totalorder %s15, 1
    %p68 = por %p66, %p67
    %p69 = scmp.ne.s32.totalorder %s60, %s61
    %p70 = scmp.eq.s32.totalorder %s15, 0
    %p71 = por %p69, %p70
    %p72 = scmp.ne.s32.totalorder %s60, %s61
    %p73 = scmp.eq.s32.totalorder %s16, 1
    %p74 = por %p72, %p73
    %p76 = scmp.ne.s32.totalorder %s61, %s75
    %p77 = scmp.eq.s32.totalorder %s16, 0
    %p78 = por %p76, %p77
    %s80 = sadd.s32 %s79, 1
    %p83 = scmp.eq.s32.totalorder %s10, 1
    %p84 = scmp.ne.s32.totalorder %s79, %s81
    %p85 = scmp.eq.s32.totalorder %s10, 0
    %p86 = por %p84, %p85
    %p87 = scmp.ne.s32.totalorder %s79, %s81
    %p88 = scmp.eq.s32.totalorder %s15, 1
    %p89 = por %p87, %p88
    %p90 = scmp.ne.s32.totalorder %s81, %s82
    %p91 = scmp.eq.s32.totalorder %s15, 0
    %p92 = por %p90, %p91
    %p93 = scmp.ne.s32.totalorder %s81, %s82
    %p94 = scmp.eq.s32.totalorder %s16, 1
    %p95 = por %p93, %p94
    %p97 = scmp.ne.s32.totalorder %s82, %s96
    %p98 = scmp.eq.s32.totalorder %s16, 0
    %p99 = por %p97, %p98
    %s100 = ssub.s32 %s18, %s25
    %p101 = scmp.eq.s32.totalorder %s100, 0
    %s103 = sadd.s32 %s102, 1
    %s104 = scalar_select %p101, %s102, %s103
    %p107 = pneg %p101
    %p108 = scmp.eq.s32.totalorder %s10, 1
    %p109 = por %p107, %p108
    %p110 = scmp.ne.s32.totalorder %s102, %s105
    %p111 = scmp.eq.s32.totalorder %s10, 0
    %p112 = por %p110, %p111
    %p113 = scmp.ne.s32.totalorder %s102, %s105
    %p114 = scmp.eq.s32.totalorder %s15, 1
    %p115 = por %p113, %p114
    %p116 = scmp.ne.s32.totalorder %s105, %s106
    %p117 = scmp.eq.s32.totalorder %s15, 0
    %p118 = por %p116, %p117
    %p119 = scmp.ne.s32.totalorder %s105, %s106
    %p120 = scmp.eq.s32.totalorder %s16, 1
    %p121 = por %p119, %p120
    %p123 = scmp.ne.s32.totalorder %s106, %s122
    %p124 = scmp.eq.s32.totalorder %s16, 0
    %p125 = por %p123, %p124
    %s126 = ssub.s32 %s17, %s29
    %s127 = ssub.s32 %s18, %s25
    %s128 = sor.u32 %s126, %s127
    %p129 = scmp.eq.s32.totalorder %s128, 0
    %s131 = sadd.s32 %s130, 1
    %s132 = scalar_select %p129, %s130, %s131
    %p135 = pneg %p129
    %p136 = scmp.eq.s32.totalorder %s10, 1
    %p137 = por %p135, %p136
    %p138 = scmp.ne.s32.totalorder %s130, %s133
    %p139 = scmp.eq.s32.totalorder %s10, 0
    %p140 = por %p138, %p139
    %p141 = scmp.ne.s32.totalorder %s130, %s133
    %p142 = scmp.eq.s32.totalorder %s15, 1
    %p143 = por %p141, %p142
    %p144 = scmp.ne.s32.totalorder %s133, %s134
    %p145 = scmp.eq.s32.totalorder %s15, 0
    %p146 = por %p144, %p145
    %p147 = scmp.ne.s32.totalorder %s133, %s134
    %p148 = scmp.eq.s32.totalorder %s16, 1
    %p149 = por %p147, %p148
    %p151 = scmp.ne.s32.totalorder %s134, %s150
    %p152 = scmp.eq.s32.totalorder %s16, 0
    %p153 = por %p151, %p152
    %p154 = scmp.le.s32.totalorder 1, %s10
    %p155 = scmp.lt.s32.totalorder %s10, 3
    %p156 = pnand %p154, %p155
    %p157 = pneg %p156
    // Predicated region
    $region9: #{gpt_decoder_forward.13} parent=5 // pred_check
      _
    $region10: #{gpt_decoder_forward.13} parent=5 // pred_check_branch
      %159 = sbr.rel (%p156) target = $region12
    $region11: #{gpt_decoder_forward.13} parent=5 // pred_region
      %s160 = ssub.s32 %s10, 1
      // Predicated region
      $region13: #{gpt_decoder_forward.13} parent=11 // pred_check
        %p161 = pneg %p71
      $region14: #{gpt_decoder_forward.13} parent=11 // pred_check_branch
        %163 = sbr.rel (%p161) target = $region16
      $region15: #{gpt_decoder_forward.13} parent=11 // pred_region
        _
      $region16: #{gpt_decoder_forward.13} parent=11 // pred_fallthru
        _
      // Predicated region
      $region17: #{gpt_decoder_forward.13} parent=11 // pred_check
        %p164 = pneg %p92
      $region18: #{gpt_decoder_forward.13} parent=11 // pred_check_branch
        %166 = sbr.rel (%p164) target = $region20
      $region19: #{gpt_decoder_forward.13} parent=11 // pred_region
        _
      $region20: #{gpt_decoder_forward.13} parent=11 // pred_fallthru
        _
      // Predicated region
      $region21: #{gpt_decoder_forward.13} parent=11 // pred_check
        %p167 = pneg %p118
      $region22: #{gpt_decoder_forward.13} parent=11 // pred_check_branch
        %169 = sbr.rel (%p167) target = $region24
      $region23: #{gpt_decoder_forward.13} parent=11 // pred_region
        %s170 = smul.u32 3, %s20
        %p171 = scmp.lt.s32.totalorder %s170, 2
        %s172 = scalar_select %p171, %s170, 2
        %s173 = smul.addr %s172, 8
        %s174 = scalar_lea.vmem %s3, %s173
        %s175 = smul.u32 3, %s20
      $region24: #{gpt_decoder_forward.13} parent=11 // pred_fallthru
        _
    $region12: #{gpt_decoder_forward.13} parent=5 // pred_fallthru
      _
    %p176 = scmp.lt.s32.totalorder %s10, 2
    // Predicated region
    $region25: #{gpt_decoder_forward.13} parent=5 // pred_check
      %p177 = pneg %p176
    $region26: #{gpt_decoder_forward.13} parent=5 // pred_check_branch
      %179 = sbr.rel (%p177) target = $region28
    $region27: #{gpt_decoder_forward.13} parent=5 // pred_region
      // Predicated region
      $region29: #{gpt_decoder_forward.13} parent=27 // pred_check
        %p180 = pneg %p44
      $region30: #{gpt_decoder_forward.13} parent=27 // pred_check_branch
        %182 = sbr.rel (%p180) target = $region32
      $region31: #{gpt_decoder_forward.13} parent=27 // pred_region
        %s183 = smul.u32 3, %s18
        %p184 = scmp.lt.s32.totalorder %s17, 1
        %s185 = scalar_select %p184, %s17, 1
        %p186 = scmp.lt.s32.totalorder %s183, 2
        %s187 = scalar_select %p186, %s183, 2
        %s188 = smul.addr %s185, 3
        %s189 = sadd.s32 %s187, %s188
        %s190 = smul.addr %s189, 8
        %s191 = scalar_lea.vmem %s0, %s190
        %s192 = smul.u32 3, %s18
      $region32: #{gpt_decoder_forward.13} parent=27 // pred_fallthru
        _
    $region28: #{gpt_decoder_forward.13} parent=5 // pred_fallthru
      _
    %p193 = scmp.le.s32.totalorder 1, %s10
    %p194 = scmp.lt.s32.totalorder %s10, 3
    %p195 = pnand %p193, %p194
    %p196 = pneg %p195
    // Predicated region
    $region33: #{gpt_decoder_forward.13} parent=5 // pred_check
      _
    $region34: #{gpt_decoder_forward.13} parent=5 // pred_check_branch
      %198 = sbr.rel (%p195) target = $region36
    $region35: #{gpt_decoder_forward.13} parent=5 // pred_region
      %s199 = ssub.s32 %s10, 1
      %s200 = smul.u32 3, %s20
      %p201 = scmp.lt.s32.totalorder %s19, 1
      %s202 = scalar_select %p201, %s19, 1
      %p203 = scmp.lt.s32.totalorder %s200, 2
      %s204 = scalar_select %p203, %s200, 2
      %s205 = smul.addr %s202, 3
      %s206 = sadd.s32 %s204, %s205
      %s207 = smul.addr %s206, 8
      %s208 = scalar_lea.vmem %s0, %s207
      %p209 = pneg %p50
      %p210 = pneg %p47
      %p211 = pneg %p71
      %p212 = pneg %p68
      %p213 = pneg %p92
      %p214 = pneg %p89
      %s215 = smul.u32 3, %s20
      %p216 = scmp.lt.s32.totalorder %s215, 2
      %s217 = scalar_select %p216, %s215, 2
      %s218 = smul.addr %s217, 8
      %s219 = scalar_lea.vmem %s3, %s218
      %p220 = pneg %p118
      %p221 = pneg %p115
      %p222 = pneg %p146
      %p223 = pneg %p143
      %s224 = smul.u32 3, %s20
      %p225 = scmp.lt.s32.totalorder %s19, 1
      %s226 = scalar_select %p225, %s19, 1
      %p227 = scmp.lt.s32.totalorder %s224, 2
      %s228 = scalar_select %p227, %s224, 2
      %s229 = smul.addr %s226, 3
      %s230 = sadd.s32 %s228, %s229
      %s231 = smul.addr %s230, 8
      %s232 = scalar_lea.vmem %s4, %s231
      %s233 = smul.u32 3, %s20
      %p234 = scmp.lt.s32.totalorder %s19, 1
      %s235 = scalar_select %p234, %s19, 1
      %p236 = scmp.lt.s32.totalorder %s233, 2
      %s237 = scalar_select %p236, %s233, 2
      %s238 = smul.addr %s235, 3
      %s239 = sadd.s32 %s237, %s238
      %s240 = smul.addr %s239, 8
      %s241 = scalar_lea.vmem %s0, %s240
      %s242 = smul.u32 3, %s20
      %s243 = smul.u32 3, %s20
      %p244 = scmp.lt.s32.totalorder %s243, 2
      %s245 = scalar_select %p244, %s243, 2
      %s246 = smul.addr %s245, 8
      %s247 = scalar_lea.vmem %s3, %s246
      %s248 = smul.u32 3, %s20
      %s249 = smul.u32 3, %s20
      %p250 = scmp.lt.s32.totalorder %s19, 1
      %s251 = scalar_select %p250, %s19, 1
      %p252 = scmp.lt.s32.totalorder %s249, 2
      %s253 = scalar_select %p252, %s249, 2
      %s254 = smul.addr %s251, 3
      %s255 = sadd.s32 %s253, %s254
      %s256 = smul.addr %s255, 8
      %s257 = scalar_lea.vmem %s4, %s256
      %s258 = smul.u32 3, %s20
      %v259 = vld [vmem:[%s241] sm:$0xff]
      %v260 = vld [vmem:[%s241 + $0x8] sm:$0xff]
      %v261 = vld [vmem:[%s241 + $0x10] sm:$0xff]
      %v262 = vld [vmem:[%s1] sm:$0x1]
      %v263 = vld [vmem:[%s2] sm:$0x1]
      %vm264 = vcmask 261120
      %v265 = vsel %vm264, %v259, 0.0
      %266 = vadd.xlane.f32.xlu0 %v265
      %v267 = vpop.xlane.xlu0 %266
      %v268 = vsel %vm264, %v260, 0.0
      %269 = vadd.xlane.f32.xlu0 %v268
      %v270 = vpop.xlane.xlu0 %269
      %v271 = vsel %vm264, %v261, 0.0
      %272 = vadd.xlane.f32.xlu0 %v271
      %v273 = vpop.xlane.xlu0 %272
      %v274 = vrcp.pop 32.0
      %v275 = vmul.f32 32.0, %v274
      %v276 = vsub.f32 1.0, %v275
      %v277 = vmul.f32 %v274, %v276
      %v278 = vadd.f32 %v274, %v277
      %vm279 = vweird.f32 %v274
      %v280 = vsel %vm279, %v274, %v278
      %v281 = vmul.f32 %v267, %v280
      %v282 = vmul.f32 %v270, %v280
      %v283 = vmul.f32 %v273, %v280
      %v284 = vsub.f32 %v259, %v281
      %v285 = vsub.f32 %v260, %v282
      %v286 = vsub.f32 %v261, %v283
      %v287 = vmul.f32 %v284, %v284
      %v288 = vmul.f32 %v285, %v285
      %v289 = vmul.f32 %v286, %v286
      %v290 = vsel %vm264, %v287, 0.0
      %291 = vadd.xlane.f32.xlu0 %v290
      %v292 = vpop.xlane.xlu0 %291
      %v293 = vsel %vm264, %v288, 0.0
      %294 = vadd.xlane.f32.xlu0 %v293
      %v295 = vpop.xlane.xlu0 %294
      %v296 = vsel %vm264, %v289, 0.0
      %297 = vadd.xlane.f32.xlu0 %v296
      %v298 = vpop.xlane.xlu0 %297
      %v299 = vmul.f32 %v292, %v280
      %v300 = vmul.f32 %v295, %v280
      %v301 = vmul.f32 %v298, %v280
      %v302 = vadd.f32 %v299, 1e-05
      %v303 = vadd.f32 %v300, 1e-05
      %v304 = vadd.f32 %v301, 1e-05
      %v305 = vrsqrt.pop %v302
      %v306 = vmul.f32 %v305, %v302
      %v307 = vmul.f32 %v306, %v305
      %v308 = vmul.f32 0.5, %v307
      %v309 = vsub.f32 1.5, %v308
      %v310 = vmul.f32 %v305, %v309
      %vm311 = vweird.f32 %v302
      %vm312 = vweird.f32 %v305
      %vm313 = vmor %vm311, %vm312
      %v314 = vsel %vm313, %v305, %v310
      %v315 = vrsqrt.pop %v303
      %v316 = vmul.f32 %v315, %v303
      %v317 = vmul.f32 %v316, %v315
      %v318 = vmul.f32 0.5, %v317
      %v319 = vsub.f32 1.5, %v318
      %v320 = vmul.f32 %v315, %v319
      %vm321 = vweird.f32 %v303
      %vm322 = vweird.f32 %v315
      %vm323 = vmor %vm321, %vm322
      %v324 = vsel %vm323, %v315, %v320
      %v325 = vrsqrt.pop %v304
      %v326 = vmul.f32 %v325, %v304
      %v327 = vmul.f32 %v326, %v325
      %v328 = vmul.f32 0.5, %v327
      %v329 = vsub.f32 1.5, %v328
      %v330 = vmul.f32 %v325, %v329
      %vm331 = vweird.f32 %v304
      %vm332 = vweird.f32 %v325
      %vm333 = vmor %vm331, %vm332
      %v334 = vsel %vm333, %v325, %v330
      %v335 = vmul.f32 %v284, %v314
      %v336 = vmul.f32 %v285, %v324
      %v337 = vmul.f32 %v286, %v334
      %v339 = vperm.slane %v262, 0
      %v341 = vmul.f32 %v335, %v339
      %v342 = vmul.f32 %v336, %v339
      %v343 = vmul.f32 %v337, %v339
      %v345 = vperm.slane %v263, 0
      %v347 = vadd.f32 %v341, %v345
      %v348 = vadd.f32 %v342, %v345
      %v349 = vadd.f32 %v343, %v345
      %v350 = vld [vmem:[%s247] sm:$0xff]
      %v351 = vld [vmem:[%s247 + $0x8] sm:$0xff]
      %v352 = vld [vmem:[%s247 + $0x10] sm:$0xff]
      %v353 = vadd.f32 %v347, %v350
      %v354 = vadd.f32 %v348, %v351
      %v355 = vadd.f32 %v349, %v352
      %356 = vst.msk [vmem:[%s257] sm:$0xff] %vm264, %v353
      %357 = vst.msk [vmem:[%s257 + $0x8] sm:$0xff] %vm264, %v354
      %358 = vst.msk [vmem:[%s257 + $0x10] sm:$0xff] %vm264, %v355
      %s359 = smul.u32 3, %s20
      %p360 = scmp.lt.s32.totalorder %s19, 1
      %s361 = scalar_select %p360, %s19, 1
      %p362 = scmp.lt.s32.totalorder %s359, 2
      %s363 = scalar_select %p362, %s359, 2
      %s364 = smul.addr %s361, 3
      %s365 = sadd.s32 %s363, %s364
      %s366 = smul.addr %s365, 8
      %s367 = scalar_lea.vmem %s4, %s366
      // Predicated region
      $region37: #{gpt_decoder_forward.13} parent=35 // pred_check
        %p368 = pneg %p143
      $region38: #{gpt_decoder_forward.13} parent=35 // pred_check_branch
        %370 = sbr.rel (%p368) target = $region40
      $region39: #{gpt_decoder_forward.13} parent=35 // pred_region
        %s371 = smul.u32 3, %s20
      $region40: #{gpt_decoder_forward.13} parent=35 // pred_fallthru
        _
    $region36: #{gpt_decoder_forward.13} parent=5 // pred_fallthru
      _
    %p372 = scmp.le.s32.totalorder 2, %s10
    // Predicated region
    $region41: #{gpt_decoder_forward.13} parent=5 // pred_check
      %p373 = pneg %p372
    $region42: #{gpt_decoder_forward.13} parent=5 // pred_check_branch
      %375 = sbr.rel (%p373) target = $region44
    $region43: #{gpt_decoder_forward.13} parent=5 // pred_region
      %s376 = ssub.s32 %s10, 2
      // Predicated region
      $region45: #{gpt_decoder_forward.13} parent=43 // pred_check
        %p377 = pneg %p149
      $region46: #{gpt_decoder_forward.13} parent=43 // pred_check_branch
        %379 = sbr.rel (%p377) target = $region48
      $region47: #{gpt_decoder_forward.13} parent=43 // pred_region
        %s380 = smul.u32 3, %s22
        %p381 = scmp.lt.s32.totalorder %s21, 1
        %s382 = scalar_select %p381, %s21, 1
        %p383 = scmp.lt.s32.totalorder %s380, 2
        %s384 = scalar_select %p383, %s380, 2
        %s385 = smul.addr %s382, 3
        %s386 = sadd.s32 %s384, %s385
        %s387 = smul.addr %s386, 8
        %s388 = scalar_lea.vmem %s4, %s387
      $region48: #{gpt_decoder_forward.13} parent=43 // pred_fallthru
        _
    $region44: #{gpt_decoder_forward.13} parent=5 // pred_fallthru
      _
  $region6: #{gpt_decoder_forward.13} parent=0 // loop_footer
    %s14 = sadd.s32 1, %s10
  $region7: #{gpt_decoder_forward.13} parent=0 // loop_footer_branch
    %9 = sbr.rel target = $region3
  $region8: #{gpt_decoder_forward.13} parent=0 // loop_exit
    _

// kernel: gpt_decoder_forward.16
$region0: #{gpt_decoder_forward.16}
  #allocation0 [shape = 'u32[]', space=smem, size = 0x4, offset = 0x4, fixed_abs, tag = 'smem constant byte address 0x4 - core index']
  #allocation1 [shape = 'u32[72,128]{1,0:T(1,128)}', space=vmem, size = 0x9000, scoped, tag = 'internal scratch']
  %s0 = inlined_call_operand.vmem [shape: f32[48,32], index: 0, kind: input, shape index: {}]
  %s1 = inlined_call_operand.vmem [shape: bf16[32,32], index: 1, kind: input, shape index: {}]
  %s2 = inlined_call_operand.vmem [shape: f32[1,32], index: 2, kind: input, shape index: {}]
  %s3 = inlined_call_operand.vmem [shape: f32[48,32], index: 3, kind: input, shape index: {}]
  %s4 = inlined_call_operand.vmem [shape: f32[48,32], index: 4, kind: output, shape index: {}]
  %s5 = sld [smem:[#allocation0]]
  $region26: #{gpt_decoder_forward.16} parent=0
    _
  %s7 = ssub.s32 1, %s5
  %s8 = scalar_select 0, %s7, %s5
  // Predicated region
  $region2: #{gpt_decoder_forward.16} parent=0 // pred_check
    _
  $region3: #{gpt_decoder_forward.16} parent=0 // pred_check_branch
    %10 = sbr.rel (0) target = $region5
  $region4: #{gpt_decoder_forward.16} parent=0 // pred_region
    _
  $region5: #{gpt_decoder_forward.16} parent=0 // pred_fallthru
    _
  // Predicated region
  $region6: #{gpt_decoder_forward.16} parent=0 // pred_check
    _
  $region7: #{gpt_decoder_forward.16} parent=0 // pred_check_branch
    %12 = sbr.rel (0) target = $region9
  $region8: #{gpt_decoder_forward.16} parent=0 // pred_region
    _
  $region9: #{gpt_decoder_forward.16} parent=0 // pred_fallthru
    _
  // Predicated region
  $region10: #{gpt_decoder_forward.16} parent=0 // pred_check
    _
  $region11: #{gpt_decoder_forward.16} parent=0 // pred_check_branch
    %14 = sbr.rel (0) target = $region13
  $region12: #{gpt_decoder_forward.16} parent=0 // pred_region
    _
  $region13: #{gpt_decoder_forward.16} parent=0 // pred_fallthru
    _
  // Predicated region
  $region14: #{gpt_decoder_forward.16} parent=0 // pred_check
    _
  $region15: #{gpt_decoder_forward.16} parent=0 // pred_check_branch
    %16 = sbr.rel (0) target = $region17
  $region16: #{gpt_decoder_forward.16} parent=0 // pred_region
    _
  $region17: #{gpt_decoder_forward.16} parent=0 // pred_fallthru
    _
  %v18 = vld [vmem:[%s0] sm:$0xff]
  %v19 = vld [vmem:[%s0 + $0x8] sm:$0xff]
  %v20 = vld [vmem:[%s0 + $0x10] sm:$0xff]
  %v21 = vld [vmem:[%s0 + $0x18] sm:$0xff]
  %v22 = vld [vmem:[%s0 + $0x20] sm:$0xff]
  %v23 = vld [vmem:[%s0 + $0x28] sm:$0xff]
  %v24 = vpack.c.bf16 %v19, %v18
  %v25 = vpack.c.bf16 %v21, %v20
  %v26 = vpack.c.bf16 %v23, %v22
  %v27 = vld [vmem:[%s1] sm:$0xf]
  %v28 = vld [vmem:[%s1 + $0x4] sm:$0xf]
  %v29 = vld [vmem:[%s1 + $0x8] sm:$0xf]
  %v30 = vld [vmem:[%s1 + $0xc] sm:$0xf]
  %v31 = vld [vmem:[%s2] sm:$0x1]
  %v33 = vperm.slane %v31, 0
  %v39 = vunpack.c.l.b16 %v27
  %v40 = vunpack.c.l.b16 %v28
  %v41 = vunpack.c.l.b16 %v29
  %v42 = vunpack.c.l.b16 %v30
  %v43 = vpack.c.b16 %v40, %v39
  %v44 = vpack.c.b16 %v42, %v41
  %vm47 = vcmask 261120
  %v49 = vsel %vm47, %v24, 0
  %v52 = vsel %vm47, %v25, 0
  %v55 = vsel %vm47, %v26, 0
  %57 = vmatpush.bf16.msra.mxu0 0
  %58 = vmatpush.bf16.msra.mxu0 0
  %59 = vmatpush.bf16.msra.mxu0 0
  %60 = vmatpush.bf16.msra.mxu0 0
  %61 = vmatpush.bf16.msra.mxu0 0
  %62 = vmatpush.bf16.msra.mxu0 0
  %63 = vmatpush.bf16.msra.mxu0 %v44
  %64 = vmatpush.bf16.msra.mxu0 %v43
  %65 = vmatmul.bf16.gmra.mxu0 %v49
  %v66 = vpop.f32.mrf.mxu0
  %v67 = vadd.f32 %v33, %v66
  %v68 = vpop.f32.mrf.mxu0
  %v69 = vadd.f32 %v33, %v68
  %70 = vmatmul.bf16.gmra.mxu0 %v52
  %v71 = vpop.f32.mrf.mxu0
  %v72 = vadd.f32 %v33, %v71
  %v73 = vpop.f32.mrf.mxu0
  %v74 = vadd.f32 %v33, %v73
  %75 = vmatmul.bf16.gmra.mxu0 %v55
  %v76 = vpop.f32.mrf.mxu0
  %v77 = vadd.f32 %v33, %v76
  %v78 = vpop.f32.mrf.mxu0
  %v79 = vadd.f32 %v33, %v78
  %80 = vdwg.mxu0
  %v81 = vld [vmem:[%s3] sm:$0xff]
  %v82 = vld [vmem:[%s3 + $0x8] sm:$0xff]
  %v83 = vld [vmem:[%s3 + $0x10] sm:$0xff]
  %v84 = vld [vmem:[%s3 + $0x18] sm:$0xff]
  %v85 = vld [vmem:[%s3 + $0x20] sm:$0xff]
  %v86 = vld [vmem:[%s3 + $0x28] sm:$0xff]
  %v87 = vadd.f32 %v67, %v81
  %v88 = vadd.f32 %v69, %v82
  %v89 = vadd.f32 %v72, %v83
  %v90 = vadd.f32 %v74, %v84
  %v91 = vadd.f32 %v77, %v85
  %v92 = vadd.f32 %v79, %v86
  %93 = vst.msk [vmem:[%s4] sm:$0xff] %vm47, %v87
  %94 = vst.msk [vmem:[%s4 + $0x8] sm:$0xff] %vm47, %v88
  %95 = vst.msk [vmem:[%s4 + $0x10] sm:$0xff] %vm47, %v89
  %96 = vst.msk [vmem:[%s4 + $0x18] sm:$0xff] %vm47, %v90
  %97 = vst.msk [vmem:[%s4 + $0x20] sm:$0xff] %vm47, %v91
  %98 = vst.msk [vmem:[%s4 + $0x28] sm:$0xff] %vm47, %v92
  // Predicated region
  $region18: #{gpt_decoder_forward.16} parent=0 // pred_check
    _
  $region19: #{gpt_decoder_forward.16} parent=0 // pred_check_branch
    %100 = sbr.rel (0) target = $region21
  $region20: #{gpt_decoder_forward.16} parent=0 // pred_region
    _
  $region21: #{gpt_decoder_forward.16} parent=0 // pred_fallthru
    _
  // Predicated region
  $region22: #{gpt_decoder_forward.16} parent=0 // pred_check
    _
  $region23: #{gpt_decoder_forward.16} parent=0 // pred_check_branch
    %102 = sbr.rel (0) target = $region25
  $region24: #{gpt_decoder_forward.16} parent=0 // pred_region
    _
  $region25: #{gpt_decoder_forward.16} parent=0 // pred_fallthru
    _

// kernel: gpt_decoder_forward.22
$region0: #{gpt_decoder_forward.22}
  #allocation0 [shape = 'u32[]', space=smem, size = 0x4, offset = 0x4, fixed_abs, tag = 'smem constant byte address 0x4 - core index']
  #allocation1 [shape = 'u32[72,128]{1,0:T(1,128)}', space=vmem, size = 0x9000, scoped, tag = 'internal scratch']
  %s0 = inlined_call_operand.vmem [shape: f32[16,32], index: 0, kind: input, shape index: {}]
  %s1 = inlined_call_operand.vmem [shape: f32[1,32], index: 1, kind: input, shape index: {}]
  %s2 = inlined_call_operand.vmem [shape: f32[1,32], index: 2, kind: input, shape index: {}]
  %s3 = inlined_call_operand.vmem [shape: bf16[32,7], index: 3, kind: input, shape index: {}]
  %s4 = inlined_call_operand.vmem [shape: f32[1,7], index: 4, kind: input, shape index: {}]
  %s5 = inlined_call_operand.vmem [shape: f32[16,7], index: 5, kind: output, shape index: {}]
  %s6 = sld [smem:[#allocation0]]
  $region30: #{gpt_decoder_forward.22} parent=0
    _
  %s8 = ssub.s32 1, %s6
  %s9 = scalar_select 0, %s8, %s6
  // Predicated region
  $region2: #{gpt_decoder_forward.22} parent=0 // pred_check
    _
  $region3: #{gpt_decoder_forward.22} parent=0 // pred_check_branch
    %11 = sbr.rel (0) target = $region5
  $region4: #{gpt_decoder_forward.22} parent=0 // pred_region
    _
  $region5: #{gpt_decoder_forward.22} parent=0 // pred_fallthru
    _
  // Predicated region
  $region6: #{gpt_decoder_forward.22} parent=0 // pred_check
    _
  $region7: #{gpt_decoder_forward.22} parent=0 // pred_check_branch
    %13 = sbr.rel (0) target = $region9
  $region8: #{gpt_decoder_forward.22} parent=0 // pred_region
    _
  $region9: #{gpt_decoder_forward.22} parent=0 // pred_fallthru
    _
  // Predicated region
  $region10: #{gpt_decoder_forward.22} parent=0 // pred_check
    _
  $region11: #{gpt_decoder_forward.22} parent=0 // pred_check_branch
    %15 = sbr.rel (0) target = $region13
  $region12: #{gpt_decoder_forward.22} parent=0 // pred_region
    _
  $region13: #{gpt_decoder_forward.22} parent=0 // pred_fallthru
    _
  // Predicated region
  $region14: #{gpt_decoder_forward.22} parent=0 // pred_check
    _
  $region15: #{gpt_decoder_forward.22} parent=0 // pred_check_branch
    %17 = sbr.rel (0) target = $region17
  $region16: #{gpt_decoder_forward.22} parent=0 // pred_region
    _
  $region17: #{gpt_decoder_forward.22} parent=0 // pred_fallthru
    _
  // Predicated region
  $region18: #{gpt_decoder_forward.22} parent=0 // pred_check
    _
  $region19: #{gpt_decoder_forward.22} parent=0 // pred_check_branch
    %19 = sbr.rel (0) target = $region21
  $region20: #{gpt_decoder_forward.22} parent=0 // pred_region
    _
  $region21: #{gpt_decoder_forward.22} parent=0 // pred_fallthru
    _
  %v21 = vld [vmem:[%s0] sm:$0xff]
  %v22 = vld [vmem:[%s0 + $0x8] sm:$0xff]
  %v23 = vld [vmem:[%s1] sm:$0x1]
  %v24 = vld [vmem:[%s2] sm:$0x1]
  %vm25 = vcmask 261120
  %v26 = vsel %vm25, %v21, 0.0
  %27 = vadd.xlane.f32.xlu0 %v26
  %v28 = vpop.xlane.xlu0 %27
  %v29 = vsel %vm25, %v22, 0.0
  %30 = vadd.xlane.f32.xlu0 %v29
  %v31 = vpop.xlane.xlu0 %30
  %v32 = vrcp.pop 32.0
  %v33 = vmul.f32 32.0, %v32
  %v34 = vsub.f32 1.0, %v33
  %v35 = vmul.f32 %v32, %v34
  %v36 = vadd.f32 %v32, %v35
  %vm37 = vweird.f32 %v32
  %v38 = vsel %vm37, %v32, %v36
  %v39 = vmul.f32 %v28, %v38
  %v40 = vmul.f32 %v31, %v38
  %v41 = vsub.f32 %v21, %v39
  %v42 = vsub.f32 %v22, %v40
  %v43 = vmul.f32 %v41, %v41
  %v44 = vmul.f32 %v42, %v42
  %v45 = vsel %vm25, %v43, 0.0
  %46 = vadd.xlane.f32.xlu0 %v45
  %v47 = vpop.xlane.xlu0 %46
  %v48 = vsel %vm25, %v44, 0.0
  %49 = vadd.xlane.f32.xlu0 %v48
  %v50 = vpop.xlane.xlu0 %49
  %v51 = vmul.f32 %v47, %v38
  %v52 = vmul.f32 %v50, %v38
  %v53 = vadd.f32 %v51, 1e-05
  %v54 = vadd.f32 %v52, 1e-05
  %v55 = vrsqrt.pop %v53
  %v56 = vmul.f32 %v55, %v53
  %v57 = vmul.f32 %v56, %v55
  %v58 = vmul.f32 0.5, %v57
  %v59 = vsub.f32 1.5, %v58
  %v60 = vmul.f32 %v55, %v59
  %vm61 = vweird.f32 %v53
  %vm62 = vweird.f32 %v55
  %vm63 = vmor %vm61, %vm62
  %v64 = vsel %vm63, %v55, %v60
  %v65 = vrsqrt.pop %v54
  %v66 = vmul.f32 %v65, %v54
  %v67 = vmul.f32 %v66, %v65
  %v68 = vmul.f32 0.5, %v67
  %v69 = vsub.f32 1.5, %v68
  %v70 = vmul.f32 %v65, %v69
  %vm71 = vweird.f32 %v54
  %vm72 = vweird.f32 %v65
  %vm73 = vmor %vm71, %vm72
  %v74 = vsel %vm73, %v65, %v70
  %v75 = vmul.f32 %v41, %v64
  %v76 = vmul.f32 %v42, %v74
  %v78 = vperm.slane %v23, 0
  %v80 = vmul.f32 %v75, %v78
  %v81 = vmul.f32 %v76, %v78
  %v83 = vperm.slane %v24, 0
  %v85 = vadd.f32 %v80, %v83
  %v86 = vadd.f32 %v81, %v83
  %v87 = vpack.c.bf16 %v86, %v85
  %v88 = vld [vmem:[%s3] sm:$0xf]
  %v89 = vld [vmem:[%s3 + $0x4] sm:$0xf]
  %v90 = vld [vmem:[%s3 + $0x8] sm:$0xf]
  %v91 = vld [vmem:[%s3 + $0xc] sm:$0xf]
  %v92 = vld [vmem:[%s4] sm:$0x1]
  %v94 = vperm.slane %v92, 0
  %v100 = vunpack.c.l.b16 %v88
  %v101 = vunpack.c.l.b16 %v89
  %v102 = vunpack.c.l.b16 %v90
  %v103 = vunpack.c.l.b16 %v91
  %v104 = vpack.c.b16 %v101, %v100
  %v105 = vpack.c.b16 %v103, %v102
  %v109 = vsel %vm25, %v87, 0
  %111 = vmatpush.bf16.msra.mxu0 0
  %112 = vmatpush.bf16.msra.mxu0 0
  %113 = vmatpush.bf16.msra.mxu0 0
  %114 = vmatpush.bf16.msra.mxu0 0
  %115 = vmatpush.bf16.msra.mxu0 0
  %116 = vmatpush.bf16.msra.mxu0 0
  %117 = vmatpush.bf16.msra.mxu0 %v105
  %118 = vmatpush.bf16.msra.mxu0 %v104
  %119 = vmatmul.bf16.gmra.mxu0 %v109
  %v120 = vpop.f32.mrf.mxu0
  %v121 = vadd.f32 %v94, %v120
  %v122 = vpop.f32.mrf.mxu0
  %v123 = vadd.f32 %v94, %v122
  %124 = vdwg.mxu0
  %vm125 = vcmask 56320
  %126 = vst.msk [vmem:[%s5] sm:$0xff] %vm125, %v121
  %127 = vst.msk [vmem:[%s5 + $0x8] sm:$0xff] %vm125, %v123
  // Predicated region
  $region22: #{gpt_decoder_forward.22} parent=0 // pred_check
    _
  $region23: #{gpt_decoder_forward.22} parent=0 // pred_check_branch
    %129 = sbr.rel (0) target = $region25
  $region24: #{gpt_decoder_forward.22} parent=0 // pred_region
    _
  $region25: #{gpt_decoder_forward.22} parent=0 // pred_fallthru
    _
  // Predicated region
  $region26: #{gpt_decoder_forward.22} parent=0 // pred_check
    _
  $region27: #{gpt_decoder_forward.22} parent=0 // pred_check_branch
    %131 = sbr.rel (0) target = $region29
  $region28: #{gpt_decoder_forward.22} parent=0 // pred_region
    _
  $region29: #{gpt_decoder_forward.22} parent=0 // pred_fallthru
    _

// kernel: gpt_decoder_forward.17
$region0: #{gpt_decoder_forward.17}
  #allocation0 [shape = 'u32[]', space=smem, size = 0x4, offset = 0x4, fixed_abs, tag = 'smem constant byte address 0x4 - core index']
  #allocation1 [shape = 'u32[72,128]{1,0:T(1,128)}', space=vmem, size = 0x9000, scoped, tag = 'internal scratch']
  #allocation2 [shape = 'f32[48,32]{1,0:T(8,128)}', space=vmem, size = 0x6000, scoped, tag = 'scratch operand']
  #allocation3 [shape = 'f32[48,32]{1,0:T(8,128)}', space=vmem, size = 0x6000, scoped, tag = 'scratch operand']
  %s0 = inlined_call_operand.vmem [shape: f32[48,32], index: 0, kind: input, shape index: {}, may-alias: {0,7}]
  %s1 = inlined_call_operand.vmem [shape: f32[1,32], index: 1, kind: input, shape index: {}]
  %s2 = inlined_call_operand.vmem [shape: f32[1,32], index: 2, kind: input, shape index: {}]
  %s3 = inlined_call_operand.vmem [shape: bf16[32,128], index: 3, kind: input, shape index: {}]
  %s4 = inlined_call_operand.vmem [shape: f32[1,128], index: 4, kind: input, shape index: {}]
  %s5 = inlined_call_operand.vmem [shape: bf16[128,32], index: 5, kind: input, shape index: {}]
  %s6 = inlined_call_operand.vmem [shape: f32[1,32], index: 6, kind: input, shape index: {}]
  %s7 = inlined_call_operand.vmem [shape: f32[48,32], index: 7, kind: input, shape index: {}, may-alias: {0,7}]
  %s8 = inlined_call_operand.vmem [shape: f32[48,32], index: 8, kind: output, shape index: {}]
  %s9 = sld [smem:[#allocation0]]
  $region50: #{gpt_decoder_forward.17} parent=0
    _
  %s11 = ssub.s32 1, %s9
  %s12 = scalar_select 0, %s11, %s9
  // Predicated region
  $region2: #{gpt_decoder_forward.17} parent=0 // pred_check
    _
  $region3: #{gpt_decoder_forward.17} parent=0 // pred_check_branch
    %14 = sbr.rel (0) target = $region5
  $region4: #{gpt_decoder_forward.17} parent=0 // pred_region
    _
  $region5: #{gpt_decoder_forward.17} parent=0 // pred_fallthru
    _
  // Predicated region
  $region6: #{gpt_decoder_forward.17} parent=0 // pred_check
    _
  $region7: #{gpt_decoder_forward.17} parent=0 // pred_check_branch
    %16 = sbr.rel (0) target = $region9
  $region8: #{gpt_decoder_forward.17} parent=0 // pred_region
    _
  $region9: #{gpt_decoder_forward.17} parent=0 // pred_fallthru
    _
  // Predicated region
  $region10: #{gpt_decoder_forward.17} parent=0 // pred_check
    _
  $region11: #{gpt_decoder_forward.17} parent=0 // pred_check_branch
    %18 = sbr.rel (0) target = $region13
  $region12: #{gpt_decoder_forward.17} parent=0 // pred_region
    _
  $region13: #{gpt_decoder_forward.17} parent=0 // pred_fallthru
    _
  // Predicated region
  $region14: #{gpt_decoder_forward.17} parent=0 // pred_check
    _
  $region15: #{gpt_decoder_forward.17} parent=0 // pred_check_branch
    %20 = sbr.rel (0) target = $region17
  $region16: #{gpt_decoder_forward.17} parent=0 // pred_region
    _
  $region17: #{gpt_decoder_forward.17} parent=0 // pred_fallthru
    _
  // Predicated region
  $region18: #{gpt_decoder_forward.17} parent=0 // pred_check
    _
  $region19: #{gpt_decoder_forward.17} parent=0 // pred_check_branch
    %22 = sbr.rel (0) target = $region21
  $region20: #{gpt_decoder_forward.17} parent=0 // pred_region
    _
  $region21: #{gpt_decoder_forward.17} parent=0 // pred_fallthru
    _
  // Predicated region
  $region22: #{gpt_decoder_forward.17} parent=0 // pred_check
    _
  $region23: #{gpt_decoder_forward.17} parent=0 // pred_check_branch
    %24 = sbr.rel (0) target = $region25
  $region24: #{gpt_decoder_forward.17} parent=0 // pred_region
    _
  $region25: #{gpt_decoder_forward.17} parent=0 // pred_fallthru
    _
  // Predicated region
  $region26: #{gpt_decoder_forward.17} parent=0 // pred_check
    _
  $region27: #{gpt_decoder_forward.17} parent=0 // pred_check_branch
    %26 = sbr.rel (0) target = $region29
  $region28: #{gpt_decoder_forward.17} parent=0 // pred_region
    _
  $region29: #{gpt_decoder_forward.17} parent=0 // pred_fallthru
    _
  // Predicated region
  $region30: #{gpt_decoder_forward.17} parent=0 // pred_check
    _
  $region31: #{gpt_decoder_forward.17} parent=0 // pred_check_branch
    %28 = sbr.rel (0) target = $region33
  $region32: #{gpt_decoder_forward.17} parent=0 // pred_region
    _
  $region33: #{gpt_decoder_forward.17} parent=0 // pred_fallthru
    _
  %p30 = scmp.eq.s32.totalorder 0, 0
  // Predicated region
  $region34: #{gpt_decoder_forward.17} parent=0 // pred_check
    %p31 = pneg %p30
  $region35: #{gpt_decoder_forward.17} parent=0 // pred_check_branch
    %33 = sbr.rel (%p31) target = $region37
  $region36: #{gpt_decoder_forward.17} parent=0 // pred_region
    %v34 = vld [vmem:[%s0] sm:$0xff]
    %v35 = vld [vmem:[%s0 + $0x8] sm:$0xff]
    %v36 = vld [vmem:[%s0 + $0x10] sm:$0xff]
    %v37 = vld [vmem:[%s0 + $0x18] sm:$0xff]
    %v38 = vld [vmem:[%s0 + $0x20] sm:$0xff]
    %v39 = vld [vmem:[%s0 + $0x28] sm:$0xff]
    %v40 = vld [vmem:[%s1] sm:$0x1]
    %v41 = vld [vmem:[%s2] sm:$0x1]
    %vm42 = vcmask 261120
    %v43 = vsel %vm42, %v34, 0.0
    %44 = vadd.xlane.f32.xlu0 %v43
    %v45 = vpop.xlane.xlu0 %44
    %v46 = vsel %vm42, %v35, 0.0
    %47 = vadd.xlane.f32.xlu0 %v46
    %v48 = vpop.xlane.xlu0 %47
    %v49 = vsel %vm42, %v36, 0.0
    %50 = vadd.xlane.f32.xlu0 %v49
    %v51 = vpop.xlane.xlu0 %50
    %v52 = vsel %vm42, %v37, 0.0
    %53 = vadd.xlane.f32.xlu0 %v52
    %v54 = vpop.xlane.xlu0 %53
    %v55 = vsel %vm42, %v38, 0.0
    %56 = vadd.xlane.f32.xlu0 %v55
    %v57 = vpop.xlane.xlu0 %56
    %v58 = vsel %vm42, %v39, 0.0
    %59 = vadd.xlane.f32.xlu0 %v58
    %v60 = vpop.xlane.xlu0 %59
    %v61 = vrcp.pop 32.0
    %v62 = vmul.f32 32.0, %v61
    %v63 = vsub.f32 1.0, %v62
    %v64 = vmul.f32 %v61, %v63
    %v65 = vadd.f32 %v61, %v64
    %vm66 = vweird.f32 %v61
    %v67 = vsel %vm66, %v61, %v65
    %v68 = vmul.f32 %v45, %v67
    %v69 = vmul.f32 %v48, %v67
    %v70 = vmul.f32 %v51, %v67
    %v71 = vmul.f32 %v54, %v67
    %v72 = vmul.f32 %v57, %v67
    %v73 = vmul.f32 %v60, %v67
    %v74 = vsub.f32 %v34, %v68
    %v75 = vsub.f32 %v35, %v69
    %v76 = vsub.f32 %v36, %v70
    %v77 = vsub.f32 %v37, %v71
    %v78 = vsub.f32 %v38, %v72
    %v79 = vsub.f32 %v39, %v73
    %v80 = vmul.f32 %v74, %v74
    %v81 = vmul.f32 %v75, %v75
    %v82 = vmul.f32 %v76, %v76
    %v83 = vmul.f32 %v77, %v77
    %v84 = vmul.f32 %v78, %v78
    %v85 = vmul.f32 %v79, %v79
    %v86 = vsel %vm42, %v80, 0.0
    %87 = vadd.xlane.f32.xlu0 %v86
    %v88 = vpop.xlane.xlu0 %87
    %v89 = vsel %vm42, %v81, 0.0
    %90 = vadd.xlane.f32.xlu0 %v89
    %v91 = vpop.xlane.xlu0 %90
    %v92 = vsel %vm42, %v82, 0.0
    %93 = vadd.xlane.f32.xlu0 %v92
    %v94 = vpop.xlane.xlu0 %93
    %v95 = vsel %vm42, %v83, 0.0
    %96 = vadd.xlane.f32.xlu0 %v95
    %v97 = vpop.xlane.xlu0 %96
    %v98 = vsel %vm42, %v84, 0.0
    %99 = vadd.xlane.f32.xlu0 %v98
    %v100 = vpop.xlane.xlu0 %99
    %v101 = vsel %vm42, %v85, 0.0
    %102 = vadd.xlane.f32.xlu0 %v101
    %v103 = vpop.xlane.xlu0 %102
    %v104 = vmul.f32 %v88, %v67
    %v105 = vmul.f32 %v91, %v67
    %v106 = vmul.f32 %v94, %v67
    %v107 = vmul.f32 %v97, %v67
    %v108 = vmul.f32 %v100, %v67
    %v109 = vmul.f32 %v103, %v67
    %v110 = vadd.f32 %v104, 1e-05
    %v111 = vadd.f32 %v105, 1e-05
    %v112 = vadd.f32 %v106, 1e-05
    %v113 = vadd.f32 %v107, 1e-05
    %v114 = vadd.f32 %v108, 1e-05
    %v115 = vadd.f32 %v109, 1e-05
    %v116 = vrsqrt.pop %v110
    %v117 = vmul.f32 %v116, %v110
    %v118 = vmul.f32 %v117, %v116
    %v119 = vmul.f32 0.5, %v118
    %v120 = vsub.f32 1.5, %v119
    %v121 = vmul.f32 %v116, %v120
    %vm122 = vweird.f32 %v110
    %vm123 = vweird.f32 %v116
    %vm124 = vmor %vm122, %vm123
    %v125 = vsel %vm124, %v116, %v121
    %v126 = vrsqrt.pop %v111
    %v127 = vmul.f32 %v126, %v111
    %v128 = vmul.f32 %v127, %v126
    %v129 = vmul.f32 0.5, %v128
    %v130 = vsub.f32 1.5, %v129
    %v131 = vmul.f32 %v126, %v130
    %vm132 = vweird.f32 %v111
    %vm133 = vweird.f32 %v126
    %vm134 = vmor %vm132, %vm133
    %v135 = vsel %vm134, %v126, %v131
    %v136 = vrsqrt.pop %v112
    %v137 = vmul.f32 %v136, %v112
    %v138 = vmul.f32 %v137, %v136
    %v139 = vmul.f32 0.5, %v138
    %v140 = vsub.f32 1.5, %v139
    %v141 = vmul.f32 %v136, %v140
    %vm142 = vweird.f32 %v112
    %vm143 = vweird.f32 %v136
    %vm144 = vmor %vm142, %vm143
    %v145 = vsel %vm144, %v136, %v141
    %v146 = vrsqrt.pop %v113
    %v147 = vmul.f32 %v146, %v113
    %v148 = vmul.f32 %v147, %v146
    %v149 = vmul.f32 0.5, %v148
    %v150 = vsub.f32 1.5, %v149
    %v151 = vmul.f32 %v146, %v150
    %vm152 = vweird.f32 %v113
    %vm153 = vweird.f32 %v146
    %vm154 = vmor %vm152, %vm153
    %v155 = vsel %vm154, %v146, %v151
    %v156 = vrsqrt.pop %v114
    %v157 = vmul.f32 %v156, %v114
    %v158 = vmul.f32 %v157, %v156
    %v159 = vmul.f32 0.5, %v158
    %v160 = vsub.f32 1.5, %v159
    %v161 = vmul.f32 %v156, %v160
    %vm162 = vweird.f32 %v114
    %vm163 = vweird.f32 %v156
    %vm164 = vmor %vm162, %vm163
    %v165 = vsel %vm164, %v156, %v161
    %v166 = vrsqrt.pop %v115
    %v167 = vmul.f32 %v166, %v115
    %v168 = vmul.f32 %v167, %v166
    %v169 = vmul.f32 0.5, %v168
    %v170 = vsub.f32 1.5, %v169
    %v171 = vmul.f32 %v166, %v170
    %vm172 = vweird.f32 %v115
    %vm173 = vweird.f32 %v166
    %vm174 = vmor %vm172, %vm173
    %v175 = vsel %vm174, %v166, %v171
    %v176 = vmul.f32 %v74, %v125
    %v177 = vmul.f32 %v75, %v135
    %v178 = vmul.f32 %v76, %v145
    %v179 = vmul.f32 %v77, %v155
    %v180 = vmul.f32 %v78, %v165
    %v181 = vmul.f32 %v79, %v175
    %v183 = vperm.slane %v40, 0
    %v185 = vmul.f32 %v176, %v183
    %v186 = vmul.f32 %v177, %v183
    %v187 = vmul.f32 %v178, %v183
    %v188 = vmul.f32 %v179, %v183
    %v189 = vmul.f32 %v180, %v183
    %v190 = vmul.f32 %v181, %v183
    %v192 = vperm.slane %v41, 0
    %v194 = vadd.f32 %v185, %v192
    %v195 = vadd.f32 %v186, %v192
    %v196 = vadd.f32 %v187, %v192
    %v197 = vadd.f32 %v188, %v192
    %v198 = vadd.f32 %v189, %v192
    %v199 = vadd.f32 %v190, %v192
    %200 = vst.msk [vmem:[#allocation2] sm:$0xff] %vm42, %v194
    %201 = vst.msk [vmem:[#allocation2 + $0x8] sm:$0xff] %vm42, %v195
    %202 = vst.msk [vmem:[#allocation2 + $0x10] sm:$0xff] %vm42, %v196
    %203 = vst.msk [vmem:[#allocation2 + $0x18] sm:$0xff] %vm42, %v197
    %204 = vst.msk [vmem:[#allocation2 + $0x20] sm:$0xff] %vm42, %v198
    %205 = vst.msk [vmem:[#allocation2 + $0x28] sm:$0xff] %vm42, %v199
    %206 = vst.msk [vmem:[#allocation3] sm:$0xff] %vm42, 0.0
    %207 = vst.msk [vmem:[#allocation3 + $0x8] sm:$0xff] %vm42, 0.0
    %208 = vst.msk [vmem:[#allocation3 + $0x10] sm:$0xff] %vm42, 0.0
    %209 = vst.msk [vmem:[#allocation3 + $0x18] sm:$0xff] %vm42, 0.0
    %210 = vst.msk [vmem:[#allocation3 + $0x20] sm:$0xff] %vm42, 0.0
    %211 = vst.msk [vmem:[#allocation3 + $0x28] sm:$0xff] %vm42, 0.0
  $region37: #{gpt_decoder_forward.17} parent=0 // pred_fallthru
    _
  %v212 = vld [vmem:[#allocation2] sm:$0xff]
  %v213 = vld [vmem:[#allocation2 + $0x8] sm:$0xff]
  %v214 = vld [vmem:[#allocation2 + $0x10] sm:$0xff]
  %v215 = vld [vmem:[#allocation2 + $0x18] sm:$0xff]
  %v216 = vld [vmem:[#allocation2 + $0x20] sm:$0xff]
  %v217 = vld [vmem:[#allocation2 + $0x28] sm:$0xff]
  %v218 = vpack.c.bf16 %v213, %v212
  %v219 = vpack.c.bf16 %v215, %v214
  %v220 = vpack.c.bf16 %v217, %v216
  %v221 = vld [vmem:[%s3] sm:$0xf]
  %v222 = vld [vmem:[%s3 + $0x4] sm:$0xf]
  %v223 = vld [vmem:[%s3 + $0x8] sm:$0xf]
  %v224 = vld [vmem:[%s3 + $0xc] sm:$0xf]
  %v225 = vld [vmem:[%s4] sm:$0x1]
  %v227 = vperm.slane %v225, 0
  %v233 = vunpack.c.l.b16 %v221
  %v234 = vunpack.c.l.b16 %v222
  %v235 = vunpack.c.l.b16 %v223
  %v236 = vunpack.c.l.b16 %v224
  %v237 = vpack.c.b16 %v234, %v233
  %v238 = vpack.c.b16 %v236, %v235
  %vm241 = vcmask 261120
  %v243 = vsel %vm241, %v218, 0
  %v246 = vsel %vm241, %v219, 0
  %v249 = vsel %vm241, %v220, 0
  %251 = vmatpush.bf16.msra.mxu0 0
  %252 = vmatpush.bf16.msra.mxu0 0
  %253 = vmatpush.bf16.msra.mxu0 0
  %254 = vmatpush.bf16.msra.mxu0 0
  %255 = vmatpush.bf16.msra.mxu0 0
  %256 = vmatpush.bf16.msra.mxu0 0
  %257 = vmatpush.bf16.msra.mxu0 %v238
  %258 = vmatpush.bf16.msra.mxu0 %v237
  %259 = vmatmul.bf16.gmra.mxu0 %v243
  %v260 = vpop.f32.mrf.mxu0
  %v261 = vadd.f32 %v227, %v260
  %v262 = vpop.f32.mrf.mxu0
  %v263 = vadd.f32 %v227, %v262
  %264 = vmatmul.bf16.gmra.mxu0 %v246
  %v265 = vpop.f32.mrf.mxu0
  %v266 = vadd.f32 %v227, %v265
  %v267 = vpop.f32.mrf.mxu0
  %v268 = vadd.f32 %v227, %v267
  %269 = vmatmul.bf16.gmra.mxu0 %v249
  %v270 = vpop.f32.mrf.mxu0
  %v271 = vadd.f32 %v227, %v270
  %v272 = vpop.f32.mrf.mxu0
  %v273 = vadd.f32 %v227, %v272
  %274 = vdwg.mxu0
  %v275 = vmul.f32 %v261, 0.5
  %v276 = vmul.f32 %v263, 0.5
  %v277 = vmul.f32 %v266, 0.5
  %v278 = vmul.f32 %v268, 0.5
  %v279 = vmul.f32 %v271, 0.5
  %v280 = vmul.f32 %v273, 0.5
  %v281 = vmul.f32 %v261, 0.044715
  %v282 = vmul.f32 %v263, 0.044715
  %v283 = vmul.f32 %v266, 0.044715
  %v284 = vmul.f32 %v268, 0.044715
  %v285 = vmul.f32 %v271, 0.044715
  %v286 = vmul.f32 %v273, 0.044715
  %v287 = vmul.f32 %v281, %v261
  %v288 = vmul.f32 %v282, %v263
  %v289 = vmul.f32 %v283, %v266
  %v290 = vmul.f32 %v284, %v268
  %v291 = vmul.f32 %v285, %v271
  %v292 = vmul.f32 %v286, %v273
  %v293 = vmul.f32 %v287, %v261
  %v294 = vmul.f32 %v288, %v263
  %v295 = vmul.f32 %v289, %v266
  %v296 = vmul.f32 %v290, %v268
  %v297 = vmul.f32 %v291, %v271
  %v298 = vmul.f32 %v292, %v273
  %v299 = vadd.f32 %v261, %v293
  %v300 = vadd.f32 %v263, %v294
  %v301 = vadd.f32 %v266, %v295
  %v302 = vadd.f32 %v268, %v296
  %v303 = vadd.f32 %v271, %v297
  %v304 = vadd.f32 %v273, %v298
  %v305 = vmul.f32 %v299, 0.7978846
  %v306 = vmul.f32 %v300, 0.7978846
  %v307 = vmul.f32 %v301, 0.7978846
  %v308 = vmul.f32 %v302, 0.7978846
  %v309 = vmul.f32 %v303, 0.7978846
  %v310 = vmul.f32 %v304, 0.7978846
  %v311 = vtanh.pop %v305
  %v312 = vtanh.pop %v306
  %v313 = vtanh.pop %v307
  %v314 = vtanh.pop %v308
  %v315 = vtanh.pop %v309
  %v316 = vtanh.pop %v310
  %v317 = vadd.f32 %v311, 1.0
  %v318 = vadd.f32 %v312, 1.0
  %v319 = vadd.f32 %v313, 1.0
  %v320 = vadd.f32 %v314, 1.0
  %v321 = vadd.f32 %v315, 1.0
  %v322 = vadd.f32 %v316, 1.0
  %v323 = vmul.f32 %v275, %v317
  %v324 = vmul.f32 %v276, %v318
  %v325 = vmul.f32 %v277, %v319
  %v326 = vmul.f32 %v278, %v320
  %v327 = vmul.f32 %v279, %v321
  %v328 = vmul.f32 %v280, %v322
  %v329 = vld [vmem:[#allocation3] sm:$0xff]
  %v330 = vld [vmem:[#allocation3 + $0x8] sm:$0xff]
  %v331 = vld [vmem:[#allocation3 + $0x10] sm:$0xff]
  %v332 = vld [vmem:[#allocation3 + $0x18] sm:$0xff]
  %v333 = vld [vmem:[#allocation3 + $0x20] sm:$0xff]
  %v334 = vld [vmem:[#allocation3 + $0x28] sm:$0xff]
  %v335 = vpack.c.bf16 %v324, %v323
  %v336 = vpack.c.bf16 %v326, %v325
  %v337 = vpack.c.bf16 %v328, %v327
  %v338 = vld [vmem:[%s5] sm:$0xf]
  %v339 = vld [vmem:[%s5 + $0x4] sm:$0xf]
  %v340 = vld [vmem:[%s5 + $0x8] sm:$0xf]
  %v341 = vld [vmem:[%s5 + $0xc] sm:$0xf]
  %v342 = vld [vmem:[%s5 + $0x10] sm:$0xf]
  %v343 = vld [vmem:[%s5 + $0x14] sm:$0xf]
  %v344 = vld [vmem:[%s5 + $0x18] sm:$0xf]
  %v345 = vld [vmem:[%s5 + $0x1c] sm:$0xf]
  %v346 = vld [vmem:[%s5 + $0x20] sm:$0xf]
  %v347 = vld [vmem:[%s5 + $0x24] sm:$0xf]
  %v348 = vld [vmem:[%s5 + $0x28] sm:$0xf]
  %v349 = vld [vmem:[%s5 + $0x2c] sm:$0xf]
  %v350 = vld [vmem:[%s5 + $0x30] sm:$0xf]
  %v351 = vld [vmem:[%s5 + $0x34] sm:$0xf]
  %v352 = vld [vmem:[%s5 + $0x38] sm:$0xf]
  %v353 = vld [vmem:[%s5 + $0x3c] sm:$0xf]
  %v370 = vunpack.c.l.b16 %v338
  %v371 = vunpack.c.l.b16 %v339
  %v372 = vunpack.c.l.b16 %v340
  %v373 = vunpack.c.l.b16 %v341
  %v374 = vunpack.c.l.b16 %v342
  %v375 = vunpack.c.l.b16 %v343
  %v376 = vunpack.c.l.b16 %v344
  %v377 = vunpack.c.l.b16 %v345
  %v378 = vunpack.c.l.b16 %v346
  %v379 = vunpack.c.l.b16 %v347
  %v380 = vunpack.c.l.b16 %v348
  %v381 = vunpack.c.l.b16 %v349
  %v382 = vunpack.c.l.b16 %v350
  %v383 = vunpack.c.l.b16 %v351
  %v384 = vunpack.c.l.b16 %v352
  %v385 = vunpack.c.l.b16 %v353
  %v386 = vpack.c.b16 %v371, %v370
  %v387 = vpack.c.b16 %v373, %v372
  %v388 = vpack.c.b16 %v375, %v374
  %v389 = vpack.c.b16 %v377, %v376
  %v390 = vpack.c.b16 %v379, %v378
  %v391 = vpack.c.b16 %v381, %v380
  %v392 = vpack.c.b16 %v383, %v382
  %v393 = vpack.c.b16 %v385, %v384
  %402 = vmatpush.bf16.msra.mxu0 %v393
  %403 = vmatpush.bf16.msra.mxu0 %v392
  %404 = vmatpush.bf16.msra.mxu0 %v391
  %405 = vmatpush.bf16.msra.mxu0 %v390
  %406 = vmatpush.bf16.msra.mxu0 %v389
  %407 = vmatpush.bf16.msra.mxu0 %v388
  %408 = vmatpush.bf16.msra.mxu0 %v387
  %409 = vmatpush.bf16.msra.mxu0 %v386
  %410 = vmatmul.bf16.gmra.mxu0 %v335
  %v411 = vpop.f32.mrf.mxu0
  %v412 = vadd.f32 0.0, %v411
  %v413 = vpop.f32.mrf.mxu0
  %v414 = vadd.f32 0.0, %v413
  %415 = vmatmul.bf16.gmra.mxu0 %v336
  %v416 = vpop.f32.mrf.mxu0
  %v417 = vadd.f32 0.0, %v416
  %v418 = vpop.f32.mrf.mxu0
  %v419 = vadd.f32 0.0, %v418
  %420 = vmatmul.bf16.gmra.mxu0 %v337
  %v421 = vpop.f32.mrf.mxu0
  %v422 = vadd.f32 0.0, %v421
  %v423 = vpop.f32.mrf.mxu0
  %v424 = vadd.f32 0.0, %v423
  %425 = vdwg.mxu0
  %v426 = vadd.f32 %v329, %v412
  %v427 = vadd.f32 %v330, %v414
  %v428 = vadd.f32 %v331, %v417
  %v429 = vadd.f32 %v332, %v419
  %v430 = vadd.f32 %v333, %v422
  %v431 = vadd.f32 %v334, %v424
  %432 = vst.msk [vmem:[#allocation3] sm:$0xff] %vm241, %v426
  %433 = vst.msk [vmem:[#allocation3 + $0x8] sm:$0xff] %vm241, %v427
  %434 = vst.msk [vmem:[#allocation3 + $0x10] sm:$0xff] %vm241, %v428
  %435 = vst.msk [vmem:[#allocation3 + $0x18] sm:$0xff] %vm241, %v429
  %436 = vst.msk [vmem:[#allocation3 + $0x20] sm:$0xff] %vm241, %v430
  %437 = vst.msk [vmem:[#allocation3 + $0x28] sm:$0xff] %vm241, %v431
  // Predicated region
  $region38: #{gpt_decoder_forward.17} parent=0 // pred_check
    %p438 = pneg %p30
  $region39: #{gpt_decoder_forward.17} parent=0 // pred_check_branch
    %440 = sbr.rel (%p438) target = $region41
  $region40: #{gpt_decoder_forward.17} parent=0 // pred_region
    %v441 = vld [vmem:[#allocation3] sm:$0xff]
    %v442 = vld [vmem:[#allocation3 + $0x8] sm:$0xff]
    %v443 = vld [vmem:[#allocation3 + $0x10] sm:$0xff]
    %v444 = vld [vmem:[#allocation3 + $0x18] sm:$0xff]
    %v445 = vld [vmem:[#allocation3 + $0x20] sm:$0xff]
    %v446 = vld [vmem:[#allocation3 + $0x28] sm:$0xff]
    %v447 = vld [vmem:[%s6] sm:$0x1]
    %v449 = vperm.slane %v447, 0
    %v451 = vadd.f32 %v441, %v449
    %v452 = vadd.f32 %v442, %v449
    %v453 = vadd.f32 %v443, %v449
    %v454 = vadd.f32 %v444, %v449
    %v455 = vadd.f32 %v445, %v449
    %v456 = vadd.f32 %v446, %v449
    %v457 = vld [vmem:[%s7] sm:$0xff]
    %v458 = vld [vmem:[%s7 + $0x8] sm:$0xff]
    %v459 = vld [vmem:[%s7 + $0x10] sm:$0xff]
    %v460 = vld [vmem:[%s7 + $0x18] sm:$0xff]
    %v461 = vld [vmem:[%s7 + $0x20] sm:$0xff]
    %v462 = vld [vmem:[%s7 + $0x28] sm:$0xff]
    %v463 = vadd.f32 %v451, %v457
    %v464 = vadd.f32 %v452, %v458
    %v465 = vadd.f32 %v453, %v459
    %v466 = vadd.f32 %v454, %v460
    %v467 = vadd.f32 %v455, %v461
    %v468 = vadd.f32 %v456, %v462
    %469 = vst.msk [vmem:[%s8] sm:$0xff] %vm241, %v463
    %470 = vst.msk [vmem:[%s8 + $0x8] sm:$0xff] %vm241, %v464
    %471 = vst.msk [vmem:[%s8 + $0x10] sm:$0xff] %vm241, %v465
    %472 = vst.msk [vmem:[%s8 + $0x18] sm:$0xff] %vm241, %v466
    %473 = vst.msk [vmem:[%s8 + $0x20] sm:$0xff] %vm241, %v467
    %474 = vst.msk [vmem:[%s8 + $0x28] sm:$0xff] %vm241, %v468
  $region41: #{gpt_decoder_forward.17} parent=0 // pred_fallthru
    _
  // Predicated region
  $region42: #{gpt_decoder_forward.17} parent=0 // pred_check
    _
  $region43: #{gpt_decoder_forward.17} parent=0 // pred_check_branch
    %476 = sbr.rel (0) target = $region45
  $region44: #{gpt_decoder_forward.17} parent=0 // pred_region
    _
  $region45: #{gpt_decoder_forward.17} parent=0 // pred_fallthru
    _
  // Predicated region
  $region46: #{gpt_decoder_forward.17} parent=0 // pred_check
    _
  $region47: #{gpt_decoder_forward.17} parent=0 // pred_check_branch
    %478 = sbr.rel (0) target = $region49
  $region48: #{gpt_decoder_forward.17} parent=0 // pred_region
    _
  $region49: #{gpt_decoder_forward.17} parent=0 // pred_fallthru
    _

// kernel: gpt_decoder_forward.23
$region0: #{gpt_decoder_forward.23}
  #allocation0 [shape = 'u32[]', space=smem, size = 0x4, offset = 0x4, fixed_abs, tag = 'smem constant byte address 0x4 - core index']
  #allocation1 [shape = 'u32[72,128]{1,0:T(1,128)}', space=vmem, size = 0x9000, scoped, tag = 'internal scratch']
  %s0 = inlined_call_operand.vmem [shape: f32[16,32], index: 0, kind: input, shape index: {}]
  %s1 = inlined_call_operand.vmem [shape: f32[1,32], index: 1, kind: input, shape index: {}]
  %s2 = inlined_call_operand.vmem [shape: f32[1,32], index: 2, kind: input, shape index: {}]
  %s3 = inlined_call_operand.vmem [shape: bf16[32,3], index: 3, kind: input, shape index: {}]
  %s4 = inlined_call_operand.vmem [shape: f32[1,3], index: 4, kind: input, shape index: {}]
  %s5 = inlined_call_operand.vmem [shape: f32[16,3], index: 5, kind: output, shape index: {}]
  %s6 = sld [smem:[#allocation0]]
  $region30: #{gpt_decoder_forward.23} parent=0
    _
  %s8 = ssub.s32 1, %s6
  %s9 = scalar_select 0, %s8, %s6
  // Predicated region
  $region2: #{gpt_decoder_forward.23} parent=0 // pred_check
    _
  $region3: #{gpt_decoder_forward.23} parent=0 // pred_check_branch
    %11 = sbr.rel (0) target = $region5
  $region4: #{gpt_decoder_forward.23} parent=0 // pred_region
    _
  $region5: #{gpt_decoder_forward.23} parent=0 // pred_fallthru
    _
  // Predicated region
  $region6: #{gpt_decoder_forward.23} parent=0 // pred_check
    _
  $region7: #{gpt_decoder_forward.23} parent=0 // pred_check_branch
    %13 = sbr.rel (0) target = $region9
  $region8: #{gpt_decoder_forward.23} parent=0 // pred_region
    _
  $region9: #{gpt_decoder_forward.23} parent=0 // pred_fallthru
    _
  // Predicated region
  $region10: #{gpt_decoder_forward.23} parent=0 // pred_check
    _
  $region11: #{gpt_decoder_forward.23} parent=0 // pred_check_branch
    %15 = sbr.rel (0) target = $region13
  $region12: #{gpt_decoder_forward.23} parent=0 // pred_region
    _
  $region13: #{gpt_decoder_forward.23} parent=0 // pred_fallthru
    _
  // Predicated region
  $region14: #{gpt_decoder_forward.23} parent=0 // pred_check
    _
  $region15: #{gpt_decoder_forward.23} parent=0 // pred_check_branch
    %17 = sbr.rel (0) target = $region17
  $region16: #{gpt_decoder_forward.23} parent=0 // pred_region
    _
  $region17: #{gpt_decoder_forward.23} parent=0 // pred_fallthru
    _
  // Predicated region
  $region18: #{gpt_decoder_forward.23} parent=0 // pred_check
    _
  $region19: #{gpt_decoder_forward.23} parent=0 // pred_check_branch
    %19 = sbr.rel (0) target = $region21
  $region20: #{gpt_decoder_forward.23} parent=0 // pred_region
    _
  $region21: #{gpt_decoder_forward.23} parent=0 // pred_fallthru
    _
  %v21 = vld [vmem:[%s0] sm:$0xff]
  %v22 = vld [vmem:[%s0 + $0x8] sm:$0xff]
  %v23 = vld [vmem:[%s1] sm:$0x1]
  %v24 = vld [vmem:[%s2] sm:$0x1]
  %vm25 = vcmask 261120
  %v26 = vsel %vm25, %v21, 0.0
  %27 = vadd.xlane.f32.xlu0 %v26
  %v28 = vpop.xlane.xlu0 %27
  %v29 = vsel %vm25, %v22, 0.0
  %30 = vadd.xlane.f32.xlu0 %v29
  %v31 = vpop.xlane.xlu0 %30
  %v32 = vrcp.pop 32.0
  %v33 = vmul.f32 32.0, %v32
  %v34 = vsub.f32 1.0, %v33
  %v35 = vmul.f32 %v32, %v34
  %v36 = vadd.f32 %v32, %v35
  %vm37 = vweird.f32 %v32
  %v38 = vsel %vm37, %v32, %v36
  %v39 = vmul.f32 %v28, %v38
  %v40 = vmul.f32 %v31, %v38
  %v41 = vsub.f32 %v21, %v39
  %v42 = vsub.f32 %v22, %v40
  %v43 = vmul.f32 %v41, %v41
  %v44 = vmul.f32 %v42, %v42
  %v45 = vsel %vm25, %v43, 0.0
  %46 = vadd.xlane.f32.xlu0 %v45
  %v47 = vpop.xlane.xlu0 %46
  %v48 = vsel %vm25, %v44, 0.0
  %49 = vadd.xlane.f32.xlu0 %v48
  %v50 = vpop.xlane.xlu0 %49
  %v51 = vmul.f32 %v47, %v38
  %v52 = vmul.f32 %v50, %v38
  %v53 = vadd.f32 %v51, 1e-05
  %v54 = vadd.f32 %v52, 1e-05
  %v55 = vrsqrt.pop %v53
  %v56 = vmul.f32 %v55, %v53
  %v57 = vmul.f32 %v56, %v55
  %v58 = vmul.f32 0.5, %v57
  %v59 = vsub.f32 1.5, %v58
  %v60 = vmul.f32 %v55, %v59
  %vm61 = vweird.f32 %v53
  %vm62 = vweird.f32 %v55
  %vm63 = vmor %vm61, %vm62
  %v64 = vsel %vm63, %v55, %v60
  %v65 = vrsqrt.pop %v54
  %v66 = vmul.f32 %v65, %v54
  %v67 = vmul.f32 %v66, %v65
  %v68 = vmul.f32 0.5, %v67
  %v69 = vsub.f32 1.5, %v68
  %v70 = vmul.f32 %v65, %v69
  %vm71 = vweird.f32 %v54
  %vm72 = vweird.f32 %v65
  %vm73 = vmor %vm71, %vm72
  %v74 = vsel %vm73, %v65, %v70
  %v75 = vmul.f32 %v41, %v64
  %v76 = vmul.f32 %v42, %v74
  %v78 = vperm.slane %v23, 0
  %v80 = vmul.f32 %v75, %v78
  %v81 = vmul.f32 %v76, %v78
  %v83 = vperm.slane %v24, 0
  %v85 = vadd.f32 %v80, %v83
  %v86 = vadd.f32 %v81, %v83
  %v87 = vpack.c.bf16 %v86, %v85
  %v88 = vld [vmem:[%s3] sm:$0xf]
  %v89 = vld [vmem:[%s3 + $0x4] sm:$0xf]
  %v90 = vld [vmem:[%s3 + $0x8] sm:$0xf]
  %v91 = vld [vmem:[%s3 + $0xc] sm:$0xf]
  %v92 = vld [vmem:[%s4] sm:$0x1]
  %v94 = vperm.slane %v92, 0
  %v100 = vunpack.c.l.b16 %v88
  %v101 = vunpack.c.l.b16 %v89
  %v102 = vunpack.c.l.b16 %v90
  %v103 = vunpack.c.l.b16 %v91
  %v104 = vpack.c.b16 %v101, %v100
  %v105 = vpack.c.b16 %v103, %v102
  %v109 = vsel %vm25, %v87, 0
  %111 = vmatpush.bf16.msra.mxu0 0
  %112 = vmatpush.bf16.msra.mxu0 0
  %113 = vmatpush.bf16.msra.mxu0 0
  %114 = vmatpush.bf16.msra.mxu0 0
  %115 = vmatpush.bf16.msra.mxu0 0
  %116 = vmatpush.bf16.msra.mxu0 0
  %117 = vmatpush.bf16.msra.mxu0 %v105
  %118 = vmatpush.bf16.msra.mxu0 %v104
  %119 = vmatmul.bf16.gmra.mxu0 %v109
  %v120 = vpop.f32.mrf.mxu0
  %v121 = vadd.f32 %v94, %v120
  %v122 = vpop.f32.mrf.mxu0
  %v123 = vadd.f32 %v94, %v122
  %124 = vdwg.mxu0
  %vm125 = vcmask 23552
  %126 = vst.msk [vmem:[%s5] sm:$0xff] %vm125, %v121
  %127 = vst.msk [vmem:[%s5 + $0x8] sm:$0xff] %vm125, %v123
  // Predicated region
  $region22: #{gpt_decoder_forward.23} parent=0 // pred_check
    _
  $region23: #{gpt_decoder_forward.23} parent=0 // pred_check_branch
    %129 = sbr.rel (0) target = $region25
  $region24: #{gpt_decoder_forward.23} parent=0 // pred_region
    _
  $region25: #{gpt_decoder_forward.23} parent=0 // pred_fallthru
    _
  // Predicated region
  $region26: #{gpt_decoder_forward.23} parent=0 // pred_check
    _
  $region27: #{gpt_decoder_forward.23} parent=0 // pred_check_branch
    %131 = sbr.rel (0) target = $region29
  $region28: #{gpt_decoder_forward.23} parent=0 // pred_region
    _
  $region29: #{gpt_decoder_forward.23} parent=0 // pred_fallthru
    _

</llo_original>
